<compile_context>
chip_gen: v5e
topology: v5e:2x2
jax: 0.10.0
libtpu: 0.0.40
codegen_flags: <defaults>
</compile_context>

<pallas_src>
import functools

import jax
import jax.numpy as jnp
import numpy as np
from jax.experimental import pallas as pl
from jax.experimental.pallas import tpu as pltpu

TB = 8  # images per grid step (multiple of 8 == f32 sublane granularity)


# --------------------------------------------------------------------------- #
# One-time parameter repacking (numpy, outside jit)
# --------------------------------------------------------------------------- #

def _conv_toeplitz(w_oihw, in_w, half):
    """Toeplitz-embed a 5x5 conv weight for the row-matmul formulation.

    Returns (KH, in_w*Cin, 256) f32.
      rows    : w_in * Cin + cin                      (cin fastest)
      columns : half 0 -> even output cols w_out=2j   (lane j*O + o)
                half 1 (offset 128) -> odd output cols w_out=2j+1
    """
    O, Cin, KH, KW = w_oihw.shape
    out = np.zeros((KH, in_w * Cin, 256), np.float32)
    for kh in range(KH):
        for j in range(half):
            for par in range(2):
                w_out = 2 * j + par
                col0 = par * 128 + j * O
                for kw in range(KW):
                    w_in = w_out + kw
                    if w_in >= in_w:
                        continue
                    r0 = w_in * Cin
                    out[kh, r0:r0 + Cin, col0:col0 + O] = w_oihw[:, :, kh, kw].T
    return out


def prepare_params(params):
    """Repack PyTorch-layout params into the fused-kernel layout (done once)."""
    w1 = np.asarray(params["w1"], np.float32)        # (6, 3, 5, 5)  OIHW
    b1 = np.asarray(params["b1"], np.float32)
    w2 = np.asarray(params["w2"], np.float32)        # (16, 6, 5, 5)
    b2 = np.asarray(params["b2"], np.float32)
    wf1 = np.asarray(params["w_fc1"], np.float32)    # (120, 400)
    bf1 = np.asarray(params["b_fc1"], np.float32)
    wf2 = np.asarray(params["w_fc2"], np.float32)    # (84, 120)
    bf2 = np.asarray(params["b_fc2"], np.float32)
    wf3 = np.asarray(params["w_fc3"], np.float32)    # (10, 84)
    bf3 = np.asarray(params["b_fc3"], np.float32)

    # conv1, kh folded into K:  K = kh*128 + (w_in*3 + c)   (96 valid / segment)
    t1 = _conv_toeplitz(w1, in_w=32, half=14)                 # (5, 96, 256)
    W1 = np.zeros((5, 128, 256), np.float32)
    W1[:, :96, :] = t1
    W1 = W1.reshape(640, 256)

    # conv2, kh folded into K:  K = kh*128 + (w'*6 + c')     (84 valid / segment)
    t2 = _conv_toeplitz(w2, in_w=14, half=5)                  # (5, 84, 256)
    W2 = np.zeros((5, 128, 256), np.float32)
    W2[:, :84, :] = t2
    W2 = W2.reshape(640, 256)

    b1t = np.zeros((1, 128), np.float32)
    b1t[0, :14 * 6] = np.tile(b1, 14)                         # lane = j*6 + o
    b2t = np.zeros((1, 128), np.float32)
    b2t[0, :5 * 16] = np.tile(b2, 5)                          # lane = w''*16 + o

    # fc1: torch flattens (c, h, w); our pooled2 layout is rows=h, lanes=w*16+c,
    # folded over h into K = h*128 + (w*16 + c).
    wf1_hwcn = wf1.reshape(120, 16, 5, 5).transpose(2, 3, 1, 0).reshape(5, 80, 120)
    WF1 = np.zeros((5, 128, 128), np.float32)
    WF1[:, :80, :120] = wf1_hwcn
    WF1 = WF1.reshape(640, 128)
    BF1 = np.zeros((1, 128), np.float32); BF1[0, :120] = bf1

    WF2 = np.zeros((128, 128), np.float32); WF2[:120, :84] = wf2.T
    BF2 = np.zeros((1, 128), np.float32); BF2[0, :84] = bf2
    WF3 = np.zeros((128, 128), np.float32); WF3[:84, :10] = wf3.T   # lane-dense out
    BF3 = np.zeros((1, 128), np.float32); BF3[0, :10] = bf3

    packed = dict(w1=W1, b1=b1t, w2=W2, b2=b2t,
                  wf1=WF1, bf1=BF1, wf2=WF2, bf2=BF2, wf3=WF3, bf3=BF3)
    return {k: jnp.asarray(v) for k, v in packed.items()}


# --------------------------------------------------------------------------- #
# Fused Pallas kernel (TB images per grid step)
# --------------------------------------------------------------------------- #

def _cnn_fused_kernel(x_ref, w1_ref, b1_ref, w2_ref, b2_ref,
                      wf1_ref, bf1_ref, wf2_ref, bf2_ref, wf3_ref, bf3_ref,
                      out_ref, *, tb):
    f32 = jnp.float32
    n7 = 7 * tb

    # ---------------- conv1 + bias + relu + 2x2 maxpool : ONE dot ----------- #
    # x_ref: (28*tb, 640). Row r*(7*tb) + a*tb + img holds the 5 shifted input
    # rows (4a+r+kh, kh=0..4) needed by conv1 output row 4a+r, folded into K.
    c1 = jnp.dot(x_ref[...], w1_ref[...], preferred_element_type=f32)    # (28tb,256)
    c1 = jnp.maximum(c1[:, :128], c1[:, 128:])       # max over W-parity (pool cols)
    b1 = b1_ref[...]
    # residues r=0,1 pair into even pooled rows (2a); r=2,3 into odd rows (2a+1)
    p1e = jnp.maximum(jnp.maximum(c1[0 * n7:1 * n7], c1[1 * n7:2 * n7]) + b1, 0.0)
    p1o = jnp.maximum(jnp.maximum(c1[2 * n7:3 * n7], c1[3 * n7:4 * n7]) + b1, 0.0)
    # p1e/p1o: (7*tb, 128), row = a*tb + img, lane = j*6 + o.

    # ---------------- conv2 + bias + relu + 2x2 maxpool : TWO dots ---------- #
    # conv2 output row 2m+par needs pooled1 row 2m+par+kh; fold kh into K by
    # lane-concatenating five tile-aligned row slabs (rows (m+off)*tb + img).
    def rows(p, off):
        return p[off * tb:(off + 5) * tb]
    lhs_e = jnp.concatenate([rows(p1e, 0), rows(p1o, 0), rows(p1e, 1),
                             rows(p1o, 1), rows(p1e, 2)], axis=-1)       # (5tb,640)
    lhs_o = jnp.concatenate([rows(p1o, 0), rows(p1e, 1), rows(p1o, 1),
                             rows(p1e, 2), rows(p1o, 2)], axis=-1)       # (5tb,640)
    c2e = jnp.dot(lhs_e, w2_ref[...], preferred_element_type=f32)        # (5tb,256)
    c2o = jnp.dot(lhs_o, w2_ref[...], preferred_element_type=f32)
    c2e = jnp.maximum(c2e[:, :128], c2e[:, 128:])
    c2o = jnp.maximum(c2o[:, :128], c2o[:, 128:])
    p2 = jnp.maximum(jnp.maximum(c2e, c2o) + b2_ref[...], 0.0)           # (5tb,128)
    # p2: row = h*tb + img, lane = w''*16 + o.

    # --------------------------- fc1 / fc2 / fc3 ---------------------------- #
    flat = jnp.concatenate([p2[h * tb:(h + 1) * tb] for h in range(5)],
                           axis=-1)                                      # (tb,640)
    h1 = jnp.maximum(jnp.dot(flat, wf1_ref[...], preferred_element_type=f32)
                     + bf1_ref[...], 0.0)                                # (tb,128)
    h2 = jnp.maximum(jnp.dot(h1, wf2_ref[...], preferred_element_type=f32)
                     + bf2_ref[...], 0.0)                                # (tb,128)
    out_ref[...] = (jnp.dot(h2, wf3_ref[...], preferred_element_type=f32)
                    + bf3_ref[...])                                      # (tb,128)


def cnn_forward(x_nchw, prep, *, tb=TB):
    B = x_nchw.shape[0]
    nblk = pl.cdiv(B, tb)
    bp = nblk * tb

    # NHWC rows flattened (w, c); pad batch to a tb multiple, lanes 96 -> 128.
    x = jnp.transpose(x_nchw, (0, 2, 3, 1)).reshape(B, 32, 96)
    x = jnp.pad(x, ((0, bp - B), (0, 0), (0, 32)))                       # (bp,32,128)

    # Conv1 LHS: gather the 5 shifted input rows each conv1 output row needs,
    # fold them into the lane/K dim; M-row order per block = (r, a, img).
    r_ = np.arange(4)[:, None, None]
    a_ = np.arange(7)[None, :, None]
    k_ = np.arange(5)[None, None, :]
    row_idx = np.asarray(4 * a_ + r_ + k_, np.int32)                     # (4,7,5)
    slab = x[:, row_idx, :]                                              # (bp,4,7,5,128)
    slab = slab.reshape(bp, 4, 7, 640)
    slab = slab.reshape(nblk, tb, 4, 7, 640)
    slab = jnp.transpose(slab, (0, 2, 3, 1, 4))                          # (nblk,4,7,tb,640)
    x_c1 = slab.reshape(nblk, 28 * tb, 640)

    kernel = functools.partial(_cnn_fused_kernel, tb=tb)
    const = lambda i: (0, 0)
    out = pl.pallas_call(
        kernel,
        out_shape=jax.ShapeDtypeStruct((bp, 128), jnp.float32),
        grid=(nblk,),
        in_specs=[
            pl.BlockSpec((None, 28 * tb, 640), lambda i: (i, 0, 0)),     # conv1 LHS
            pl.BlockSpec((640, 256), const),                             # W1 (Toeplitz)
            pl.BlockSpec((1, 128), const),                               # b1
            pl.BlockSpec((640, 256), const),                             # W2 (Toeplitz)
            pl.BlockSpec((1, 128), const),                               # b2
            pl.BlockSpec((640, 128), const),                             # W_fc1
            pl.BlockSpec((1, 128), const),                               # b_fc1
            pl.BlockSpec((128, 128), const),                             # W_fc2
            pl.BlockSpec((1, 128), const),                               # b_fc2
            pl.BlockSpec((128, 128), const),                             # W_fc3 (padded)
            pl.BlockSpec((1, 128), const),                               # b_fc3 (padded)
        ],
        out_specs=pl.BlockSpec((tb, 128), lambda i: (i, 0)),
        compiler_params=pltpu.CompilerParams(
            dimension_semantics=("parallel",)),
    )(x_c1, prep["w1"], prep["b1"], prep["w2"], prep["b2"],
      prep["wf1"], prep["bf1"], prep["wf2"], prep["bf2"],
      prep["wf3"], prep["bf3"])
    return out[:B, :10]


# --------------------------------------------------------------------------- #
# Pure-XLA reference and parameter init (for validation)
# --------------------------------------------------------------------------- #

def reference_forward(x_nchw, params):
    dn = ("NCHW", "OIHW", "NCHW")

    def conv_relu(x, w, b):
        y = jax.lax.conv_general_dilated(x, w, (1, 1), "VALID", dimension_numbers=dn)
        return jax.nn.relu(y + b.reshape(1, -1, 1, 1))

    def pool(x):
        return jax.lax.reduce_window(x, -jnp.inf, jax.lax.max,
                                     (1, 1, 2, 2), (1, 1, 2, 2), "VALID")

    y = pool(conv_relu(x_nchw, params["w1"], params["b1"]))
    y = pool(conv_relu(y, params["w2"], params["b2"]))
    y = y.reshape(y.shape[0], -1)
    y = jax.nn.relu(y @ params["w_fc1"].T + params["b_fc1"])
    y = jax.nn.relu(y @ params["w_fc2"].T + params["b_fc2"])
    return y @ params["w_fc3"].T + params["b_fc3"]


def init_params(key):
    ks = jax.random.split(key, 10)
    s = 0.1
    return {
        "w1": jax.random.normal(ks[0], (6, 3, 5, 5), jnp.float32) * s,
        "b1": jax.random.normal(ks[1], (6,), jnp.float32) * s,
        "w2": jax.random.normal(ks[2], (16, 6, 5, 5), jnp.float32) * s,
        "b2": jax.random.normal(ks[3], (16,), jnp.float32) * s,
        "w_fc1": jax.random.normal(ks[4], (120, 400), jnp.float32) * s,
        "b_fc1": jax.random.normal(ks[5], (120,), jnp.float32) * s,
        "w_fc2": jax.random.normal(ks[6], (84, 120), jnp.float32) * s,
        "b_fc2": jax.random.normal(ks[7], (84,), jnp.float32) * s,
        "w_fc3": jax.random.normal(ks[8], (10, 84), jnp.float32) * s,
        "b_fc3": jax.random.normal(ks[9], (10,), jnp.float32) * s,
    }


if __name__ == "__main__":
    root = jax.random.PRNGKey(0)
    k_x, k_p = jax.random.split(root)

    B = 16                                                    # 2 grid steps of TB=8
    x = jax.random.normal(k_x, (B, 3, 32, 32), jnp.float32)   # NCHW, like PyTorch
    params = init_params(k_p)
    prep = prepare_params(params)                             # one-time repack

    fwd = jax.jit(functools.partial(cnn_forward, tb=TB))
    out = jax.block_until_ready(fwd(x, prep))
    assert out.shape == (B, 10) and out.dtype == jnp.float32

    ref = jax.block_until_ready(reference_forward(x, params))
    np.testing.assert_allclose(np.asarray(out), np.asarray(ref), rtol=2e-3, atol=2e-3)

    print("KERNEL_OK")
</pallas_src>

<mosaic_0001>
module attributes {stable_mosaic.version = 11 : i64} {
  func.func @_cnn_fused_kernel(%arg0: i32, %arg1: memref<1x224x640xf32, #tpu.memory_space<vmem>>, %arg2: memref<640x256xf32, #tpu.memory_space<vmem>>, %arg3: memref<1x128xf32, #tpu.memory_space<vmem>>, %arg4: memref<640x256xf32, #tpu.memory_space<vmem>>, %arg5: memref<1x128xf32, #tpu.memory_space<vmem>>, %arg6: memref<640x128xf32, #tpu.memory_space<vmem>>, %arg7: memref<1x128xf32, #tpu.memory_space<vmem>>, %arg8: memref<128x128xf32, #tpu.memory_space<vmem>>, %arg9: memref<1x128xf32, #tpu.memory_space<vmem>>, %arg10: memref<128x128xf32, #tpu.memory_space<vmem>>, %arg11: memref<1x128xf32, #tpu.memory_space<vmem>>, %arg12: memref<8x128xf32, #tpu.memory_space<vmem>>) attributes {dimension_semantics = [#tpu.dimension_semantics<parallel>], iteration_bounds = array<i64: 2>, scalar_prefetch = 0 : i64, scratch_operands = 0 : i64, tpu.core_type = #tpu.core_type<tc>, window_params = [{transform_indices = @transform_0, window_bounds = array<i64: 1, 224, 640>}, {pipeline_mode = #tpu.pipeline_mode<synchronous>, transform_indices = @transform_1, window_bounds = array<i64: 640, 256>}, {pipeline_mode = #tpu.pipeline_mode<synchronous>, transform_indices = @transform_2, window_bounds = array<i64: 1, 128>}, {pipeline_mode = #tpu.pipeline_mode<synchronous>, transform_indices = @transform_3, window_bounds = array<i64: 640, 256>}, {pipeline_mode = #tpu.pipeline_mode<synchronous>, transform_indices = @transform_4, window_bounds = array<i64: 1, 128>}, {pipeline_mode = #tpu.pipeline_mode<synchronous>, transform_indices = @transform_5, window_bounds = array<i64: 640, 128>}, {pipeline_mode = #tpu.pipeline_mode<synchronous>, transform_indices = @transform_6, window_bounds = array<i64: 1, 128>}, {pipeline_mode = #tpu.pipeline_mode<synchronous>, transform_indices = @transform_7, window_bounds = array<i64: 128, 128>}, {pipeline_mode = #tpu.pipeline_mode<synchronous>, transform_indices = @transform_8, window_bounds = array<i64: 1, 128>}, {pipeline_mode = #tpu.pipeline_mode<synchronous>, transform_indices = @transform_9, window_bounds = array<i64: 128, 128>}, {pipeline_mode = #tpu.pipeline_mode<synchronous>, transform_indices = @transform_10, window_bounds = array<i64: 1, 128>}, {transform_indices = @transform_11, window_bounds = array<i64: 8, 128>}]} {
    %c0 = arith.constant 0 : index
    %c0_0 = arith.constant 0 : index
    %c0_1 = arith.constant 0 : index
    %0 = vector.load %arg1[%c0, %c0_0, %c0_1] : memref<1x224x640xf32, #tpu.memory_space<vmem>>, vector<1x224x640xf32>
    %1 = vector.shape_cast %0 : vector<1x224x640xf32> to vector<224x640xf32>
    %c0_2 = arith.constant 0 : index
    %c0_3 = arith.constant 0 : index
    %2 = vector.load %arg2[%c0_2, %c0_3] : memref<640x256xf32, #tpu.memory_space<vmem>>, vector<640x256xf32>
    %cst = arith.constant dense<0.000000e+00> : vector<224x256xf32>
    %3 = tpu.matmul %1, %2, %cst {dimension_numbers = #tpu.dot_dimension_numbers<[1], [0], [0], [1], [0, 0, 1, 1], [], []>} : vector<224x640xf32>, vector<640x256xf32>, vector<224x256xf32> -> vector<224x256xf32>
    %4 = vector.extract_strided_slice %3 {offsets = [0, 0], sizes = [224, 128], strides = [1, 1]} : vector<224x256xf32> to vector<224x128xf32>
    %5 = vector.extract_strided_slice %3 {offsets = [0, 128], sizes = [224, 128], strides = [1, 1]} : vector<224x256xf32> to vector<224x128xf32>
    %6 = arith.maximumf %4, %5 : vector<224x128xf32>
    %c0_4 = arith.constant 0 : index
    %c0_5 = arith.constant 0 : index
    %7 = vector.load %arg3[%c0_4, %c0_5] : memref<1x128xf32, #tpu.memory_space<vmem>>, vector<1x128xf32>
    %8 = vector.extract_strided_slice %6 {offsets = [0, 0], sizes = [56, 128], strides = [1, 1]} : vector<224x128xf32> to vector<56x128xf32>
    %9 = vector.extract_strided_slice %6 {offsets = [56, 0], sizes = [56, 128], strides = [1, 1]} : vector<224x128xf32> to vector<56x128xf32>
    %10 = arith.maximumf %8, %9 : vector<56x128xf32>
    %11 = vector.broadcast %7 : vector<1x128xf32> to vector<56x128xf32>
    %12 = arith.addf %10, %11 : vector<56x128xf32>
    %cst_6 = arith.constant 0.000000e+00 : f32
    %13 = vector.broadcast %cst_6 : f32 to vector<56x128xf32>
    %14 = arith.maximumf %12, %13 : vector<56x128xf32>
    %15 = vector.extract_strided_slice %6 {offsets = [112, 0], sizes = [56, 128], strides = [1, 1]} : vector<224x128xf32> to vector<56x128xf32>
    %16 = vector.extract_strided_slice %6 {offsets = [168, 0], sizes = [56, 128], strides = [1, 1]} : vector<224x128xf32> to vector<56x128xf32>
    %17 = arith.maximumf %15, %16 : vector<56x128xf32>
    %18 = vector.broadcast %7 : vector<1x128xf32> to vector<56x128xf32>
    %19 = arith.addf %17, %18 : vector<56x128xf32>
    %cst_7 = arith.constant 0.000000e+00 : f32
    %20 = vector.broadcast %cst_7 : f32 to vector<56x128xf32>
    %21 = arith.maximumf %19, %20 : vector<56x128xf32>
    %22 = vector.extract_strided_slice %14 {offsets = [0, 0], sizes = [40, 128], strides = [1, 1]} : vector<56x128xf32> to vector<40x128xf32>
    %23 = vector.extract_strided_slice %21 {offsets = [0, 0], sizes = [40, 128], strides = [1, 1]} : vector<56x128xf32> to vector<40x128xf32>
    %24 = vector.extract_strided_slice %14 {offsets = [8, 0], sizes = [40, 128], strides = [1, 1]} : vector<56x128xf32> to vector<40x128xf32>
    %25 = vector.extract_strided_slice %21 {offsets = [8, 0], sizes = [40, 128], strides = [1, 1]} : vector<56x128xf32> to vector<40x128xf32>
    %26 = vector.extract_strided_slice %14 {offsets = [16, 0], sizes = [40, 128], strides = [1, 1]} : vector<56x128xf32> to vector<40x128xf32>
    %27 = tpu.concatenate %22, %23, %24, %25, %26 in 1 : vector<40x128xf32>, vector<40x128xf32>, vector<40x128xf32>, vector<40x128xf32>, vector<40x128xf32> -> vector<40x640xf32>
    %28 = vector.extract_strided_slice %21 {offsets = [0, 0], sizes = [40, 128], strides = [1, 1]} : vector<56x128xf32> to vector<40x128xf32>
    %29 = vector.extract_strided_slice %14 {offsets = [8, 0], sizes = [40, 128], strides = [1, 1]} : vector<56x128xf32> to vector<40x128xf32>
    %30 = vector.extract_strided_slice %21 {offsets = [8, 0], sizes = [40, 128], strides = [1, 1]} : vector<56x128xf32> to vector<40x128xf32>
    %31 = vector.extract_strided_slice %14 {offsets = [16, 0], sizes = [40, 128], strides = [1, 1]} : vector<56x128xf32> to vector<40x128xf32>
    %32 = vector.extract_strided_slice %21 {offsets = [16, 0], sizes = [40, 128], strides = [1, 1]} : vector<56x128xf32> to vector<40x128xf32>
    %33 = tpu.concatenate %28, %29, %30, %31, %32 in 1 : vector<40x128xf32>, vector<40x128xf32>, vector<40x128xf32>, vector<40x128xf32>, vector<40x128xf32> -> vector<40x640xf32>
    %c0_8 = arith.constant 0 : index
    %c0_9 = arith.constant 0 : index
    %34 = vector.load %arg4[%c0_8, %c0_9] : memref<640x256xf32, #tpu.memory_space<vmem>>, vector<640x256xf32>
    %cst_10 = arith.constant dense<0.000000e+00> : vector<40x256xf32>
    %35 = tpu.matmul %27, %34, %cst_10 {dimension_numbers = #tpu.dot_dimension_numbers<[1], [0], [0], [1], [0, 0, 1, 1], [], []>} : vector<40x640xf32>, vector<640x256xf32>, vector<40x256xf32> -> vector<40x256xf32>
    %c0_11 = arith.constant 0 : index
    %c0_12 = arith.constant 0 : index
    %36 = vector.load %arg4[%c0_11, %c0_12] : memref<640x256xf32, #tpu.memory_space<vmem>>, vector<640x256xf32>
    %cst_13 = arith.constant dense<0.000000e+00> : vector<40x256xf32>
    %37 = tpu.matmul %33, %36, %cst_13 {dimension_numbers = #tpu.dot_dimension_numbers<[1], [0], [0], [1], [0, 0, 1, 1], [], []>} : vector<40x640xf32>, vector<640x256xf32>, vector<40x256xf32> -> vector<40x256xf32>
    %38 = vector.extract_strided_slice %35 {offsets = [0, 0], sizes = [40, 128], strides = [1, 1]} : vector<40x256xf32> to vector<40x128xf32>
    %39 = vector.extract_strided_slice %35 {offsets = [0, 128], sizes = [40, 128], strides = [1, 1]} : vector<40x256xf32> to vector<40x128xf32>
    %40 = arith.maximumf %38, %39 : vector<40x128xf32>
    %41 = vector.extract_strided_slice %37 {offsets = [0, 0], sizes = [40, 128], strides = [1, 1]} : vector<40x256xf32> to vector<40x128xf32>
    %42 = vector.extract_strided_slice %37 {offsets = [0, 128], sizes = [40, 128], strides = [1, 1]} : vector<40x256xf32> to vector<40x128xf32>
    %43 = arith.maximumf %41, %42 : vector<40x128xf32>
    %44 = arith.maximumf %40, %43 : vector<40x128xf32>
    %c0_14 = arith.constant 0 : index
    %c0_15 = arith.constant 0 : index
    %45 = vector.load %arg5[%c0_14, %c0_15] : memref<1x128xf32, #tpu.memory_space<vmem>>, vector<1x128xf32>
    %46 = vector.broadcast %45 : vector<1x128xf32> to vector<40x128xf32>
    %47 = arith.addf %44, %46 : vector<40x128xf32>
    %cst_16 = arith.constant 0.000000e+00 : f32
    %48 = vector.broadcast %cst_16 : f32 to vector<40x128xf32>
    %49 = arith.maximumf %47, %48 : vector<40x128xf32>
    %50 = vector.extract_strided_slice %49 {offsets = [0, 0], sizes = [8, 128], strides = [1, 1]} : vector<40x128xf32> to vector<8x128xf32>
    %51 = vector.extract_strided_slice %49 {offsets = [8, 0], sizes = [8, 128], strides = [1, 1]} : vector<40x128xf32> to vector<8x128xf32>
    %52 = vector.extract_strided_slice %49 {offsets = [16, 0], sizes = [8, 128], strides = [1, 1]} : vector<40x128xf32> to vector<8x128xf32>
    %53 = vector.extract_strided_slice %49 {offsets = [24, 0], sizes = [8, 128], strides = [1, 1]} : vector<40x128xf32> to vector<8x128xf32>
    %54 = vector.extract_strided_slice %49 {offsets = [32, 0], sizes = [8, 128], strides = [1, 1]} : vector<40x128xf32> to vector<8x128xf32>
    %55 = tpu.concatenate %50, %51, %52, %53, %54 in 1 : vector<8x128xf32>, vector<8x128xf32>, vector<8x128xf32>, vector<8x128xf32>, vector<8x128xf32> -> vector<8x640xf32>
    %c0_17 = arith.constant 0 : index
    %c0_18 = arith.constant 0 : index
    %56 = vector.load %arg6[%c0_17, %c0_18] : memref<640x128xf32, #tpu.memory_space<vmem>>, vector<640x128xf32>
    %cst_19 = arith.constant dense<0.000000e+00> : vector<8x128xf32>
    %57 = tpu.matmul %55, %56, %cst_19 {dimension_numbers = #tpu.dot_dimension_numbers<[1], [0], [0], [1], [0, 0, 1, 1], [], []>} : vector<8x640xf32>, vector<640x128xf32>, vector<8x128xf32> -> vector<8x128xf32>
    %c0_20 = arith.constant 0 : index
    %c0_21 = arith.constant 0 : index
    %58 = vector.load %arg7[%c0_20, %c0_21] : memref<1x128xf32, #tpu.memory_space<vmem>>, vector<1x128xf32>
    %59 = vector.broadcast %58 : vector<1x128xf32> to vector<8x128xf32>
    %60 = arith.addf %57, %59 : vector<8x128xf32>
    %cst_22 = arith.constant 0.000000e+00 : f32
    %61 = vector.broadcast %cst_22 : f32 to vector<8x128xf32>
    %62 = arith.maximumf %60, %61 : vector<8x128xf32>
    %c0_23 = arith.constant 0 : index
    %c0_24 = arith.constant 0 : index
    %63 = vector.load %arg8[%c0_23, %c0_24] : memref<128x128xf32, #tpu.memory_space<vmem>>, vector<128x128xf32>
    %cst_25 = arith.constant dense<0.000000e+00> : vector<8x128xf32>
    %64 = tpu.matmul %62, %63, %cst_25 {dimension_numbers = #tpu.dot_dimension_numbers<[1], [0], [0], [1], [0, 0, 1, 1], [], []>} : vector<8x128xf32>, vector<128x128xf32>, vector<8x128xf32> -> vector<8x128xf32>
    %c0_26 = arith.constant 0 : index
    %c0_27 = arith.constant 0 : index
    %65 = vector.load %arg9[%c0_26, %c0_27] : memref<1x128xf32, #tpu.memory_space<vmem>>, vector<1x128xf32>
    %66 = vector.broadcast %65 : vector<1x128xf32> to vector<8x128xf32>
    %67 = arith.addf %64, %66 : vector<8x128xf32>
    %cst_28 = arith.constant 0.000000e+00 : f32
    %68 = vector.broadcast %cst_28 : f32 to vector<8x128xf32>
    %69 = arith.maximumf %67, %68 : vector<8x128xf32>
    %c0_29 = arith.constant 0 : index
    %c0_30 = arith.constant 0 : index
    %70 = vector.load %arg10[%c0_29, %c0_30] : memref<128x128xf32, #tpu.memory_space<vmem>>, vector<128x128xf32>
    %cst_31 = arith.constant dense<0.000000e+00> : vector<8x128xf32>
    %71 = tpu.matmul %69, %70, %cst_31 {dimension_numbers = #tpu.dot_dimension_numbers<[1], [0], [0], [1], [0, 0, 1, 1], [], []>} : vector<8x128xf32>, vector<128x128xf32>, vector<8x128xf32> -> vector<8x128xf32>
    %c0_32 = arith.constant 0 : index
    %c0_33 = arith.constant 0 : index
    %72 = vector.load %arg11[%c0_32, %c0_33] : memref<1x128xf32, #tpu.memory_space<vmem>>, vector<1x128xf32>
    %73 = vector.broadcast %72 : vector<1x128xf32> to vector<8x128xf32>
    %74 = arith.addf %71, %73 : vector<8x128xf32>
    %c0_34 = arith.constant 0 : index
    %c0_35 = arith.constant 0 : index
    %75 = vector.load %arg12[%c0_34, %c0_35] : memref<8x128xf32, #tpu.memory_space<vmem>>, vector<8x128xf32>
    tpu.vector_store %arg12[%c0_34, %c0_35], %74 {strides = array<i32>} : memref<8x128xf32, #tpu.memory_space<vmem>>, vector<8x128xf32>,
    return
  }
  func.func @transform_0(%arg0: i32) -> (i32, i32, i32) {
    %c0_i32 = arith.constant 0 : i32
    %c0_i32_0 = arith.constant 0 : i32
    %c0_i32_1 = arith.constant 0 : i32
    return %arg0, %c0_i32, %c0_i32_0 : i32, i32, i32
  }
  func.func @transform_1(%arg0: i32) -> (i32, i32) {
    %c0_i32 = arith.constant 0 : i32
    %c0_i32_0 = arith.constant 0 : i32
    %c0_i32_1 = arith.constant 0 : i32
    return %c0_i32, %c0_i32_0 : i32, i32
  }
  func.func @transform_2(%arg0: i32) -> (i32, i32) {
    %c0_i32 = arith.constant 0 : i32
    %c0_i32_0 = arith.constant 0 : i32
    %c0_i32_1 = arith.constant 0 : i32
    return %c0_i32, %c0_i32_0 : i32, i32
  }
  func.func @transform_3(%arg0: i32) -> (i32, i32) {
    %c0_i32 = arith.constant 0 : i32
    %c0_i32_0 = arith.constant 0 : i32
    %c0_i32_1 = arith.constant 0 : i32
    return %c0_i32, %c0_i32_0 : i32, i32
  }
  func.func @transform_4(%arg0: i32) -> (i32, i32) {
    %c0_i32 = arith.constant 0 : i32
    %c0_i32_0 = arith.constant 0 : i32
    %c0_i32_1 = arith.constant 0 : i32
    return %c0_i32, %c0_i32_0 : i32, i32
  }
  func.func @transform_5(%arg0: i32) -> (i32, i32) {
    %c0_i32 = arith.constant 0 : i32
    %c0_i32_0 = arith.constant 0 : i32
    %c0_i32_1 = arith.constant 0 : i32
    return %c0_i32, %c0_i32_0 : i32, i32
  }
  func.func @transform_6(%arg0: i32) -> (i32, i32) {
    %c0_i32 = arith.constant 0 : i32
    %c0_i32_0 = arith.constant 0 : i32
    %c0_i32_1 = arith.constant 0 : i32
    return %c0_i32, %c0_i32_0 : i32, i32
  }
  func.func @transform_7(%arg0: i32) -> (i32, i32) {
    %c0_i32 = arith.constant 0 : i32
    %c0_i32_0 = arith.constant 0 : i32
    %c0_i32_1 = arith.constant 0 : i32
    return %c0_i32, %c0_i32_0 : i32, i32
  }
  func.func @transform_8(%arg0: i32) -> (i32, i32) {
    %c0_i32 = arith.constant 0 : i32
    %c0_i32_0 = arith.constant 0 : i32
    %c0_i32_1 = arith.constant 0 : i32
    return %c0_i32, %c0_i32_0 : i32, i32
  }
  func.func @transform_9(%arg0: i32) -> (i32, i32) {
    %c0_i32 = arith.constant 0 : i32
    %c0_i32_0 = arith.constant 0 : i32
    %c0_i32_1 = arith.constant 0 : i32
    return %c0_i32, %c0_i32_0 : i32, i32
  }
  func.func @transform_10(%arg0: i32) -> (i32, i32) {
    %c0_i32 = arith.constant 0 : i32
    %c0_i32_0 = arith.constant 0 : i32
    %c0_i32_1 = arith.constant 0 : i32
    return %c0_i32, %c0_i32_0 : i32, i32
  }
  func.func @transform_11(%arg0: i32) -> (i32, i32) {
    %c0_i32 = arith.constant 0 : i32
    %c0_i32_0 = arith.constant 0 : i32
    return %arg0, %c0_i32 : i32, i32
  }
}

</mosaic_0001>

<llo_original>
// kernel: cnn_forward.1
$region0: #{cnn_forward.1}
  #allocation0 [shape = 'u32[]', space=smem, size = 0x4, offset = 0x4, fixed_abs, tag = 'smem constant byte address 0x4 - core index']
  #allocation1 [shape = 'u32[72,128]{1,0:T(1,128)}', space=vmem, size = 0x9000, scoped, tag = 'internal scratch']
  %s0 = inlined_call_operand.vmem [shape: f32[2,224,640], index: 0, kind: input, shape index: {}]
  %s1 = inlined_call_operand.vmem [shape: f32[640,256], index: 1, kind: input, shape index: {}]
  %s2 = inlined_call_operand.vmem [shape: f32[1,128], index: 2, kind: input, shape index: {}]
  %s3 = inlined_call_operand.vmem [shape: f32[640,256], index: 3, kind: input, shape index: {}]
  %s4 = inlined_call_operand.vmem [shape: f32[1,128], index: 4, kind: input, shape index: {}]
  %s5 = inlined_call_operand.vmem [shape: f32[640,128], index: 5, kind: input, shape index: {}]
  %s6 = inlined_call_operand.vmem [shape: f32[1,128], index: 6, kind: input, shape index: {}]
  %s7 = inlined_call_operand.vmem [shape: f32[128,128], index: 7, kind: input, shape index: {}]
  %s8 = inlined_call_operand.vmem [shape: f32[1,128], index: 8, kind: input, shape index: {}]
  %s9 = inlined_call_operand.vmem [shape: f32[128,128], index: 9, kind: input, shape index: {}]
  %s10 = inlined_call_operand.vmem [shape: f32[1,128], index: 10, kind: input, shape index: {}]
  %s11 = inlined_call_operand.hbm [shape: f32[16,128], index: 11, kind: output, shape index: {}]
  %s12 = sld [smem:[#allocation0]]
  $region77: #{cnn_forward.1} parent=0
    _
  %s14 = ssub.s32 1, %s12
  %s15 = scalar_select 0, %s14, %s12
  $region1: #{cnn_forward.1} parent=0
    #allocation2 [shape = 'u8[8192]{0}', space=vmem, size = 0x2000, scoped, tag = 'output window, operand 0']
    #allocation3 [shape = 's32[2]{0}', space=sflag, size = 0x8, scoped, tag = 'scoped memory for cnn_forward.1']
    %16 = vsyncpa [#allocation3], 0
    %s17 = scalar_lea.sflag [#allocation3], 1
    %18 = vsyncpa %s17, 0
    loop: start=0, step=1, limit=4
    $region2: #{cnn_forward.1} parent=1 // loop_pre_header
      _
    $region3: #{cnn_forward.1} parent=1 // loop_header
      %s20 = sphi 0, %s24
      %p21 = scmp.ge.s32.totalorder %s20, 4
      %s30 = sphi 0, %s32
      %s33 = sphi 0, %s30
      %s34 = sphi 0, %s33
      %s50 = sphi 0, %s34
      %s54 = sphi 0, %s54
      %s56 = sphi 0, %s54
      %s57 = sphi 0, %s56
      %s71 = sphi 0, %s57
      %s75 = sphi 0, %s75
      %s77 = sphi 0, %s75
      %s78 = sphi 0, %s77
      %s92 = sphi 0, %s78
      %s96 = sphi 0, %s96
      %s98 = sphi 0, %s96
      %s99 = sphi 0, %s98
      %s113 = sphi 0, %s99
      %s117 = sphi 0, %s117
      %s119 = sphi 0, %s117
      %s120 = sphi 0, %s119
      %s134 = sphi 0, %s120
      %s138 = sphi 0, %s138
      %s140 = sphi 0, %s138
      %s141 = sphi 0, %s140
      %s155 = sphi 0, %s141
      %s159 = sphi 0, %s159
      %s161 = sphi 0, %s159
      %s162 = sphi 0, %s161
      %s176 = sphi 0, %s162
      %s180 = sphi 0, %s180
      %s182 = sphi 0, %s180
      %s183 = sphi 0, %s182
      %s197 = sphi 0, %s183
      %s201 = sphi 0, %s201
      %s203 = sphi 0, %s201
      %s204 = sphi 0, %s203
      %s218 = sphi 0, %s204
      %s222 = sphi 0, %s222
      %s224 = sphi 0, %s222
      %s225 = sphi 0, %s224
      %s239 = sphi 0, %s225
      %s243 = sphi 0, %s243
      %s245 = sphi 0, %s243
      %s246 = sphi 0, %s245
      %s260 = sphi 0, %s246
      %s266 = sphi 0, %s268
      %s269 = sphi 0, %s266
      %s270 = sphi 0, %s269
      %s286 = sphi 0, %s270
    $region4: #{cnn_forward.1} parent=1 // loop_header_branch
      %23 = sbr.rel (%p21) target = $region8
    $region5: #{cnn_forward.1} parent=1 // loop_body
      %s25 = ssub.s32 %s20, 1
      %s26 = ssub.s32 %s20, 2
      %s27 = sadd.s32 %s20, 1
      %s28 = ssub.s32 %s20, %s27
      %p29 = scmp.eq.s32.totalorder %s28, 0
      %s31 = sadd.s32 %s30, 1
      %s32 = scalar_select %p29, %s30, %s31
      %p35 = pneg %p29
      %p36 = scmp.eq.s32.totalorder %s20, 1
      %p37 = por %p35, %p36
      %p38 = scmp.ne.s32.totalorder %s30, %s33
      %p39 = scmp.eq.s32.totalorder %s20, 0
      %p40 = por %p38, %p39
      %p41 = scmp.ne.s32.totalorder %s30, %s33
      %p42 = scmp.eq.s32.totalorder %s25, 1
      %p43 = por %p41, %p42
      %p44 = scmp.ne.s32.totalorder %s33, %s34
      %p45 = scmp.eq.s32.totalorder %s25, 0
      %p46 = por %p44, %p45
      %p47 = scmp.ne.s32.totalorder %s33, %s34
      %p48 = scmp.eq.s32.totalorder %s26, 1
      %p49 = por %p47, %p48
      %p51 = scmp.ne.s32.totalorder %s34, %s50
      %p52 = scmp.eq.s32.totalorder %s26, 0
      %p53 = por %p51, %p52
      %s55 = sadd.s32 %s54, 1
      %p58 = scmp.eq.s32.totalorder %s20, 1
      %p59 = scmp.ne.s32.totalorder %s54, %s56
      %p60 = scmp.eq.s32.totalorder %s20, 0
      %p61 = por %p59, %p60
      %p62 = scmp.ne.s32.totalorder %s54, %s56
      %p63 = scmp.eq.s32.totalorder %s25, 1
      %p64 = por %p62, %p63
      %p65 = scmp.ne.s32.totalorder %s56, %s57
      %p66 = scmp.eq.s32.totalorder %s25, 0
      %p67 = por %p65, %p66
      %p68 = scmp.ne.s32.totalorder %s56, %s57
      %p69 = scmp.eq.s32.totalorder %s26, 1
      %p70 = por %p68, %p69
      %p72 = scmp.ne.s32.totalorder %s57, %s71
      %p73 = scmp.eq.s32.totalorder %s26, 0
      %p74 = por %p72, %p73
      %s76 = sadd.s32 %s75, 1
      %p79 = scmp.eq.s32.totalorder %s20, 1
      %p80 = scmp.ne.s32.totalorder %s75, %s77
      %p81 = scmp.eq.s32.totalorder %s20, 0
      %p82 = por %p80, %p81
      %p83 = scmp.ne.s32.totalorder %s75, %s77
      %p84 = scmp.eq.s32.totalorder %s25, 1
      %p85 = por %p83, %p84
      %p86 = scmp.ne.s32.totalorder %s77, %s78
      %p87 = scmp.eq.s32.totalorder %s25, 0
      %p88 = por %p86, %p87
      %p89 = scmp.ne.s32.totalorder %s77, %s78
      %p90 = scmp.eq.s32.totalorder %s26, 1
      %p91 = por %p89, %p90
      %p93 = scmp.ne.s32.totalorder %s78, %s92
      %p94 = scmp.eq.s32.totalorder %s26, 0
      %p95 = por %p93, %p94
      %s97 = sadd.s32 %s96, 1
      %p100 = scmp.eq.s32.totalorder %s20, 1
      %p101 = scmp.ne.s32.totalorder %s96, %s98
      %p102 = scmp.eq.s32.totalorder %s20, 0
      %p103 = por %p101, %p102
      %p104 = scmp.ne.s32.totalorder %s96, %s98
      %p105 = scmp.eq.s32.totalorder %s25, 1
      %p106 = por %p104, %p105
      %p107 = scmp.ne.s32.totalorder %s98, %s99
      %p108 = scmp.eq.s32.totalorder %s25, 0
      %p109 = por %p107, %p108
      %p110 = scmp.ne.s32.totalorder %s98, %s99
      %p111 = scmp.eq.s32.totalorder %s26, 1
      %p112 = por %p110, %p111
      %p114 = scmp.ne.s32.totalorder %s99, %s113
      %p115 = scmp.eq.s32.totalorder %s26, 0
      %p116 = por %p114, %p115
      %s118 = sadd.s32 %s117, 1
      %p121 = scmp.eq.s32.totalorder %s20, 1
      %p122 = scmp.ne.s32.totalorder %s117, %s119
      %p123 = scmp.eq.s32.totalorder %s20, 0
      %p124 = por %p122, %p123
      %p125 = scmp.ne.s32.totalorder %s117, %s119
      %p126 = scmp.eq.s32.totalorder %s25, 1
      %p127 = por %p125, %p126
      %p128 = scmp.ne.s32.totalorder %s119, %s120
      %p129 = scmp.eq.s32.totalorder %s25, 0
      %p130 = por %p128, %p129
      %p131 = scmp.ne.s32.totalorder %s119, %s120
      %p132 = scmp.eq.s32.totalorder %s26, 1
      %p133 = por %p131, %p132
      %p135 = scmp.ne.s32.totalorder %s120, %s134
      %p136 = scmp.eq.s32.totalorder %s26, 0
      %p137 = por %p135, %p136
      %s139 = sadd.s32 %s138, 1
      %p142 = scmp.eq.s32.totalorder %s20, 1
      %p143 = scmp.ne.s32.totalorder %s138, %s140
      %p144 = scmp.eq.s32.totalorder %s20, 0
      %p145 = por %p143, %p144
      %p146 = scmp.ne.s32.totalorder %s138, %s140
      %p147 = scmp.eq.s32.totalorder %s25, 1
      %p148 = por %p146, %p147
      %p149 = scmp.ne.s32.totalorder %s140, %s141
      %p150 = scmp.eq.s32.totalorder %s25, 0
      %p151 = por %p149, %p150
      %p152 = scmp.ne.s32.totalorder %s140, %s141
      %p153 = scmp.eq.s32.totalorder %s26, 1
      %p154 = por %p152, %p153
      %p156 = scmp.ne.s32.totalorder %s141, %s155
      %p157 = scmp.eq.s32.totalorder %s26, 0
      %p158 = por %p156, %p157
      %s160 = sadd.s32 %s159, 1
      %p163 = scmp.eq.s32.totalorder %s20, 1
      %p164 = scmp.ne.s32.totalorder %s159, %s161
      %p165 = scmp.eq.s32.totalorder %s20, 0
      %p166 = por %p164, %p165
      %p167 = scmp.ne.s32.totalorder %s159, %s161
      %p168 = scmp.eq.s32.totalorder %s25, 1
      %p169 = por %p167, %p168
      %p170 = scmp.ne.s32.totalorder %s161, %s162
      %p171 = scmp.eq.s32.totalorder %s25, 0
      %p172 = por %p170, %p171
      %p173 = scmp.ne.s32.totalorder %s161, %s162
      %p174 = scmp.eq.s32.totalorder %s26, 1
      %p175 = por %p173, %p174
      %p177 = scmp.ne.s32.totalorder %s162, %s176
      %p178 = scmp.eq.s32.totalorder %s26, 0
      %p179 = por %p177, %p178
      %s181 = sadd.s32 %s180, 1
      %p184 = scmp.eq.s32.totalorder %s20, 1
      %p185 = scmp.ne.s32.totalorder %s180, %s182
      %p186 = scmp.eq.s32.totalorder %s20, 0
      %p187 = por %p185, %p186
      %p188 = scmp.ne.s32.totalorder %s180, %s182
      %p189 = scmp.eq.s32.totalorder %s25, 1
      %p190 = por %p188, %p189
      %p191 = scmp.ne.s32.totalorder %s182, %s183
      %p192 = scmp.eq.s32.totalorder %s25, 0
      %p193 = por %p191, %p192
      %p194 = scmp.ne.s32.totalorder %s182, %s183
      %p195 = scmp.eq.s32.totalorder %s26, 1
      %p196 = por %p194, %p195
      %p198 = scmp.ne.s32.totalorder %s183, %s197
      %p199 = scmp.eq.s32.totalorder %s26, 0
      %p200 = por %p198, %p199
      %s202 = sadd.s32 %s201, 1
      %p205 = scmp.eq.s32.totalorder %s20, 1
      %p206 = scmp.ne.s32.totalorder %s201, %s203
      %p207 = scmp.eq.s32.totalorder %s20, 0
      %p208 = por %p206, %p207
      %p209 = scmp.ne.s32.totalorder %s201, %s203
      %p210 = scmp.eq.s32.totalorder %s25, 1
      %p211 = por %p209, %p210
      %p212 = scmp.ne.s32.totalorder %s203, %s204
      %p213 = scmp.eq.s32.totalorder %s25, 0
      %p214 = por %p212, %p213
      %p215 = scmp.ne.s32.totalorder %s203, %s204
      %p216 = scmp.eq.s32.totalorder %s26, 1
      %p217 = por %p215, %p216
      %p219 = scmp.ne.s32.totalorder %s204, %s218
      %p220 = scmp.eq.s32.totalorder %s26, 0
      %p221 = por %p219, %p220
      %s223 = sadd.s32 %s222, 1
      %p226 = scmp.eq.s32.totalorder %s20, 1
      %p227 = scmp.ne.s32.totalorder %s222, %s224
      %p228 = scmp.eq.s32.totalorder %s20, 0
      %p229 = por %p227, %p228
      %p230 = scmp.ne.s32.totalorder %s222, %s224
      %p231 = scmp.eq.s32.totalorder %s25, 1
      %p232 = por %p230, %p231
      %p233 = scmp.ne.s32.totalorder %s224, %s225
      %p234 = scmp.eq.s32.totalorder %s25, 0
      %p235 = por %p233, %p234
      %p236 = scmp.ne.s32.totalorder %s224, %s225
      %p237 = scmp.eq.s32.totalorder %s26, 1
      %p238 = por %p236, %p237
      %p240 = scmp.ne.s32.totalorder %s225, %s239
      %p241 = scmp.eq.s32.totalorder %s26, 0
      %p242 = por %p240, %p241
      %s244 = sadd.s32 %s243, 1
      %p247 = scmp.eq.s32.totalorder %s20, 1
      %p248 = scmp.ne.s32.totalorder %s243, %s245
      %p249 = scmp.eq.s32.totalorder %s20, 0
      %p250 = por %p248, %p249
      %p251 = scmp.ne.s32.totalorder %s243, %s245
      %p252 = scmp.eq.s32.totalorder %s25, 1
      %p253 = por %p251, %p252
      %p254 = scmp.ne.s32.totalorder %s245, %s246
      %p255 = scmp.eq.s32.totalorder %s25, 0
      %p256 = por %p254, %p255
      %p257 = scmp.ne.s32.totalorder %s245, %s246
      %p258 = scmp.eq.s32.totalorder %s26, 1
      %p259 = por %p257, %p258
      %p261 = scmp.ne.s32.totalorder %s246, %s260
      %p262 = scmp.eq.s32.totalorder %s26, 0
      %p263 = por %p261, %p262
      %s264 = ssub.s32 %s20, %s27
      %p265 = scmp.eq.s32.totalorder %s264, 0
      %s267 = sadd.s32 %s266, 1
      %s268 = scalar_select %p265, %s266, %s267
      %p271 = pneg %p265
      %p272 = scmp.eq.s32.totalorder %s20, 1
      %p273 = por %p271, %p272
      %p274 = scmp.ne.s32.totalorder %s266, %s269
      %p275 = scmp.eq.s32.totalorder %s20, 0
      %p276 = por %p274, %p275
      %p277 = scmp.ne.s32.totalorder %s266, %s269
      %p278 = scmp.eq.s32.totalorder %s25, 1
      %p279 = por %p277, %p278
      %p280 = scmp.ne.s32.totalorder %s269, %s270
      %p281 = scmp.eq.s32.totalorder %s25, 0
      %p282 = por %p280, %p281
      %p283 = scmp.ne.s32.totalorder %s269, %s270
      %p284 = scmp.eq.s32.totalorder %s26, 1
      %p285 = por %p283, %p284
      %p287 = scmp.ne.s32.totalorder %s270, %s286
      %p288 = scmp.eq.s32.totalorder %s26, 0
      %p289 = por %p287, %p288
      %p290 = scmp.le.s32.totalorder 1, %s20
      %p291 = scmp.lt.s32.totalorder %s20, 3
      %p292 = pnand %p290, %p291
      %p293 = pneg %p292
      // Predicated region
      $region9: #{cnn_forward.1} parent=5 // pred_check
        _
      $region10: #{cnn_forward.1} parent=5 // pred_check_branch
        %295 = sbr.rel (%p292) target = $region12
      $region11: #{cnn_forward.1} parent=5 // pred_region
        %s296 = ssub.s32 %s20, 1
        // Predicated region
        $region13: #{cnn_forward.1} parent=11 // pred_check
          %p297 = pneg %p67
        $region14: #{cnn_forward.1} parent=11 // pred_check_branch
          %299 = sbr.rel (%p297) target = $region16
        $region15: #{cnn_forward.1} parent=11 // pred_region
          _
        $region16: #{cnn_forward.1} parent=11 // pred_fallthru
          _
        // Predicated region
        $region17: #{cnn_forward.1} parent=11 // pred_check
          %p300 = pneg %p88
        $region18: #{cnn_forward.1} parent=11 // pred_check_branch
          %302 = sbr.rel (%p300) target = $region20
        $region19: #{cnn_forward.1} parent=11 // pred_region
          _
        $region20: #{cnn_forward.1} parent=11 // pred_fallthru
          _
        // Predicated region
        $region21: #{cnn_forward.1} parent=11 // pred_check
          %p303 = pneg %p109
        $region22: #{cnn_forward.1} parent=11 // pred_check_branch
          %305 = sbr.rel (%p303) target = $region24
        $region23: #{cnn_forward.1} parent=11 // pred_region
          _
        $region24: #{cnn_forward.1} parent=11 // pred_fallthru
          _
        // Predicated region
        $region25: #{cnn_forward.1} parent=11 // pred_check
          %p306 = pneg %p130
        $region26: #{cnn_forward.1} parent=11 // pred_check_branch
          %308 = sbr.rel (%p306) target = $region28
        $region27: #{cnn_forward.1} parent=11 // pred_region
          _
        $region28: #{cnn_forward.1} parent=11 // pred_fallthru
          _
        // Predicated region
        $region29: #{cnn_forward.1} parent=11 // pred_check
          %p309 = pneg %p151
        $region30: #{cnn_forward.1} parent=11 // pred_check_branch
          %311 = sbr.rel (%p309) target = $region32
        $region31: #{cnn_forward.1} parent=11 // pred_region
          _
        $region32: #{cnn_forward.1} parent=11 // pred_fallthru
          _
        // Predicated region
        $region33: #{cnn_forward.1} parent=11 // pred_check
          %p312 = pneg %p172
        $region34: #{cnn_forward.1} parent=11 // pred_check_branch
          %314 = sbr.rel (%p312) target = $region36
        $region35: #{cnn_forward.1} parent=11 // pred_region
          _
        $region36: #{cnn_forward.1} parent=11 // pred_fallthru
          _
        // Predicated region
        $region37: #{cnn_forward.1} parent=11 // pred_check
          %p315 = pneg %p193
        $region38: #{cnn_forward.1} parent=11 // pred_check_branch
          %317 = sbr.rel (%p315) target = $region40
        $region39: #{cnn_forward.1} parent=11 // pred_region
          _
        $region40: #{cnn_forward.1} parent=11 // pred_fallthru
          _
        // Predicated region
        $region41: #{cnn_forward.1} parent=11 // pred_check
          %p318 = pneg %p214
        $region42: #{cnn_forward.1} parent=11 // pred_check_branch
          %320 = sbr.rel (%p318) target = $region44
        $region43: #{cnn_forward.1} parent=11 // pred_region
          _
        $region44: #{cnn_forward.1} parent=11 // pred_fallthru
          _
        // Predicated region
        $region45: #{cnn_forward.1} parent=11 // pred_check
          %p321 = pneg %p235
        $region46: #{cnn_forward.1} parent=11 // pred_check_branch
          %323 = sbr.rel (%p321) target = $region48
        $region47: #{cnn_forward.1} parent=11 // pred_region
          _
        $region48: #{cnn_forward.1} parent=11 // pred_fallthru
          _
        // Predicated region
        $region49: #{cnn_forward.1} parent=11 // pred_check
          %p324 = pneg %p256
        $region50: #{cnn_forward.1} parent=11 // pred_check_branch
          %326 = sbr.rel (%p324) target = $region52
        $region51: #{cnn_forward.1} parent=11 // pred_region
          _
        $region52: #{cnn_forward.1} parent=11 // pred_fallthru
          _
      $region12: #{cnn_forward.1} parent=5 // pred_fallthru
        _
      %p327 = scmp.lt.s32.totalorder %s20, 2
      // Predicated region
      $region53: #{cnn_forward.1} parent=5 // pred_check
        %p328 = pneg %p327
      $region54: #{cnn_forward.1} parent=5 // pred_check_branch
        %330 = sbr.rel (%p328) target = $region56
      $region55: #{cnn_forward.1} parent=5 // pred_region
        // Predicated region
        $region57: #{cnn_forward.1} parent=55 // pred_check
          %p331 = pneg %p40
        $region58: #{cnn_forward.1} parent=55 // pred_check_branch
          %333 = sbr.rel (%p331) target = $region60
        $region59: #{cnn_forward.1} parent=55 // pred_region
          %p334 = scmp.lt.s32.totalorder %s20, 1
          %s335 = scalar_select %p334, %s20, 1
          %s336 = smul.addr %s335, 140
          %s337 = smul.addr %s336, 8
          %s338 = scalar_lea.vmem %s0, %s337
        $region60: #{cnn_forward.1} parent=55 // pred_fallthru
          _
      $region56: #{cnn_forward.1} parent=5 // pred_fallthru
        _
      %p339 = scmp.le.s32.totalorder 1, %s20
      %p340 = scmp.lt.s32.totalorder %s20, 3
      %p341 = pnand %p339, %p340
      %p342 = pneg %p341
      // Predicated region
      $region61: #{cnn_forward.1} parent=5 // pred_check
        _
      $region62: #{cnn_forward.1} parent=5 // pred_check_branch
        %344 = sbr.rel (%p341) target = $region64
      $region63: #{cnn_forward.1} parent=5 // pred_region
        %s345 = ssub.s32 %s20, 1
        %p346 = scmp.lt.s32.totalorder %s25, 1
        %s347 = scalar_select %p346, %s25, 1
        %s348 = smul.addr %s347, 140
        %s349 = smul.addr %s348, 8
        %s350 = scalar_lea.vmem %s0, %s349
        %p351 = pneg %p46
        %p352 = pneg %p43
        %p353 = pneg %p67
        %p354 = pneg %p64
        %p355 = pneg %p88
        %p356 = pneg %p85
        %p357 = pneg %p109
        %p358 = pneg %p106
        %p359 = pneg %p130
        %p360 = pneg %p127
        %p361 = pneg %p151
        %p362 = pneg %p148
        %p363 = pneg %p172
        %p364 = pneg %p169
        %p365 = pneg %p193
        %p366 = pneg %p190
        %p367 = pneg %p214
        %p368 = pneg %p211
        %p369 = pneg %p235
        %p370 = pneg %p232
        %p371 = pneg %p256
        %p372 = pneg %p253
        %p373 = pneg %p282
        %p374 = pneg %p279
        %s375 = sand.u32 %s269, 1
        %s376 = scalar_lea.sflag [#allocation3], %s375
        %s377 = sand.u32 %s269, 1
        %s378 = smul.addr %s377, 8
        %s379 = scalar_lea.vmem [#allocation2], %s378
        %p380 = scmp.lt.s32.totalorder %s25, 1
        %s381 = scalar_select %p380, %s25, 1
        %s382 = smul.addr %s381, 140
        %s383 = smul.addr %s382, 8
        %s384 = scalar_lea.vmem %s0, %s383
        %v385 = vld [vmem:[%s384] sm:$0xff]
        %v386 = vld [vmem:[%s384 + $0x8] sm:$0xff]
        %v387 = vld [vmem:[%s384 + $0x10] sm:$0xff]
        %v388 = vld [vmem:[%s384 + $0x18] sm:$0xff]
        %v389 = vld [vmem:[%s384 + $0x20] sm:$0xff]
        %v390 = vld [vmem:[%s384 + $0x28] sm:$0xff]
        %v391 = vld [vmem:[%s384 + $0x30] sm:$0xff]
        %v392 = vld [vmem:[%s384 + $0x38] sm:$0xff]
        %v393 = vld [vmem:[%s384 + $0x40] sm:$0xff]
        %v394 = vld [vmem:[%s384 + $0x48] sm:$0xff]
        %v395 = vld [vmem:[%s384 + $0x50] sm:$0xff]
        %v396 = vld [vmem:[%s384 + $0x58] sm:$0xff]
        %v397 = vld [vmem:[%s384 + $0x60] sm:$0xff]
        %v398 = vld [vmem:[%s384 + $0x68] sm:$0xff]
        %v399 = vld [vmem:[%s384 + $0x70] sm:$0xff]
        %v400 = vld [vmem:[%s384 + $0x78] sm:$0xff]
        %v401 = vld [vmem:[%s384 + $0x80] sm:$0xff]
        %v402 = vld [vmem:[%s384 + $0x88] sm:$0xff]
        %v403 = vld [vmem:[%s384 + $0x90] sm:$0xff]
        %v404 = vld [vmem:[%s384 + $0x98] sm:$0xff]
        %v405 = vld [vmem:[%s384 + $0xa0] sm:$0xff]
        %v406 = vld [vmem:[%s384 + $0xa8] sm:$0xff]
        %v407 = vld [vmem:[%s384 + $0xb0] sm:$0xff]
        %v408 = vld [vmem:[%s384 + $0xb8] sm:$0xff]
        %v409 = vld [vmem:[%s384 + $0xc0] sm:$0xff]
        %v410 = vld [vmem:[%s384 + $0xc8] sm:$0xff]
        %v411 = vld [vmem:[%s384 + $0xd0] sm:$0xff]
        %v412 = vld [vmem:[%s384 + $0xd8] sm:$0xff]
        %v413 = vld [vmem:[%s384 + $0xe0] sm:$0xff]
        %v414 = vld [vmem:[%s384 + $0xe8] sm:$0xff]
        %v415 = vld [vmem:[%s384 + $0xf0] sm:$0xff]
        %v416 = vld [vmem:[%s384 + $0xf8] sm:$0xff]
        %v417 = vld [vmem:[%s384 + $0x100] sm:$0xff]
        %v418 = vld [vmem:[%s384 + $0x108] sm:$0xff]
        %v419 = vld [vmem:[%s384 + $0x110] sm:$0xff]
        %v420 = vld [vmem:[%s384 + $0x118] sm:$0xff]
        %v421 = vld [vmem:[%s384 + $0x120] sm:$0xff]
        %v422 = vld [vmem:[%s384 + $0x128] sm:$0xff]
        %v423 = vld [vmem:[%s384 + $0x130] sm:$0xff]
        %v424 = vld [vmem:[%s384 + $0x138] sm:$0xff]
        %v425 = vld [vmem:[%s384 + $0x140] sm:$0xff]
        %v426 = vld [vmem:[%s384 + $0x148] sm:$0xff]
        %v427 = vld [vmem:[%s384 + $0x150] sm:$0xff]
        %v428 = vld [vmem:[%s384 + $0x158] sm:$0xff]
        %v429 = vld [vmem:[%s384 + $0x160] sm:$0xff]
        %v430 = vld [vmem:[%s384 + $0x168] sm:$0xff]
        %v431 = vld [vmem:[%s384 + $0x170] sm:$0xff]
        %v432 = vld [vmem:[%s384 + $0x178] sm:$0xff]
        %v433 = vld [vmem:[%s384 + $0x180] sm:$0xff]
        %v434 = vld [vmem:[%s384 + $0x188] sm:$0xff]
        %v435 = vld [vmem:[%s384 + $0x190] sm:$0xff]
        %v436 = vld [vmem:[%s384 + $0x198] sm:$0xff]
        %v437 = vld [vmem:[%s384 + $0x1a0] sm:$0xff]
        %v438 = vld [vmem:[%s384 + $0x1a8] sm:$0xff]
        %v439 = vld [vmem:[%s384 + $0x1b0] sm:$0xff]
        %v440 = vld [vmem:[%s384 + $0x1b8] sm:$0xff]
        %v441 = vld [vmem:[%s384 + $0x1c0] sm:$0xff]
        %v442 = vld [vmem:[%s384 + $0x1c8] sm:$0xff]
        %v443 = vld [vmem:[%s384 + $0x1d0] sm:$0xff]
        %v444 = vld [vmem:[%s384 + $0x1d8] sm:$0xff]
        %v445 = vld [vmem:[%s384 + $0x1e0] sm:$0xff]
        %v446 = vld [vmem:[%s384 + $0x1e8] sm:$0xff]
        %v447 = vld [vmem:[%s384 + $0x1f0] sm:$0xff]
        %v448 = vld [vmem:[%s384 + $0x1f8] sm:$0xff]
        %v449 = vld [vmem:[%s384 + $0x200] sm:$0xff]
        %v450 = vld [vmem:[%s384 + $0x208] sm:$0xff]
        %v451 = vld [vmem:[%s384 + $0x210] sm:$0xff]
        %v452 = vld [vmem:[%s384 + $0x218] sm:$0xff]
        %v453 = vld [vmem:[%s384 + $0x220] sm:$0xff]
        %v454 = vld [vmem:[%s384 + $0x228] sm:$0xff]
        %v455 = vld [vmem:[%s384 + $0x230] sm:$0xff]
        %v456 = vld [vmem:[%s384 + $0x238] sm:$0xff]
        %v457 = vld [vmem:[%s384 + $0x240] sm:$0xff]
        %v458 = vld [vmem:[%s384 + $0x248] sm:$0xff]
        %v459 = vld [vmem:[%s384 + $0x250] sm:$0xff]
        %v460 = vld [vmem:[%s384 + $0x258] sm:$0xff]
        %v461 = vld [vmem:[%s384 + $0x260] sm:$0xff]
        %v462 = vld [vmem:[%s384 + $0x268] sm:$0xff]
        %v463 = vld [vmem:[%s384 + $0x270] sm:$0xff]
        %v464 = vld [vmem:[%s384 + $0x278] sm:$0xff]
        %v465 = vld [vmem:[%s384 + $0x280] sm:$0xff]
        %v466 = vld [vmem:[%s384 + $0x288] sm:$0xff]
        %v467 = vld [vmem:[%s384 + $0x290] sm:$0xff]
        %v468 = vld [vmem:[%s384 + $0x298] sm:$0xff]
        %v469 = vld [vmem:[%s384 + $0x2a0] sm:$0xff]
        %v470 = vld [vmem:[%s384 + $0x2a8] sm:$0xff]
        %v471 = vld [vmem:[%s384 + $0x2b0] sm:$0xff]
        %v472 = vld [vmem:[%s384 + $0x2b8] sm:$0xff]
        %v473 = vld [vmem:[%s384 + $0x2c0] sm:$0xff]
        %v474 = vld [vmem:[%s384 + $0x2c8] sm:$0xff]
        %v475 = vld [vmem:[%s384 + $0x2d0] sm:$0xff]
        %v476 = vld [vmem:[%s384 + $0x2d8] sm:$0xff]
        %v477 = vld [vmem:[%s384 + $0x2e0] sm:$0xff]
        %v478 = vld [vmem:[%s384 + $0x2e8] sm:$0xff]
        %v479 = vld [vmem:[%s384 + $0x2f0] sm:$0xff]
        %v480 = vld [vmem:[%s384 + $0x2f8] sm:$0xff]
        %v481 = vld [vmem:[%s384 + $0x300] sm:$0xff]
        %v482 = vld [vmem:[%s384 + $0x308] sm:$0xff]
        %v483 = vld [vmem:[%s384 + $0x310] sm:$0xff]
        %v484 = vld [vmem:[%s384 + $0x318] sm:$0xff]
        %v485 = vld [vmem:[%s384 + $0x320] sm:$0xff]
        %v486 = vld [vmem:[%s384 + $0x328] sm:$0xff]
        %v487 = vld [vmem:[%s384 + $0x330] sm:$0xff]
        %v488 = vld [vmem:[%s384 + $0x338] sm:$0xff]
        %v489 = vld [vmem:[%s384 + $0x340] sm:$0xff]
        %v490 = vld [vmem:[%s384 + $0x348] sm:$0xff]
        %v491 = vld [vmem:[%s384 + $0x350] sm:$0xff]
        %v492 = vld [vmem:[%s384 + $0x358] sm:$0xff]
        %v493 = vld [vmem:[%s384 + $0x360] sm:$0xff]
        %v494 = vld [vmem:[%s384 + $0x368] sm:$0xff]
        %v495 = vld [vmem:[%s384 + $0x370] sm:$0xff]
        %v496 = vld [vmem:[%s384 + $0x378] sm:$0xff]
        %v497 = vld [vmem:[%s384 + $0x380] sm:$0xff]
        %v498 = vld [vmem:[%s384 + $0x388] sm:$0xff]
        %v499 = vld [vmem:[%s384 + $0x390] sm:$0xff]
        %v500 = vld [vmem:[%s384 + $0x398] sm:$0xff]
        %v501 = vld [vmem:[%s384 + $0x3a0] sm:$0xff]
        %v502 = vld [vmem:[%s384 + $0x3a8] sm:$0xff]
        %v503 = vld [vmem:[%s384 + $0x3b0] sm:$0xff]
        %v504 = vld [vmem:[%s384 + $0x3b8] sm:$0xff]
        %v505 = vld [vmem:[%s384 + $0x3c0] sm:$0xff]
        %v506 = vld [vmem:[%s384 + $0x3c8] sm:$0xff]
        %v507 = vld [vmem:[%s384 + $0x3d0] sm:$0xff]
        %v508 = vld [vmem:[%s384 + $0x3d8] sm:$0xff]
        %v509 = vld [vmem:[%s384 + $0x3e0] sm:$0xff]
        %v510 = vld [vmem:[%s384 + $0x3e8] sm:$0xff]
        %v511 = vld [vmem:[%s384 + $0x3f0] sm:$0xff]
        %v512 = vld [vmem:[%s384 + $0x3f8] sm:$0xff]
        %v513 = vld [vmem:[%s384 + $0x400] sm:$0xff]
        %v514 = vld [vmem:[%s384 + $0x408] sm:$0xff]
        %v515 = vld [vmem:[%s384 + $0x410] sm:$0xff]
        %v516 = vld [vmem:[%s384 + $0x418] sm:$0xff]
        %v517 = vld [vmem:[%s384 + $0x420] sm:$0xff]
        %v518 = vld [vmem:[%s384 + $0x428] sm:$0xff]
        %v519 = vld [vmem:[%s384 + $0x430] sm:$0xff]
        %v520 = vld [vmem:[%s384 + $0x438] sm:$0xff]
        %v521 = vld [vmem:[%s384 + $0x440] sm:$0xff]
        %v522 = vld [vmem:[%s384 + $0x448] sm:$0xff]
        %v523 = vld [vmem:[%s384 + $0x450] sm:$0xff]
        %v524 = vld [vmem:[%s384 + $0x458] sm:$0xff]
        %v525 = vld [vmem:[%s1] sm:$0xff]
        %v526 = vld [vmem:[%s1 + $0x8] sm:$0xff]
        %v527 = vld [vmem:[%s1 + $0x10] sm:$0xff]
        %v528 = vld [vmem:[%s1 + $0x18] sm:$0xff]
        %v529 = vld [vmem:[%s1 + $0x20] sm:$0xff]
        %v530 = vld [vmem:[%s1 + $0x28] sm:$0xff]
        %v531 = vld [vmem:[%s1 + $0x30] sm:$0xff]
        %v532 = vld [vmem:[%s1 + $0x38] sm:$0xff]
        %v533 = vld [vmem:[%s1 + $0x40] sm:$0xff]
        %v534 = vld [vmem:[%s1 + $0x48] sm:$0xff]
        %v535 = vld [vmem:[%s1 + $0x50] sm:$0xff]
        %v536 = vld [vmem:[%s1 + $0x58] sm:$0xff]
        %v537 = vld [vmem:[%s1 + $0x60] sm:$0xff]
        %v538 = vld [vmem:[%s1 + $0x68] sm:$0xff]
        %v539 = vld [vmem:[%s1 + $0x70] sm:$0xff]
        %v540 = vld [vmem:[%s1 + $0x78] sm:$0xff]
        %v541 = vld [vmem:[%s1 + $0x80] sm:$0xff]
        %v542 = vld [vmem:[%s1 + $0x88] sm:$0xff]
        %v543 = vld [vmem:[%s1 + $0x90] sm:$0xff]
        %v544 = vld [vmem:[%s1 + $0x98] sm:$0xff]
        %v545 = vld [vmem:[%s1 + $0xa0] sm:$0xff]
        %v546 = vld [vmem:[%s1 + $0xa8] sm:$0xff]
        %v547 = vld [vmem:[%s1 + $0xb0] sm:$0xff]
        %v548 = vld [vmem:[%s1 + $0xb8] sm:$0xff]
        %v549 = vld [vmem:[%s1 + $0xc0] sm:$0xff]
        %v550 = vld [vmem:[%s1 + $0xc8] sm:$0xff]
        %v551 = vld [vmem:[%s1 + $0xd0] sm:$0xff]
        %v552 = vld [vmem:[%s1 + $0xd8] sm:$0xff]
        %v553 = vld [vmem:[%s1 + $0xe0] sm:$0xff]
        %v554 = vld [vmem:[%s1 + $0xe8] sm:$0xff]
        %v555 = vld [vmem:[%s1 + $0xf0] sm:$0xff]
        %v556 = vld [vmem:[%s1 + $0xf8] sm:$0xff]
        %v557 = vld [vmem:[%s1 + $0x100] sm:$0xff]
        %v558 = vld [vmem:[%s1 + $0x108] sm:$0xff]
        %v559 = vld [vmem:[%s1 + $0x110] sm:$0xff]
        %v560 = vld [vmem:[%s1 + $0x118] sm:$0xff]
        %v561 = vld [vmem:[%s1 + $0x120] sm:$0xff]
        %v562 = vld [vmem:[%s1 + $0x128] sm:$0xff]
        %v563 = vld [vmem:[%s1 + $0x130] sm:$0xff]
        %v564 = vld [vmem:[%s1 + $0x138] sm:$0xff]
        %v565 = vld [vmem:[%s1 + $0x140] sm:$0xff]
        %v566 = vld [vmem:[%s1 + $0x148] sm:$0xff]
        %v567 = vld [vmem:[%s1 + $0x150] sm:$0xff]
        %v568 = vld [vmem:[%s1 + $0x158] sm:$0xff]
        %v569 = vld [vmem:[%s1 + $0x160] sm:$0xff]
        %v570 = vld [vmem:[%s1 + $0x168] sm:$0xff]
        %v571 = vld [vmem:[%s1 + $0x170] sm:$0xff]
        %v572 = vld [vmem:[%s1 + $0x178] sm:$0xff]
        %v573 = vld [vmem:[%s1 + $0x180] sm:$0xff]
        %v574 = vld [vmem:[%s1 + $0x188] sm:$0xff]
        %v575 = vld [vmem:[%s1 + $0x190] sm:$0xff]
        %v576 = vld [vmem:[%s1 + $0x198] sm:$0xff]
        %v577 = vld [vmem:[%s1 + $0x1a0] sm:$0xff]
        %v578 = vld [vmem:[%s1 + $0x1a8] sm:$0xff]
        %v579 = vld [vmem:[%s1 + $0x1b0] sm:$0xff]
        %v580 = vld [vmem:[%s1 + $0x1b8] sm:$0xff]
        %v581 = vld [vmem:[%s1 + $0x1c0] sm:$0xff]
        %v582 = vld [vmem:[%s1 + $0x1c8] sm:$0xff]
        %v583 = vld [vmem:[%s1 + $0x1d0] sm:$0xff]
        %v584 = vld [vmem:[%s1 + $0x1d8] sm:$0xff]
        %v585 = vld [vmem:[%s1 + $0x1e0] sm:$0xff]
        %v586 = vld [vmem:[%s1 + $0x1e8] sm:$0xff]
        %v587 = vld [vmem:[%s1 + $0x1f0] sm:$0xff]
        %v588 = vld [vmem:[%s1 + $0x1f8] sm:$0xff]
        %v589 = vld [vmem:[%s1 + $0x200] sm:$0xff]
        %v590 = vld [vmem:[%s1 + $0x208] sm:$0xff]
        %v591 = vld [vmem:[%s1 + $0x210] sm:$0xff]
        %v592 = vld [vmem:[%s1 + $0x218] sm:$0xff]
        %v593 = vld [vmem:[%s1 + $0x220] sm:$0xff]
        %v594 = vld [vmem:[%s1 + $0x228] sm:$0xff]
        %v595 = vld [vmem:[%s1 + $0x230] sm:$0xff]
        %v596 = vld [vmem:[%s1 + $0x238] sm:$0xff]
        %v597 = vld [vmem:[%s1 + $0x240] sm:$0xff]
        %v598 = vld [vmem:[%s1 + $0x248] sm:$0xff]
        %v599 = vld [vmem:[%s1 + $0x250] sm:$0xff]
        %v600 = vld [vmem:[%s1 + $0x258] sm:$0xff]
        %v601 = vld [vmem:[%s1 + $0x260] sm:$0xff]
        %v602 = vld [vmem:[%s1 + $0x268] sm:$0xff]
        %v603 = vld [vmem:[%s1 + $0x270] sm:$0xff]
        %v604 = vld [vmem:[%s1 + $0x278] sm:$0xff]
        %v605 = vld [vmem:[%s1 + $0x280] sm:$0xff]
        %v606 = vld [vmem:[%s1 + $0x288] sm:$0xff]
        %v607 = vld [vmem:[%s1 + $0x290] sm:$0xff]
        %v608 = vld [vmem:[%s1 + $0x298] sm:$0xff]
        %v609 = vld [vmem:[%s1 + $0x2a0] sm:$0xff]
        %v610 = vld [vmem:[%s1 + $0x2a8] sm:$0xff]
        %v611 = vld [vmem:[%s1 + $0x2b0] sm:$0xff]
        %v612 = vld [vmem:[%s1 + $0x2b8] sm:$0xff]
        %v613 = vld [vmem:[%s1 + $0x2c0] sm:$0xff]
        %v614 = vld [vmem:[%s1 + $0x2c8] sm:$0xff]
        %v615 = vld [vmem:[%s1 + $0x2d0] sm:$0xff]
        %v616 = vld [vmem:[%s1 + $0x2d8] sm:$0xff]
        %v617 = vld [vmem:[%s1 + $0x2e0] sm:$0xff]
        %v618 = vld [vmem:[%s1 + $0x2e8] sm:$0xff]
        %v619 = vld [vmem:[%s1 + $0x2f0] sm:$0xff]
        %v620 = vld [vmem:[%s1 + $0x2f8] sm:$0xff]
        %v621 = vld [vmem:[%s1 + $0x300] sm:$0xff]
        %v622 = vld [vmem:[%s1 + $0x308] sm:$0xff]
        %v623 = vld [vmem:[%s1 + $0x310] sm:$0xff]
        %v624 = vld [vmem:[%s1 + $0x318] sm:$0xff]
        %v625 = vld [vmem:[%s1 + $0x320] sm:$0xff]
        %v626 = vld [vmem:[%s1 + $0x328] sm:$0xff]
        %v627 = vld [vmem:[%s1 + $0x330] sm:$0xff]
        %v628 = vld [vmem:[%s1 + $0x338] sm:$0xff]
        %v629 = vld [vmem:[%s1 + $0x340] sm:$0xff]
        %v630 = vld [vmem:[%s1 + $0x348] sm:$0xff]
        %v631 = vld [vmem:[%s1 + $0x350] sm:$0xff]
        %v632 = vld [vmem:[%s1 + $0x358] sm:$0xff]
        %v633 = vld [vmem:[%s1 + $0x360] sm:$0xff]
        %v634 = vld [vmem:[%s1 + $0x368] sm:$0xff]
        %v635 = vld [vmem:[%s1 + $0x370] sm:$0xff]
        %v636 = vld [vmem:[%s1 + $0x378] sm:$0xff]
        %v637 = vld [vmem:[%s1 + $0x380] sm:$0xff]
        %v638 = vld [vmem:[%s1 + $0x388] sm:$0xff]
        %v639 = vld [vmem:[%s1 + $0x390] sm:$0xff]
        %v640 = vld [vmem:[%s1 + $0x398] sm:$0xff]
        %v641 = vld [vmem:[%s1 + $0x3a0] sm:$0xff]
        %v642 = vld [vmem:[%s1 + $0x3a8] sm:$0xff]
        %v643 = vld [vmem:[%s1 + $0x3b0] sm:$0xff]
        %v644 = vld [vmem:[%s1 + $0x3b8] sm:$0xff]
        %v645 = vld [vmem:[%s1 + $0x3c0] sm:$0xff]
        %v646 = vld [vmem:[%s1 + $0x3c8] sm:$0xff]
        %v647 = vld [vmem:[%s1 + $0x3d0] sm:$0xff]
        %v648 = vld [vmem:[%s1 + $0x3d8] sm:$0xff]
        %v649 = vld [vmem:[%s1 + $0x3e0] sm:$0xff]
        %v650 = vld [vmem:[%s1 + $0x3e8] sm:$0xff]
        %v651 = vld [vmem:[%s1 + $0x3f0] sm:$0xff]
        %v652 = vld [vmem:[%s1 + $0x3f8] sm:$0xff]
        %v653 = vld [vmem:[%s1 + $0x400] sm:$0xff]
        %v654 = vld [vmem:[%s1 + $0x408] sm:$0xff]
        %v655 = vld [vmem:[%s1 + $0x410] sm:$0xff]
        %v656 = vld [vmem:[%s1 + $0x418] sm:$0xff]
        %v657 = vld [vmem:[%s1 + $0x420] sm:$0xff]
        %v658 = vld [vmem:[%s1 + $0x428] sm:$0xff]
        %v659 = vld [vmem:[%s1 + $0x430] sm:$0xff]
        %v660 = vld [vmem:[%s1 + $0x438] sm:$0xff]
        %v661 = vld [vmem:[%s1 + $0x440] sm:$0xff]
        %v662 = vld [vmem:[%s1 + $0x448] sm:$0xff]
        %v663 = vld [vmem:[%s1 + $0x450] sm:$0xff]
        %v664 = vld [vmem:[%s1 + $0x458] sm:$0xff]
        %v665 = vld [vmem:[%s1 + $0x460] sm:$0xff]
        %v666 = vld [vmem:[%s1 + $0x468] sm:$0xff]
        %v667 = vld [vmem:[%s1 + $0x470] sm:$0xff]
        %v668 = vld [vmem:[%s1 + $0x478] sm:$0xff]
        %v669 = vld [vmem:[%s1 + $0x480] sm:$0xff]
        %v670 = vld [vmem:[%s1 + $0x488] sm:$0xff]
        %v671 = vld [vmem:[%s1 + $0x490] sm:$0xff]
        %v672 = vld [vmem:[%s1 + $0x498] sm:$0xff]
        %v673 = vld [vmem:[%s1 + $0x4a0] sm:$0xff]
        %v674 = vld [vmem:[%s1 + $0x4a8] sm:$0xff]
        %v675 = vld [vmem:[%s1 + $0x4b0] sm:$0xff]
        %v676 = vld [vmem:[%s1 + $0x4b8] sm:$0xff]
        %v677 = vld [vmem:[%s1 + $0x4c0] sm:$0xff]
        %v678 = vld [vmem:[%s1 + $0x4c8] sm:$0xff]
        %v679 = vld [vmem:[%s1 + $0x4d0] sm:$0xff]
        %v680 = vld [vmem:[%s1 + $0x4d8] sm:$0xff]
        %v681 = vld [vmem:[%s1 + $0x4e0] sm:$0xff]
        %v682 = vld [vmem:[%s1 + $0x4e8] sm:$0xff]
        %v683 = vld [vmem:[%s1 + $0x4f0] sm:$0xff]
        %v684 = vld [vmem:[%s1 + $0x4f8] sm:$0xff]
        %685 = vmatpush.msra.mxu0 %v555
        %686 = vmatpush.msra.mxu0 %v553
        %687 = vmatpush.msra.mxu0 %v551
        %688 = vmatpush.msra.mxu0 %v549
        %689 = vmatpush.msra.mxu0 %v547
        %690 = vmatpush.msra.mxu0 %v545
        %691 = vmatpush.msra.mxu0 %v543
        %692 = vmatpush.msra.mxu0 %v541
        %693 = vmatpush.msra.mxu0 %v539
        %694 = vmatpush.msra.mxu0 %v537
        %695 = vmatpush.msra.mxu0 %v535
        %696 = vmatpush.msra.mxu0 %v533
        %697 = vmatpush.msra.mxu0 %v531
        %698 = vmatpush.msra.mxu0 %v529
        %699 = vmatpush.msra.mxu0 %v527
        %700 = vmatpush.msra.mxu0 %v525
        %701 = vmatmul.f32.gmra.mxu0 %v385
        %v702 = vpop.f32.mrf.mxu0
        %v703 = vadd.f32 0.0, %v702
        %704 = vmatmul.f32.gmra.mxu0 %v390
        %v705 = vpop.f32.mrf.mxu0
        %v706 = vadd.f32 0.0, %v705
        %707 = vmatmul.f32.gmra.mxu0 %v395
        %v708 = vpop.f32.mrf.mxu0
        %v709 = vadd.f32 0.0, %v708
        %710 = vmatmul.f32.gmra.mxu0 %v400
        %v711 = vpop.f32.mrf.mxu0
        %v712 = vadd.f32 0.0, %v711
        %713 = vmatmul.f32.gmra.mxu0 %v405
        %v714 = vpop.f32.mrf.mxu0
        %v715 = vadd.f32 0.0, %v714
        %716 = vmatmul.f32.gmra.mxu0 %v410
        %v717 = vpop.f32.mrf.mxu0
        %v718 = vadd.f32 0.0, %v717
        %719 = vmatmul.f32.gmra.mxu0 %v415
        %v720 = vpop.f32.mrf.mxu0
        %v721 = vadd.f32 0.0, %v720
        %722 = vmatmul.f32.gmra.mxu0 %v420
        %v723 = vpop.f32.mrf.mxu0
        %v724 = vadd.f32 0.0, %v723
        %725 = vmatmul.f32.gmra.mxu0 %v425
        %v726 = vpop.f32.mrf.mxu0
        %v727 = vadd.f32 0.0, %v726
        %728 = vmatmul.f32.gmra.mxu0 %v430
        %v729 = vpop.f32.mrf.mxu0
        %v730 = vadd.f32 0.0, %v729
        %731 = vmatmul.f32.gmra.mxu0 %v435
        %v732 = vpop.f32.mrf.mxu0
        %v733 = vadd.f32 0.0, %v732
        %734 = vmatmul.f32.gmra.mxu0 %v440
        %v735 = vpop.f32.mrf.mxu0
        %v736 = vadd.f32 0.0, %v735
        %737 = vmatmul.f32.gmra.mxu0 %v445
        %v738 = vpop.f32.mrf.mxu0
        %v739 = vadd.f32 0.0, %v738
        %740 = vmatmul.f32.gmra.mxu0 %v450
        %v741 = vpop.f32.mrf.mxu0
        %v742 = vadd.f32 0.0, %v741
        %743 = vmatmul.f32.gmra.mxu0 %v455
        %v744 = vpop.f32.mrf.mxu0
        %v745 = vadd.f32 0.0, %v744
        %746 = vmatmul.f32.gmra.mxu0 %v460
        %v747 = vpop.f32.mrf.mxu0
        %v748 = vadd.f32 0.0, %v747
        %749 = vmatmul.f32.gmra.mxu0 %v465
        %v750 = vpop.f32.mrf.mxu0
        %v751 = vadd.f32 0.0, %v750
        %752 = vmatmul.f32.gmra.mxu0 %v470
        %v753 = vpop.f32.mrf.mxu0
        %v754 = vadd.f32 0.0, %v753
        %755 = vmatmul.f32.gmra.mxu0 %v475
        %v756 = vpop.f32.mrf.mxu0
        %v757 = vadd.f32 0.0, %v756
        %758 = vmatmul.f32.gmra.mxu0 %v480
        %v759 = vpop.f32.mrf.mxu0
        %v760 = vadd.f32 0.0, %v759
        %761 = vmatmul.f32.gmra.mxu0 %v485
        %v762 = vpop.f32.mrf.mxu0
        %v763 = vadd.f32 0.0, %v762
        %764 = vmatmul.f32.gmra.mxu0 %v490
        %v765 = vpop.f32.mrf.mxu0
        %v766 = vadd.f32 0.0, %v765
        %767 = vmatmul.f32.gmra.mxu0 %v495
        %v768 = vpop.f32.mrf.mxu0
        %v769 = vadd.f32 0.0, %v768
        %770 = vmatmul.f32.gmra.mxu0 %v500
        %v771 = vpop.f32.mrf.mxu0
        %v772 = vadd.f32 0.0, %v771
        %773 = vmatmul.f32.gmra.mxu0 %v505
        %v774 = vpop.f32.mrf.mxu0
        %v775 = vadd.f32 0.0, %v774
        %776 = vmatmul.f32.gmra.mxu0 %v510
        %v777 = vpop.f32.mrf.mxu0
        %v778 = vadd.f32 0.0, %v777
        %779 = vmatmul.f32.gmra.mxu0 %v515
        %v780 = vpop.f32.mrf.mxu0
        %v781 = vadd.f32 0.0, %v780
        %782 = vmatmul.f32.gmra.mxu0 %v520
        %v783 = vpop.f32.mrf.mxu0
        %v784 = vadd.f32 0.0, %v783
        %785 = vdwg.mxu0
        %786 = vmatpush.msra.mxu0 %v587
        %787 = vmatpush.msra.mxu0 %v585
        %788 = vmatpush.msra.mxu0 %v583
        %789 = vmatpush.msra.mxu0 %v581
        %790 = vmatpush.msra.mxu0 %v579
        %791 = vmatpush.msra.mxu0 %v577
        %792 = vmatpush.msra.mxu0 %v575
        %793 = vmatpush.msra.mxu0 %v573
        %794 = vmatpush.msra.mxu0 %v571
        %795 = vmatpush.msra.mxu0 %v569
        %796 = vmatpush.msra.mxu0 %v567
        %797 = vmatpush.msra.mxu0 %v565
        %798 = vmatpush.msra.mxu0 %v563
        %799 = vmatpush.msra.mxu0 %v561
        %800 = vmatpush.msra.mxu0 %v559
        %801 = vmatpush.msra.mxu0 %v557
        %802 = vmatmul.f32.gmra.mxu0 %v386
        %v803 = vpop.f32.mrf.mxu0
        %v804 = vadd.f32 %v703, %v803
        %805 = vmatmul.f32.gmra.mxu0 %v391
        %v806 = vpop.f32.mrf.mxu0
        %v807 = vadd.f32 %v706, %v806
        %808 = vmatmul.f32.gmra.mxu0 %v396
        %v809 = vpop.f32.mrf.mxu0
        %v810 = vadd.f32 %v709, %v809
        %811 = vmatmul.f32.gmra.mxu0 %v401
        %v812 = vpop.f32.mrf.mxu0
        %v813 = vadd.f32 %v712, %v812
        %814 = vmatmul.f32.gmra.mxu0 %v406
        %v815 = vpop.f32.mrf.mxu0
        %v816 = vadd.f32 %v715, %v815
        %817 = vmatmul.f32.gmra.mxu0 %v411
        %v818 = vpop.f32.mrf.mxu0
        %v819 = vadd.f32 %v718, %v818
        %820 = vmatmul.f32.gmra.mxu0 %v416
        %v821 = vpop.f32.mrf.mxu0
        %v822 = vadd.f32 %v721, %v821
        %823 = vmatmul.f32.gmra.mxu0 %v421
        %v824 = vpop.f32.mrf.mxu0
        %v825 = vadd.f32 %v724, %v824
        %826 = vmatmul.f32.gmra.mxu0 %v426
        %v827 = vpop.f32.mrf.mxu0
        %v828 = vadd.f32 %v727, %v827
        %829 = vmatmul.f32.gmra.mxu0 %v431
        %v830 = vpop.f32.mrf.mxu0
        %v831 = vadd.f32 %v730, %v830
        %832 = vmatmul.f32.gmra.mxu0 %v436
        %v833 = vpop.f32.mrf.mxu0
        %v834 = vadd.f32 %v733, %v833
        %835 = vmatmul.f32.gmra.mxu0 %v441
        %v836 = vpop.f32.mrf.mxu0
        %v837 = vadd.f32 %v736, %v836
        %838 = vmatmul.f32.gmra.mxu0 %v446
        %v839 = vpop.f32.mrf.mxu0
        %v840 = vadd.f32 %v739, %v839
        %841 = vmatmul.f32.gmra.mxu0 %v451
        %v842 = vpop.f32.mrf.mxu0
        %v843 = vadd.f32 %v742, %v842
        %844 = vmatmul.f32.gmra.mxu0 %v456
        %v845 = vpop.f32.mrf.mxu0
        %v846 = vadd.f32 %v745, %v845
        %847 = vmatmul.f32.gmra.mxu0 %v461
        %v848 = vpop.f32.mrf.mxu0
        %v849 = vadd.f32 %v748, %v848
        %850 = vmatmul.f32.gmra.mxu0 %v466
        %v851 = vpop.f32.mrf.mxu0
        %v852 = vadd.f32 %v751, %v851
        %853 = vmatmul.f32.gmra.mxu0 %v471
        %v854 = vpop.f32.mrf.mxu0
        %v855 = vadd.f32 %v754, %v854
        %856 = vmatmul.f32.gmra.mxu0 %v476
        %v857 = vpop.f32.mrf.mxu0
        %v858 = vadd.f32 %v757, %v857
        %859 = vmatmul.f32.gmra.mxu0 %v481
        %v860 = vpop.f32.mrf.mxu0
        %v861 = vadd.f32 %v760, %v860
        %862 = vmatmul.f32.gmra.mxu0 %v486
        %v863 = vpop.f32.mrf.mxu0
        %v864 = vadd.f32 %v763, %v863
        %865 = vmatmul.f32.gmra.mxu0 %v491
        %v866 = vpop.f32.mrf.mxu0
        %v867 = vadd.f32 %v766, %v866
        %868 = vmatmul.f32.gmra.mxu0 %v496
        %v869 = vpop.f32.mrf.mxu0
        %v870 = vadd.f32 %v769, %v869
        %871 = vmatmul.f32.gmra.mxu0 %v501
        %v872 = vpop.f32.mrf.mxu0
        %v873 = vadd.f32 %v772, %v872
        %874 = vmatmul.f32.gmra.mxu0 %v506
        %v875 = vpop.f32.mrf.mxu0
        %v876 = vadd.f32 %v775, %v875
        %877 = vmatmul.f32.gmra.mxu0 %v511
        %v878 = vpop.f32.mrf.mxu0
        %v879 = vadd.f32 %v778, %v878
        %880 = vmatmul.f32.gmra.mxu0 %v516
        %v881 = vpop.f32.mrf.mxu0
        %v882 = vadd.f32 %v781, %v881
        %883 = vmatmul.f32.gmra.mxu0 %v521
        %v884 = vpop.f32.mrf.mxu0
        %v885 = vadd.f32 %v784, %v884
        %886 = vdwg.mxu0
        %887 = vmatpush.msra.mxu0 %v619
        %888 = vmatpush.msra.mxu0 %v617
        %889 = vmatpush.msra.mxu0 %v615
        %890 = vmatpush.msra.mxu0 %v613
        %891 = vmatpush.msra.mxu0 %v611
        %892 = vmatpush.msra.mxu0 %v609
        %893 = vmatpush.msra.mxu0 %v607
        %894 = vmatpush.msra.mxu0 %v605
        %895 = vmatpush.msra.mxu0 %v603
        %896 = vmatpush.msra.mxu0 %v601
        %897 = vmatpush.msra.mxu0 %v599
        %898 = vmatpush.msra.mxu0 %v597
        %899 = vmatpush.msra.mxu0 %v595
        %900 = vmatpush.msra.mxu0 %v593
        %901 = vmatpush.msra.mxu0 %v591
        %902 = vmatpush.msra.mxu0 %v589
        %903 = vmatmul.f32.gmra.mxu0 %v387
        %v904 = vpop.f32.mrf.mxu0
        %v905 = vadd.f32 %v804, %v904
        %906 = vmatmul.f32.gmra.mxu0 %v392
        %v907 = vpop.f32.mrf.mxu0
        %v908 = vadd.f32 %v807, %v907
        %909 = vmatmul.f32.gmra.mxu0 %v397
        %v910 = vpop.f32.mrf.mxu0
        %v911 = vadd.f32 %v810, %v910
        %912 = vmatmul.f32.gmra.mxu0 %v402
        %v913 = vpop.f32.mrf.mxu0
        %v914 = vadd.f32 %v813, %v913
        %915 = vmatmul.f32.gmra.mxu0 %v407
        %v916 = vpop.f32.mrf.mxu0
        %v917 = vadd.f32 %v816, %v916
        %918 = vmatmul.f32.gmra.mxu0 %v412
        %v919 = vpop.f32.mrf.mxu0
        %v920 = vadd.f32 %v819, %v919
        %921 = vmatmul.f32.gmra.mxu0 %v417
        %v922 = vpop.f32.mrf.mxu0
        %v923 = vadd.f32 %v822, %v922
        %924 = vmatmul.f32.gmra.mxu0 %v422
        %v925 = vpop.f32.mrf.mxu0
        %v926 = vadd.f32 %v825, %v925
        %927 = vmatmul.f32.gmra.mxu0 %v427
        %v928 = vpop.f32.mrf.mxu0
        %v929 = vadd.f32 %v828, %v928
        %930 = vmatmul.f32.gmra.mxu0 %v432
        %v931 = vpop.f32.mrf.mxu0
        %v932 = vadd.f32 %v831, %v931
        %933 = vmatmul.f32.gmra.mxu0 %v437
        %v934 = vpop.f32.mrf.mxu0
        %v935 = vadd.f32 %v834, %v934
        %936 = vmatmul.f32.gmra.mxu0 %v442
        %v937 = vpop.f32.mrf.mxu0
        %v938 = vadd.f32 %v837, %v937
        %939 = vmatmul.f32.gmra.mxu0 %v447
        %v940 = vpop.f32.mrf.mxu0
        %v941 = vadd.f32 %v840, %v940
        %942 = vmatmul.f32.gmra.mxu0 %v452
        %v943 = vpop.f32.mrf.mxu0
        %v944 = vadd.f32 %v843, %v943
        %945 = vmatmul.f32.gmra.mxu0 %v457
        %v946 = vpop.f32.mrf.mxu0
        %v947 = vadd.f32 %v846, %v946
        %948 = vmatmul.f32.gmra.mxu0 %v462
        %v949 = vpop.f32.mrf.mxu0
        %v950 = vadd.f32 %v849, %v949
        %951 = vmatmul.f32.gmra.mxu0 %v467
        %v952 = vpop.f32.mrf.mxu0
        %v953 = vadd.f32 %v852, %v952
        %954 = vmatmul.f32.gmra.mxu0 %v472
        %v955 = vpop.f32.mrf.mxu0
        %v956 = vadd.f32 %v855, %v955
        %957 = vmatmul.f32.gmra.mxu0 %v477
        %v958 = vpop.f32.mrf.mxu0
        %v959 = vadd.f32 %v858, %v958
        %960 = vmatmul.f32.gmra.mxu0 %v482
        %v961 = vpop.f32.mrf.mxu0
        %v962 = vadd.f32 %v861, %v961
        %963 = vmatmul.f32.gmra.mxu0 %v487
        %v964 = vpop.f32.mrf.mxu0
        %v965 = vadd.f32 %v864, %v964
        %966 = vmatmul.f32.gmra.mxu0 %v492
        %v967 = vpop.f32.mrf.mxu0
        %v968 = vadd.f32 %v867, %v967
        %969 = vmatmul.f32.gmra.mxu0 %v497
        %v970 = vpop.f32.mrf.mxu0
        %v971 = vadd.f32 %v870, %v970
        %972 = vmatmul.f32.gmra.mxu0 %v502
        %v973 = vpop.f32.mrf.mxu0
        %v974 = vadd.f32 %v873, %v973
        %975 = vmatmul.f32.gmra.mxu0 %v507
        %v976 = vpop.f32.mrf.mxu0
        %v977 = vadd.f32 %v876, %v976
        %978 = vmatmul.f32.gmra.mxu0 %v512
        %v979 = vpop.f32.mrf.mxu0
        %v980 = vadd.f32 %v879, %v979
        %981 = vmatmul.f32.gmra.mxu0 %v517
        %v982 = vpop.f32.mrf.mxu0
        %v983 = vadd.f32 %v882, %v982
        %984 = vmatmul.f32.gmra.mxu0 %v522
        %v985 = vpop.f32.mrf.mxu0
        %v986 = vadd.f32 %v885, %v985
        %987 = vdwg.mxu0
        %988 = vmatpush.msra.mxu0 %v651
        %989 = vmatpush.msra.mxu0 %v649
        %990 = vmatpush.msra.mxu0 %v647
        %991 = vmatpush.msra.mxu0 %v645
        %992 = vmatpush.msra.mxu0 %v643
        %993 = vmatpush.msra.mxu0 %v641
        %994 = vmatpush.msra.mxu0 %v639
        %995 = vmatpush.msra.mxu0 %v637
        %996 = vmatpush.msra.mxu0 %v635
        %997 = vmatpush.msra.mxu0 %v633
        %998 = vmatpush.msra.mxu0 %v631
        %999 = vmatpush.msra.mxu0 %v629
        %1000 = vmatpush.msra.mxu0 %v627
        %1001 = vmatpush.msra.mxu0 %v625
        %1002 = vmatpush.msra.mxu0 %v623
        %1003 = vmatpush.msra.mxu0 %v621
        %1004 = vmatmul.f32.gmra.mxu0 %v388
        %v1005 = vpop.f32.mrf.mxu0
        %v1006 = vadd.f32 %v905, %v1005
        %1007 = vmatmul.f32.gmra.mxu0 %v393
        %v1008 = vpop.f32.mrf.mxu0
        %v1009 = vadd.f32 %v908, %v1008
        %1010 = vmatmul.f32.gmra.mxu0 %v398
        %v1011 = vpop.f32.mrf.mxu0
        %v1012 = vadd.f32 %v911, %v1011
        %1013 = vmatmul.f32.gmra.mxu0 %v403
        %v1014 = vpop.f32.mrf.mxu0
        %v1015 = vadd.f32 %v914, %v1014
        %1016 = vmatmul.f32.gmra.mxu0 %v408
        %v1017 = vpop.f32.mrf.mxu0
        %v1018 = vadd.f32 %v917, %v1017
        %1019 = vmatmul.f32.gmra.mxu0 %v413
        %v1020 = vpop.f32.mrf.mxu0
        %v1021 = vadd.f32 %v920, %v1020
        %1022 = vmatmul.f32.gmra.mxu0 %v418
        %v1023 = vpop.f32.mrf.mxu0
        %v1024 = vadd.f32 %v923, %v1023
        %1025 = vmatmul.f32.gmra.mxu0 %v423
        %v1026 = vpop.f32.mrf.mxu0
        %v1027 = vadd.f32 %v926, %v1026
        %1028 = vmatmul.f32.gmra.mxu0 %v428
        %v1029 = vpop.f32.mrf.mxu0
        %v1030 = vadd.f32 %v929, %v1029
        %1031 = vmatmul.f32.gmra.mxu0 %v433
        %v1032 = vpop.f32.mrf.mxu0
        %v1033 = vadd.f32 %v932, %v1032
        %1034 = vmatmul.f32.gmra.mxu0 %v438
        %v1035 = vpop.f32.mrf.mxu0
        %v1036 = vadd.f32 %v935, %v1035
        %1037 = vmatmul.f32.gmra.mxu0 %v443
        %v1038 = vpop.f32.mrf.mxu0
        %v1039 = vadd.f32 %v938, %v1038
        %1040 = vmatmul.f32.gmra.mxu0 %v448
        %v1041 = vpop.f32.mrf.mxu0
        %v1042 = vadd.f32 %v941, %v1041
        %1043 = vmatmul.f32.gmra.mxu0 %v453
        %v1044 = vpop.f32.mrf.mxu0
        %v1045 = vadd.f32 %v944, %v1044
        %1046 = vmatmul.f32.gmra.mxu0 %v458
        %v1047 = vpop.f32.mrf.mxu0
        %v1048 = vadd.f32 %v947, %v1047
        %1049 = vmatmul.f32.gmra.mxu0 %v463
        %v1050 = vpop.f32.mrf.mxu0
        %v1051 = vadd.f32 %v950, %v1050
        %1052 = vmatmul.f32.gmra.mxu0 %v468
        %v1053 = vpop.f32.mrf.mxu0
        %v1054 = vadd.f32 %v953, %v1053
        %1055 = vmatmul.f32.gmra.mxu0 %v473
        %v1056 = vpop.f32.mrf.mxu0
        %v1057 = vadd.f32 %v956, %v1056
        %1058 = vmatmul.f32.gmra.mxu0 %v478
        %v1059 = vpop.f32.mrf.mxu0
        %v1060 = vadd.f32 %v959, %v1059
        %1061 = vmatmul.f32.gmra.mxu0 %v483
        %v1062 = vpop.f32.mrf.mxu0
        %v1063 = vadd.f32 %v962, %v1062
        %1064 = vmatmul.f32.gmra.mxu0 %v488
        %v1065 = vpop.f32.mrf.mxu0
        %v1066 = vadd.f32 %v965, %v1065
        %1067 = vmatmul.f32.gmra.mxu0 %v493
        %v1068 = vpop.f32.mrf.mxu0
        %v1069 = vadd.f32 %v968, %v1068
        %1070 = vmatmul.f32.gmra.mxu0 %v498
        %v1071 = vpop.f32.mrf.mxu0
        %v1072 = vadd.f32 %v971, %v1071
        %1073 = vmatmul.f32.gmra.mxu0 %v503
        %v1074 = vpop.f32.mrf.mxu0
        %v1075 = vadd.f32 %v974, %v1074
        %1076 = vmatmul.f32.gmra.mxu0 %v508
        %v1077 = vpop.f32.mrf.mxu0
        %v1078 = vadd.f32 %v977, %v1077
        %1079 = vmatmul.f32.gmra.mxu0 %v513
        %v1080 = vpop.f32.mrf.mxu0
        %v1081 = vadd.f32 %v980, %v1080
        %1082 = vmatmul.f32.gmra.mxu0 %v518
        %v1083 = vpop.f32.mrf.mxu0
        %v1084 = vadd.f32 %v983, %v1083
        %1085 = vmatmul.f32.gmra.mxu0 %v523
        %v1086 = vpop.f32.mrf.mxu0
        %v1087 = vadd.f32 %v986, %v1086
        %1088 = vdwg.mxu0
        %1089 = vmatpush.msra.mxu0 %v683
        %1090 = vmatpush.msra.mxu0 %v681
        %1091 = vmatpush.msra.mxu0 %v679
        %1092 = vmatpush.msra.mxu0 %v677
        %1093 = vmatpush.msra.mxu0 %v675
        %1094 = vmatpush.msra.mxu0 %v673
        %1095 = vmatpush.msra.mxu0 %v671
        %1096 = vmatpush.msra.mxu0 %v669
        %1097 = vmatpush.msra.mxu0 %v667
        %1098 = vmatpush.msra.mxu0 %v665
        %1099 = vmatpush.msra.mxu0 %v663
        %1100 = vmatpush.msra.mxu0 %v661
        %1101 = vmatpush.msra.mxu0 %v659
        %1102 = vmatpush.msra.mxu0 %v657
        %1103 = vmatpush.msra.mxu0 %v655
        %1104 = vmatpush.msra.mxu0 %v653
        %1105 = vmatmul.f32.gmra.mxu0 %v389
        %v1106 = vpop.f32.mrf.mxu0
        %v1107 = vadd.f32 %v1006, %v1106
        %1108 = vmatmul.f32.gmra.mxu0 %v394
        %v1109 = vpop.f32.mrf.mxu0
        %v1110 = vadd.f32 %v1009, %v1109
        %1111 = vmatmul.f32.gmra.mxu0 %v399
        %v1112 = vpop.f32.mrf.mxu0
        %v1113 = vadd.f32 %v1012, %v1112
        %1114 = vmatmul.f32.gmra.mxu0 %v404
        %v1115 = vpop.f32.mrf.mxu0
        %v1116 = vadd.f32 %v1015, %v1115
        %1117 = vmatmul.f32.gmra.mxu0 %v409
        %v1118 = vpop.f32.mrf.mxu0
        %v1119 = vadd.f32 %v1018, %v1118
        %1120 = vmatmul.f32.gmra.mxu0 %v414
        %v1121 = vpop.f32.mrf.mxu0
        %v1122 = vadd.f32 %v1021, %v1121
        %1123 = vmatmul.f32.gmra.mxu0 %v419
        %v1124 = vpop.f32.mrf.mxu0
        %v1125 = vadd.f32 %v1024, %v1124
        %1126 = vmatmul.f32.gmra.mxu0 %v424
        %v1127 = vpop.f32.mrf.mxu0
        %v1128 = vadd.f32 %v1027, %v1127
        %1129 = vmatmul.f32.gmra.mxu0 %v429
        %v1130 = vpop.f32.mrf.mxu0
        %v1131 = vadd.f32 %v1030, %v1130
        %1132 = vmatmul.f32.gmra.mxu0 %v434
        %v1133 = vpop.f32.mrf.mxu0
        %v1134 = vadd.f32 %v1033, %v1133
        %1135 = vmatmul.f32.gmra.mxu0 %v439
        %v1136 = vpop.f32.mrf.mxu0
        %v1137 = vadd.f32 %v1036, %v1136
        %1138 = vmatmul.f32.gmra.mxu0 %v444
        %v1139 = vpop.f32.mrf.mxu0
        %v1140 = vadd.f32 %v1039, %v1139
        %1141 = vmatmul.f32.gmra.mxu0 %v449
        %v1142 = vpop.f32.mrf.mxu0
        %v1143 = vadd.f32 %v1042, %v1142
        %1144 = vmatmul.f32.gmra.mxu0 %v454
        %v1145 = vpop.f32.mrf.mxu0
        %v1146 = vadd.f32 %v1045, %v1145
        %1147 = vmatmul.f32.gmra.mxu0 %v459
        %v1148 = vpop.f32.mrf.mxu0
        %v1149 = vadd.f32 %v1048, %v1148
        %1150 = vmatmul.f32.gmra.mxu0 %v464
        %v1151 = vpop.f32.mrf.mxu0
        %v1152 = vadd.f32 %v1051, %v1151
        %1153 = vmatmul.f32.gmra.mxu0 %v469
        %v1154 = vpop.f32.mrf.mxu0
        %v1155 = vadd.f32 %v1054, %v1154
        %1156 = vmatmul.f32.gmra.mxu0 %v474
        %v1157 = vpop.f32.mrf.mxu0
        %v1158 = vadd.f32 %v1057, %v1157
        %1159 = vmatmul.f32.gmra.mxu0 %v479
        %v1160 = vpop.f32.mrf.mxu0
        %v1161 = vadd.f32 %v1060, %v1160
        %1162 = vmatmul.f32.gmra.mxu0 %v484
        %v1163 = vpop.f32.mrf.mxu0
        %v1164 = vadd.f32 %v1063, %v1163
        %1165 = vmatmul.f32.gmra.mxu0 %v489
        %v1166 = vpop.f32.mrf.mxu0
        %v1167 = vadd.f32 %v1066, %v1166
        %1168 = vmatmul.f32.gmra.mxu0 %v494
        %v1169 = vpop.f32.mrf.mxu0
        %v1170 = vadd.f32 %v1069, %v1169
        %1171 = vmatmul.f32.gmra.mxu0 %v499
        %v1172 = vpop.f32.mrf.mxu0
        %v1173 = vadd.f32 %v1072, %v1172
        %1174 = vmatmul.f32.gmra.mxu0 %v504
        %v1175 = vpop.f32.mrf.mxu0
        %v1176 = vadd.f32 %v1075, %v1175
        %1177 = vmatmul.f32.gmra.mxu0 %v509
        %v1178 = vpop.f32.mrf.mxu0
        %v1179 = vadd.f32 %v1078, %v1178
        %1180 = vmatmul.f32.gmra.mxu0 %v514
        %v1181 = vpop.f32.mrf.mxu0
        %v1182 = vadd.f32 %v1081, %v1181
        %1183 = vmatmul.f32.gmra.mxu0 %v519
        %v1184 = vpop.f32.mrf.mxu0
        %v1185 = vadd.f32 %v1084, %v1184
        %1186 = vmatmul.f32.gmra.mxu0 %v524
        %v1187 = vpop.f32.mrf.mxu0
        %v1188 = vadd.f32 %v1087, %v1187
        %1189 = vdwg.mxu0
        %1190 = vmatpush.msra.mxu0 %v556
        %1191 = vmatpush.msra.mxu0 %v554
        %1192 = vmatpush.msra.mxu0 %v552
        %1193 = vmatpush.msra.mxu0 %v550
        %1194 = vmatpush.msra.mxu0 %v548
        %1195 = vmatpush.msra.mxu0 %v546
        %1196 = vmatpush.msra.mxu0 %v544
        %1197 = vmatpush.msra.mxu0 %v542
        %1198 = vmatpush.msra.mxu0 %v540
        %1199 = vmatpush.msra.mxu0 %v538
        %1200 = vmatpush.msra.mxu0 %v536
        %1201 = vmatpush.msra.mxu0 %v534
        %1202 = vmatpush.msra.mxu0 %v532
        %1203 = vmatpush.msra.mxu0 %v530
        %1204 = vmatpush.msra.mxu0 %v528
        %1205 = vmatpush.msra.mxu0 %v526
        %1206 = vmatmul.f32.gmra.mxu0 %v385
        %v1207 = vpop.f32.mrf.mxu0
        %v1208 = vadd.f32 0.0, %v1207
        %1209 = vmatmul.f32.gmra.mxu0 %v390
        %v1210 = vpop.f32.mrf.mxu0
        %v1211 = vadd.f32 0.0, %v1210
        %1212 = vmatmul.f32.gmra.mxu0 %v395
        %v1213 = vpop.f32.mrf.mxu0
        %v1214 = vadd.f32 0.0, %v1213
        %1215 = vmatmul.f32.gmra.mxu0 %v400
        %v1216 = vpop.f32.mrf.mxu0
        %v1217 = vadd.f32 0.0, %v1216
        %1218 = vmatmul.f32.gmra.mxu0 %v405
        %v1219 = vpop.f32.mrf.mxu0
        %v1220 = vadd.f32 0.0, %v1219
        %1221 = vmatmul.f32.gmra.mxu0 %v410
        %v1222 = vpop.f32.mrf.mxu0
        %v1223 = vadd.f32 0.0, %v1222
        %1224 = vmatmul.f32.gmra.mxu0 %v415
        %v1225 = vpop.f32.mrf.mxu0
        %v1226 = vadd.f32 0.0, %v1225
        %1227 = vmatmul.f32.gmra.mxu0 %v420
        %v1228 = vpop.f32.mrf.mxu0
        %v1229 = vadd.f32 0.0, %v1228
        %1230 = vmatmul.f32.gmra.mxu0 %v425
        %v1231 = vpop.f32.mrf.mxu0
        %v1232 = vadd.f32 0.0, %v1231
        %1233 = vmatmul.f32.gmra.mxu0 %v430
        %v1234 = vpop.f32.mrf.mxu0
        %v1235 = vadd.f32 0.0, %v1234
        %1236 = vmatmul.f32.gmra.mxu0 %v435
        %v1237 = vpop.f32.mrf.mxu0
        %v1238 = vadd.f32 0.0, %v1237
        %1239 = vmatmul.f32.gmra.mxu0 %v440
        %v1240 = vpop.f32.mrf.mxu0
        %v1241 = vadd.f32 0.0, %v1240
        %1242 = vmatmul.f32.gmra.mxu0 %v445
        %v1243 = vpop.f32.mrf.mxu0
        %v1244 = vadd.f32 0.0, %v1243
        %1245 = vmatmul.f32.gmra.mxu0 %v450
        %v1246 = vpop.f32.mrf.mxu0
        %v1247 = vadd.f32 0.0, %v1246
        %1248 = vmatmul.f32.gmra.mxu0 %v455
        %v1249 = vpop.f32.mrf.mxu0
        %v1250 = vadd.f32 0.0, %v1249
        %1251 = vmatmul.f32.gmra.mxu0 %v460
        %v1252 = vpop.f32.mrf.mxu0
        %v1253 = vadd.f32 0.0, %v1252
        %1254 = vmatmul.f32.gmra.mxu0 %v465
        %v1255 = vpop.f32.mrf.mxu0
        %v1256 = vadd.f32 0.0, %v1255
        %1257 = vmatmul.f32.gmra.mxu0 %v470
        %v1258 = vpop.f32.mrf.mxu0
        %v1259 = vadd.f32 0.0, %v1258
        %1260 = vmatmul.f32.gmra.mxu0 %v475
        %v1261 = vpop.f32.mrf.mxu0
        %v1262 = vadd.f32 0.0, %v1261
        %1263 = vmatmul.f32.gmra.mxu0 %v480
        %v1264 = vpop.f32.mrf.mxu0
        %v1265 = vadd.f32 0.0, %v1264
        %1266 = vmatmul.f32.gmra.mxu0 %v485
        %v1267 = vpop.f32.mrf.mxu0
        %v1268 = vadd.f32 0.0, %v1267
        %1269 = vmatmul.f32.gmra.mxu0 %v490
        %v1270 = vpop.f32.mrf.mxu0
        %v1271 = vadd.f32 0.0, %v1270
        %1272 = vmatmul.f32.gmra.mxu0 %v495
        %v1273 = vpop.f32.mrf.mxu0
        %v1274 = vadd.f32 0.0, %v1273
        %1275 = vmatmul.f32.gmra.mxu0 %v500
        %v1276 = vpop.f32.mrf.mxu0
        %v1277 = vadd.f32 0.0, %v1276
        %1278 = vmatmul.f32.gmra.mxu0 %v505
        %v1279 = vpop.f32.mrf.mxu0
        %v1280 = vadd.f32 0.0, %v1279
        %1281 = vmatmul.f32.gmra.mxu0 %v510
        %v1282 = vpop.f32.mrf.mxu0
        %v1283 = vadd.f32 0.0, %v1282
        %1284 = vmatmul.f32.gmra.mxu0 %v515
        %v1285 = vpop.f32.mrf.mxu0
        %v1286 = vadd.f32 0.0, %v1285
        %1287 = vmatmul.f32.gmra.mxu0 %v520
        %v1288 = vpop.f32.mrf.mxu0
        %v1289 = vadd.f32 0.0, %v1288
        %1290 = vdwg.mxu0
        %1291 = vmatpush.msra.mxu0 %v588
        %1292 = vmatpush.msra.mxu0 %v586
        %1293 = vmatpush.msra.mxu0 %v584
        %1294 = vmatpush.msra.mxu0 %v582
        %1295 = vmatpush.msra.mxu0 %v580
        %1296 = vmatpush.msra.mxu0 %v578
        %1297 = vmatpush.msra.mxu0 %v576
        %1298 = vmatpush.msra.mxu0 %v574
        %1299 = vmatpush.msra.mxu0 %v572
        %1300 = vmatpush.msra.mxu0 %v570
        %1301 = vmatpush.msra.mxu0 %v568
        %1302 = vmatpush.msra.mxu0 %v566
        %1303 = vmatpush.msra.mxu0 %v564
        %1304 = vmatpush.msra.mxu0 %v562
        %1305 = vmatpush.msra.mxu0 %v560
        %1306 = vmatpush.msra.mxu0 %v558
        %1307 = vmatmul.f32.gmra.mxu0 %v386
        %v1308 = vpop.f32.mrf.mxu0
        %v1309 = vadd.f32 %v1208, %v1308
        %1310 = vmatmul.f32.gmra.mxu0 %v391
        %v1311 = vpop.f32.mrf.mxu0
        %v1312 = vadd.f32 %v1211, %v1311
        %1313 = vmatmul.f32.gmra.mxu0 %v396
        %v1314 = vpop.f32.mrf.mxu0
        %v1315 = vadd.f32 %v1214, %v1314
        %1316 = vmatmul.f32.gmra.mxu0 %v401
        %v1317 = vpop.f32.mrf.mxu0
        %v1318 = vadd.f32 %v1217, %v1317
        %1319 = vmatmul.f32.gmra.mxu0 %v406
        %v1320 = vpop.f32.mrf.mxu0
        %v1321 = vadd.f32 %v1220, %v1320
        %1322 = vmatmul.f32.gmra.mxu0 %v411
        %v1323 = vpop.f32.mrf.mxu0
        %v1324 = vadd.f32 %v1223, %v1323
        %1325 = vmatmul.f32.gmra.mxu0 %v416
        %v1326 = vpop.f32.mrf.mxu0
        %v1327 = vadd.f32 %v1226, %v1326
        %1328 = vmatmul.f32.gmra.mxu0 %v421
        %v1329 = vpop.f32.mrf.mxu0
        %v1330 = vadd.f32 %v1229, %v1329
        %1331 = vmatmul.f32.gmra.mxu0 %v426
        %v1332 = vpop.f32.mrf.mxu0
        %v1333 = vadd.f32 %v1232, %v1332
        %1334 = vmatmul.f32.gmra.mxu0 %v431
        %v1335 = vpop.f32.mrf.mxu0
        %v1336 = vadd.f32 %v1235, %v1335
        %1337 = vmatmul.f32.gmra.mxu0 %v436
        %v1338 = vpop.f32.mrf.mxu0
        %v1339 = vadd.f32 %v1238, %v1338
        %1340 = vmatmul.f32.gmra.mxu0 %v441
        %v1341 = vpop.f32.mrf.mxu0
        %v1342 = vadd.f32 %v1241, %v1341
        %1343 = vmatmul.f32.gmra.mxu0 %v446
        %v1344 = vpop.f32.mrf.mxu0
        %v1345 = vadd.f32 %v1244, %v1344
        %1346 = vmatmul.f32.gmra.mxu0 %v451
        %v1347 = vpop.f32.mrf.mxu0
        %v1348 = vadd.f32 %v1247, %v1347
        %1349 = vmatmul.f32.gmra.mxu0 %v456
        %v1350 = vpop.f32.mrf.mxu0
        %v1351 = vadd.f32 %v1250, %v1350
        %1352 = vmatmul.f32.gmra.mxu0 %v461
        %v1353 = vpop.f32.mrf.mxu0
        %v1354 = vadd.f32 %v1253, %v1353
        %1355 = vmatmul.f32.gmra.mxu0 %v466
        %v1356 = vpop.f32.mrf.mxu0
        %v1357 = vadd.f32 %v1256, %v1356
        %1358 = vmatmul.f32.gmra.mxu0 %v471
        %v1359 = vpop.f32.mrf.mxu0
        %v1360 = vadd.f32 %v1259, %v1359
        %1361 = vmatmul.f32.gmra.mxu0 %v476
        %v1362 = vpop.f32.mrf.mxu0
        %v1363 = vadd.f32 %v1262, %v1362
        %1364 = vmatmul.f32.gmra.mxu0 %v481
        %v1365 = vpop.f32.mrf.mxu0
        %v1366 = vadd.f32 %v1265, %v1365
        %1367 = vmatmul.f32.gmra.mxu0 %v486
        %v1368 = vpop.f32.mrf.mxu0
        %v1369 = vadd.f32 %v1268, %v1368
        %1370 = vmatmul.f32.gmra.mxu0 %v491
        %v1371 = vpop.f32.mrf.mxu0
        %v1372 = vadd.f32 %v1271, %v1371
        %1373 = vmatmul.f32.gmra.mxu0 %v496
        %v1374 = vpop.f32.mrf.mxu0
        %v1375 = vadd.f32 %v1274, %v1374
        %1376 = vmatmul.f32.gmra.mxu0 %v501
        %v1377 = vpop.f32.mrf.mxu0
        %v1378 = vadd.f32 %v1277, %v1377
        %1379 = vmatmul.f32.gmra.mxu0 %v506
        %v1380 = vpop.f32.mrf.mxu0
        %v1381 = vadd.f32 %v1280, %v1380
        %1382 = vmatmul.f32.gmra.mxu0 %v511
        %v1383 = vpop.f32.mrf.mxu0
        %v1384 = vadd.f32 %v1283, %v1383
        %1385 = vmatmul.f32.gmra.mxu0 %v516
        %v1386 = vpop.f32.mrf.mxu0
        %v1387 = vadd.f32 %v1286, %v1386
        %1388 = vmatmul.f32.gmra.mxu0 %v521
        %v1389 = vpop.f32.mrf.mxu0
        %v1390 = vadd.f32 %v1289, %v1389
        %1391 = vdwg.mxu0
        %1392 = vmatpush.msra.mxu0 %v620
        %1393 = vmatpush.msra.mxu0 %v618
        %1394 = vmatpush.msra.mxu0 %v616
        %1395 = vmatpush.msra.mxu0 %v614
        %1396 = vmatpush.msra.mxu0 %v612
        %1397 = vmatpush.msra.mxu0 %v610
        %1398 = vmatpush.msra.mxu0 %v608
        %1399 = vmatpush.msra.mxu0 %v606
        %1400 = vmatpush.msra.mxu0 %v604
        %1401 = vmatpush.msra.mxu0 %v602
        %1402 = vmatpush.msra.mxu0 %v600
        %1403 = vmatpush.msra.mxu0 %v598
        %1404 = vmatpush.msra.mxu0 %v596
        %1405 = vmatpush.msra.mxu0 %v594
        %1406 = vmatpush.msra.mxu0 %v592
        %1407 = vmatpush.msra.mxu0 %v590
        %1408 = vmatmul.f32.gmra.mxu0 %v387
        %v1409 = vpop.f32.mrf.mxu0
        %v1410 = vadd.f32 %v1309, %v1409
        %1411 = vmatmul.f32.gmra.mxu0 %v392
        %v1412 = vpop.f32.mrf.mxu0
        %v1413 = vadd.f32 %v1312, %v1412
        %1414 = vmatmul.f32.gmra.mxu0 %v397
        %v1415 = vpop.f32.mrf.mxu0
        %v1416 = vadd.f32 %v1315, %v1415
        %1417 = vmatmul.f32.gmra.mxu0 %v402
        %v1418 = vpop.f32.mrf.mxu0
        %v1419 = vadd.f32 %v1318, %v1418
        %1420 = vmatmul.f32.gmra.mxu0 %v407
        %v1421 = vpop.f32.mrf.mxu0
        %v1422 = vadd.f32 %v1321, %v1421
        %1423 = vmatmul.f32.gmra.mxu0 %v412
        %v1424 = vpop.f32.mrf.mxu0
        %v1425 = vadd.f32 %v1324, %v1424
        %1426 = vmatmul.f32.gmra.mxu0 %v417
        %v1427 = vpop.f32.mrf.mxu0
        %v1428 = vadd.f32 %v1327, %v1427
        %1429 = vmatmul.f32.gmra.mxu0 %v422
        %v1430 = vpop.f32.mrf.mxu0
        %v1431 = vadd.f32 %v1330, %v1430
        %1432 = vmatmul.f32.gmra.mxu0 %v427
        %v1433 = vpop.f32.mrf.mxu0
        %v1434 = vadd.f32 %v1333, %v1433
        %1435 = vmatmul.f32.gmra.mxu0 %v432
        %v1436 = vpop.f32.mrf.mxu0
        %v1437 = vadd.f32 %v1336, %v1436
        %1438 = vmatmul.f32.gmra.mxu0 %v437
        %v1439 = vpop.f32.mrf.mxu0
        %v1440 = vadd.f32 %v1339, %v1439
        %1441 = vmatmul.f32.gmra.mxu0 %v442
        %v1442 = vpop.f32.mrf.mxu0
        %v1443 = vadd.f32 %v1342, %v1442
        %1444 = vmatmul.f32.gmra.mxu0 %v447
        %v1445 = vpop.f32.mrf.mxu0
        %v1446 = vadd.f32 %v1345, %v1445
        %1447 = vmatmul.f32.gmra.mxu0 %v452
        %v1448 = vpop.f32.mrf.mxu0
        %v1449 = vadd.f32 %v1348, %v1448
        %1450 = vmatmul.f32.gmra.mxu0 %v457
        %v1451 = vpop.f32.mrf.mxu0
        %v1452 = vadd.f32 %v1351, %v1451
        %1453 = vmatmul.f32.gmra.mxu0 %v462
        %v1454 = vpop.f32.mrf.mxu0
        %v1455 = vadd.f32 %v1354, %v1454
        %1456 = vmatmul.f32.gmra.mxu0 %v467
        %v1457 = vpop.f32.mrf.mxu0
        %v1458 = vadd.f32 %v1357, %v1457
        %1459 = vmatmul.f32.gmra.mxu0 %v472
        %v1460 = vpop.f32.mrf.mxu0
        %v1461 = vadd.f32 %v1360, %v1460
        %1462 = vmatmul.f32.gmra.mxu0 %v477
        %v1463 = vpop.f32.mrf.mxu0
        %v1464 = vadd.f32 %v1363, %v1463
        %1465 = vmatmul.f32.gmra.mxu0 %v482
        %v1466 = vpop.f32.mrf.mxu0
        %v1467 = vadd.f32 %v1366, %v1466
        %1468 = vmatmul.f32.gmra.mxu0 %v487
        %v1469 = vpop.f32.mrf.mxu0
        %v1470 = vadd.f32 %v1369, %v1469
        %1471 = vmatmul.f32.gmra.mxu0 %v492
        %v1472 = vpop.f32.mrf.mxu0
        %v1473 = vadd.f32 %v1372, %v1472
        %1474 = vmatmul.f32.gmra.mxu0 %v497
        %v1475 = vpop.f32.mrf.mxu0
        %v1476 = vadd.f32 %v1375, %v1475
        %1477 = vmatmul.f32.gmra.mxu0 %v502
        %v1478 = vpop.f32.mrf.mxu0
        %v1479 = vadd.f32 %v1378, %v1478
        %1480 = vmatmul.f32.gmra.mxu0 %v507
        %v1481 = vpop.f32.mrf.mxu0
        %v1482 = vadd.f32 %v1381, %v1481
        %1483 = vmatmul.f32.gmra.mxu0 %v512
        %v1484 = vpop.f32.mrf.mxu0
        %v1485 = vadd.f32 %v1384, %v1484
        %1486 = vmatmul.f32.gmra.mxu0 %v517
        %v1487 = vpop.f32.mrf.mxu0
        %v1488 = vadd.f32 %v1387, %v1487
        %1489 = vmatmul.f32.gmra.mxu0 %v522
        %v1490 = vpop.f32.mrf.mxu0
        %v1491 = vadd.f32 %v1390, %v1490
        %1492 = vdwg.mxu0
        %1493 = vmatpush.msra.mxu0 %v652
        %1494 = vmatpush.msra.mxu0 %v650
        %1495 = vmatpush.msra.mxu0 %v648
        %1496 = vmatpush.msra.mxu0 %v646
        %1497 = vmatpush.msra.mxu0 %v644
        %1498 = vmatpush.msra.mxu0 %v642
        %1499 = vmatpush.msra.mxu0 %v640
        %1500 = vmatpush.msra.mxu0 %v638
        %1501 = vmatpush.msra.mxu0 %v636
        %1502 = vmatpush.msra.mxu0 %v634
        %1503 = vmatpush.msra.mxu0 %v632
        %1504 = vmatpush.msra.mxu0 %v630
        %1505 = vmatpush.msra.mxu0 %v628
        %1506 = vmatpush.msra.mxu0 %v626
        %1507 = vmatpush.msra.mxu0 %v624
        %1508 = vmatpush.msra.mxu0 %v622
        %1509 = vmatmul.f32.gmra.mxu0 %v388
        %v1510 = vpop.f32.mrf.mxu0
        %v1511 = vadd.f32 %v1410, %v1510
        %1512 = vmatmul.f32.gmra.mxu0 %v393
        %v1513 = vpop.f32.mrf.mxu0
        %v1514 = vadd.f32 %v1413, %v1513
        %1515 = vmatmul.f32.gmra.mxu0 %v398
        %v1516 = vpop.f32.mrf.mxu0
        %v1517 = vadd.f32 %v1416, %v1516
        %1518 = vmatmul.f32.gmra.mxu0 %v403
        %v1519 = vpop.f32.mrf.mxu0
        %v1520 = vadd.f32 %v1419, %v1519
        %1521 = vmatmul.f32.gmra.mxu0 %v408
        %v1522 = vpop.f32.mrf.mxu0
        %v1523 = vadd.f32 %v1422, %v1522
        %1524 = vmatmul.f32.gmra.mxu0 %v413
        %v1525 = vpop.f32.mrf.mxu0
        %v1526 = vadd.f32 %v1425, %v1525
        %1527 = vmatmul.f32.gmra.mxu0 %v418
        %v1528 = vpop.f32.mrf.mxu0
        %v1529 = vadd.f32 %v1428, %v1528
        %1530 = vmatmul.f32.gmra.mxu0 %v423
        %v1531 = vpop.f32.mrf.mxu0
        %v1532 = vadd.f32 %v1431, %v1531
        %1533 = vmatmul.f32.gmra.mxu0 %v428
        %v1534 = vpop.f32.mrf.mxu0
        %v1535 = vadd.f32 %v1434, %v1534
        %1536 = vmatmul.f32.gmra.mxu0 %v433
        %v1537 = vpop.f32.mrf.mxu0
        %v1538 = vadd.f32 %v1437, %v1537
        %1539 = vmatmul.f32.gmra.mxu0 %v438
        %v1540 = vpop.f32.mrf.mxu0
        %v1541 = vadd.f32 %v1440, %v1540
        %1542 = vmatmul.f32.gmra.mxu0 %v443
        %v1543 = vpop.f32.mrf.mxu0
        %v1544 = vadd.f32 %v1443, %v1543
        %1545 = vmatmul.f32.gmra.mxu0 %v448
        %v1546 = vpop.f32.mrf.mxu0
        %v1547 = vadd.f32 %v1446, %v1546
        %1548 = vmatmul.f32.gmra.mxu0 %v453
        %v1549 = vpop.f32.mrf.mxu0
        %v1550 = vadd.f32 %v1449, %v1549
        %1551 = vmatmul.f32.gmra.mxu0 %v458
        %v1552 = vpop.f32.mrf.mxu0
        %v1553 = vadd.f32 %v1452, %v1552
        %1554 = vmatmul.f32.gmra.mxu0 %v463
        %v1555 = vpop.f32.mrf.mxu0
        %v1556 = vadd.f32 %v1455, %v1555
        %1557 = vmatmul.f32.gmra.mxu0 %v468
        %v1558 = vpop.f32.mrf.mxu0
        %v1559 = vadd.f32 %v1458, %v1558
        %1560 = vmatmul.f32.gmra.mxu0 %v473
        %v1561 = vpop.f32.mrf.mxu0
        %v1562 = vadd.f32 %v1461, %v1561
        %1563 = vmatmul.f32.gmra.mxu0 %v478
        %v1564 = vpop.f32.mrf.mxu0
        %v1565 = vadd.f32 %v1464, %v1564
        %1566 = vmatmul.f32.gmra.mxu0 %v483
        %v1567 = vpop.f32.mrf.mxu0
        %v1568 = vadd.f32 %v1467, %v1567
        %1569 = vmatmul.f32.gmra.mxu0 %v488
        %v1570 = vpop.f32.mrf.mxu0
        %v1571 = vadd.f32 %v1470, %v1570
        %1572 = vmatmul.f32.gmra.mxu0 %v493
        %v1573 = vpop.f32.mrf.mxu0
        %v1574 = vadd.f32 %v1473, %v1573
        %1575 = vmatmul.f32.gmra.mxu0 %v498
        %v1576 = vpop.f32.mrf.mxu0
        %v1577 = vadd.f32 %v1476, %v1576
        %1578 = vmatmul.f32.gmra.mxu0 %v503
        %v1579 = vpop.f32.mrf.mxu0
        %v1580 = vadd.f32 %v1479, %v1579
        %1581 = vmatmul.f32.gmra.mxu0 %v508
        %v1582 = vpop.f32.mrf.mxu0
        %v1583 = vadd.f32 %v1482, %v1582
        %1584 = vmatmul.f32.gmra.mxu0 %v513
        %v1585 = vpop.f32.mrf.mxu0
        %v1586 = vadd.f32 %v1485, %v1585
        %1587 = vmatmul.f32.gmra.mxu0 %v518
        %v1588 = vpop.f32.mrf.mxu0
        %v1589 = vadd.f32 %v1488, %v1588
        %1590 = vmatmul.f32.gmra.mxu0 %v523
        %v1591 = vpop.f32.mrf.mxu0
        %v1592 = vadd.f32 %v1491, %v1591
        %1593 = vdwg.mxu0
        %1594 = vmatpush.msra.mxu0 %v684
        %1595 = vmatpush.msra.mxu0 %v682
        %1596 = vmatpush.msra.mxu0 %v680
        %1597 = vmatpush.msra.mxu0 %v678
        %1598 = vmatpush.msra.mxu0 %v676
        %1599 = vmatpush.msra.mxu0 %v674
        %1600 = vmatpush.msra.mxu0 %v672
        %1601 = vmatpush.msra.mxu0 %v670
        %1602 = vmatpush.msra.mxu0 %v668
        %1603 = vmatpush.msra.mxu0 %v666
        %1604 = vmatpush.msra.mxu0 %v664
        %1605 = vmatpush.msra.mxu0 %v662
        %1606 = vmatpush.msra.mxu0 %v660
        %1607 = vmatpush.msra.mxu0 %v658
        %1608 = vmatpush.msra.mxu0 %v656
        %1609 = vmatpush.msra.mxu0 %v654
        %1610 = vmatmul.f32.gmra.mxu0 %v389
        %v1611 = vpop.f32.mrf.mxu0
        %v1612 = vadd.f32 %v1511, %v1611
        %1613 = vmatmul.f32.gmra.mxu0 %v394
        %v1614 = vpop.f32.mrf.mxu0
        %v1615 = vadd.f32 %v1514, %v1614
        %1616 = vmatmul.f32.gmra.mxu0 %v399
        %v1617 = vpop.f32.mrf.mxu0
        %v1618 = vadd.f32 %v1517, %v1617
        %1619 = vmatmul.f32.gmra.mxu0 %v404
        %v1620 = vpop.f32.mrf.mxu0
        %v1621 = vadd.f32 %v1520, %v1620
        %1622 = vmatmul.f32.gmra.mxu0 %v409
        %v1623 = vpop.f32.mrf.mxu0
        %v1624 = vadd.f32 %v1523, %v1623
        %1625 = vmatmul.f32.gmra.mxu0 %v414
        %v1626 = vpop.f32.mrf.mxu0
        %v1627 = vadd.f32 %v1526, %v1626
        %1628 = vmatmul.f32.gmra.mxu0 %v419
        %v1629 = vpop.f32.mrf.mxu0
        %v1630 = vadd.f32 %v1529, %v1629
        %1631 = vmatmul.f32.gmra.mxu0 %v424
        %v1632 = vpop.f32.mrf.mxu0
        %v1633 = vadd.f32 %v1532, %v1632
        %1634 = vmatmul.f32.gmra.mxu0 %v429
        %v1635 = vpop.f32.mrf.mxu0
        %v1636 = vadd.f32 %v1535, %v1635
        %1637 = vmatmul.f32.gmra.mxu0 %v434
        %v1638 = vpop.f32.mrf.mxu0
        %v1639 = vadd.f32 %v1538, %v1638
        %1640 = vmatmul.f32.gmra.mxu0 %v439
        %v1641 = vpop.f32.mrf.mxu0
        %v1642 = vadd.f32 %v1541, %v1641
        %1643 = vmatmul.f32.gmra.mxu0 %v444
        %v1644 = vpop.f32.mrf.mxu0
        %v1645 = vadd.f32 %v1544, %v1644
        %1646 = vmatmul.f32.gmra.mxu0 %v449
        %v1647 = vpop.f32.mrf.mxu0
        %v1648 = vadd.f32 %v1547, %v1647
        %1649 = vmatmul.f32.gmra.mxu0 %v454
        %v1650 = vpop.f32.mrf.mxu0
        %v1651 = vadd.f32 %v1550, %v1650
        %1652 = vmatmul.f32.gmra.mxu0 %v459
        %v1653 = vpop.f32.mrf.mxu0
        %v1654 = vadd.f32 %v1553, %v1653
        %1655 = vmatmul.f32.gmra.mxu0 %v464
        %v1656 = vpop.f32.mrf.mxu0
        %v1657 = vadd.f32 %v1556, %v1656
        %1658 = vmatmul.f32.gmra.mxu0 %v469
        %v1659 = vpop.f32.mrf.mxu0
        %v1660 = vadd.f32 %v1559, %v1659
        %1661 = vmatmul.f32.gmra.mxu0 %v474
        %v1662 = vpop.f32.mrf.mxu0
        %v1663 = vadd.f32 %v1562, %v1662
        %1664 = vmatmul.f32.gmra.mxu0 %v479
        %v1665 = vpop.f32.mrf.mxu0
        %v1666 = vadd.f32 %v1565, %v1665
        %1667 = vmatmul.f32.gmra.mxu0 %v484
        %v1668 = vpop.f32.mrf.mxu0
        %v1669 = vadd.f32 %v1568, %v1668
        %1670 = vmatmul.f32.gmra.mxu0 %v489
        %v1671 = vpop.f32.mrf.mxu0
        %v1672 = vadd.f32 %v1571, %v1671
        %1673 = vmatmul.f32.gmra.mxu0 %v494
        %v1674 = vpop.f32.mrf.mxu0
        %v1675 = vadd.f32 %v1574, %v1674
        %1676 = vmatmul.f32.gmra.mxu0 %v499
        %v1677 = vpop.f32.mrf.mxu0
        %v1678 = vadd.f32 %v1577, %v1677
        %1679 = vmatmul.f32.gmra.mxu0 %v504
        %v1680 = vpop.f32.mrf.mxu0
        %v1681 = vadd.f32 %v1580, %v1680
        %1682 = vmatmul.f32.gmra.mxu0 %v509
        %v1683 = vpop.f32.mrf.mxu0
        %v1684 = vadd.f32 %v1583, %v1683
        %1685 = vmatmul.f32.gmra.mxu0 %v514
        %v1686 = vpop.f32.mrf.mxu0
        %v1687 = vadd.f32 %v1586, %v1686
        %1688 = vmatmul.f32.gmra.mxu0 %v519
        %v1689 = vpop.f32.mrf.mxu0
        %v1690 = vadd.f32 %v1589, %v1689
        %1691 = vmatmul.f32.gmra.mxu0 %v524
        %v1692 = vpop.f32.mrf.mxu0
        %v1693 = vadd.f32 %v1592, %v1692
        %1694 = vdwg.mxu0
        %v1695 = vmax.f32 %v1107, %v1612
        %v1696 = vmax.f32 %v1110, %v1615
        %v1697 = vmax.f32 %v1113, %v1618
        %v1698 = vmax.f32 %v1116, %v1621
        %v1699 = vmax.f32 %v1119, %v1624
        %v1700 = vmax.f32 %v1122, %v1627
        %v1701 = vmax.f32 %v1125, %v1630
        %v1702 = vmax.f32 %v1128, %v1633
        %v1703 = vmax.f32 %v1131, %v1636
        %v1704 = vmax.f32 %v1134, %v1639
        %v1705 = vmax.f32 %v1137, %v1642
        %v1706 = vmax.f32 %v1140, %v1645
        %v1707 = vmax.f32 %v1143, %v1648
        %v1708 = vmax.f32 %v1146, %v1651
        %v1709 = vmax.f32 %v1149, %v1654
        %v1710 = vmax.f32 %v1152, %v1657
        %v1711 = vmax.f32 %v1155, %v1660
        %v1712 = vmax.f32 %v1158, %v1663
        %v1713 = vmax.f32 %v1161, %v1666
        %v1714 = vmax.f32 %v1164, %v1669
        %v1715 = vmax.f32 %v1167, %v1672
        %v1716 = vmax.f32 %v1170, %v1675
        %v1717 = vmax.f32 %v1173, %v1678
        %v1718 = vmax.f32 %v1176, %v1681
        %v1719 = vmax.f32 %v1179, %v1684
        %v1720 = vmax.f32 %v1182, %v1687
        %v1721 = vmax.f32 %v1185, %v1690
        %v1722 = vmax.f32 %v1188, %v1693
        %v1723 = vld [vmem:[%s2] sm:$0x1]
        %v1724 = vmax.f32 %v1695, %v1702
        %v1725 = vmax.f32 %v1696, %v1703
        %v1726 = vmax.f32 %v1697, %v1704
        %v1727 = vmax.f32 %v1698, %v1705
        %v1728 = vmax.f32 %v1699, %v1706
        %v1729 = vmax.f32 %v1700, %v1707
        %v1730 = vmax.f32 %v1701, %v1708
        %v1732 = vperm.slane %v1723, 0
        %v1734 = vadd.f32 %v1724, %v1732
        %v1735 = vadd.f32 %v1725, %v1732
        %v1736 = vadd.f32 %v1726, %v1732
        %v1737 = vadd.f32 %v1727, %v1732
        %v1738 = vadd.f32 %v1728, %v1732
        %v1739 = vadd.f32 %v1729, %v1732
        %v1740 = vadd.f32 %v1730, %v1732
        %v1741 = vmax.f32 %v1734, 0.0
        %v1742 = vmax.f32 %v1735, 0.0
        %v1743 = vmax.f32 %v1736, 0.0
        %v1744 = vmax.f32 %v1737, 0.0
        %v1745 = vmax.f32 %v1738, 0.0
        %v1746 = vmax.f32 %v1739, 0.0
        %v1747 = vmax.f32 %v1740, 0.0
        %v1748 = vmax.f32 %v1709, %v1716
        %v1749 = vmax.f32 %v1710, %v1717
        %v1750 = vmax.f32 %v1711, %v1718
        %v1751 = vmax.f32 %v1712, %v1719
        %v1752 = vmax.f32 %v1713, %v1720
        %v1753 = vmax.f32 %v1714, %v1721
        %v1754 = vmax.f32 %v1715, %v1722
        %v1755 = vadd.f32 %v1748, %v1732
        %v1756 = vadd.f32 %v1749, %v1732
        %v1757 = vadd.f32 %v1750, %v1732
        %v1758 = vadd.f32 %v1751, %v1732
        %v1759 = vadd.f32 %v1752, %v1732
        %v1760 = vadd.f32 %v1753, %v1732
        %v1761 = vadd.f32 %v1754, %v1732
        %v1762 = vmax.f32 %v1755, 0.0
        %v1763 = vmax.f32 %v1756, 0.0
        %v1764 = vmax.f32 %v1757, 0.0
        %v1765 = vmax.f32 %v1758, 0.0
        %v1766 = vmax.f32 %v1759, 0.0
        %v1767 = vmax.f32 %v1760, 0.0
        %v1768 = vmax.f32 %v1761, 0.0
        %v1769 = vld [vmem:[%s3] sm:$0xff]
        %v1770 = vld [vmem:[%s3 + $0x8] sm:$0xff]
        %v1771 = vld [vmem:[%s3 + $0x10] sm:$0xff]
        %v1772 = vld [vmem:[%s3 + $0x18] sm:$0xff]
        %v1773 = vld [vmem:[%s3 + $0x20] sm:$0xff]
        %v1774 = vld [vmem:[%s3 + $0x28] sm:$0xff]
        %v1775 = vld [vmem:[%s3 + $0x30] sm:$0xff]
        %v1776 = vld [vmem:[%s3 + $0x38] sm:$0xff]
        %v1777 = vld [vmem:[%s3 + $0x40] sm:$0xff]
        %v1778 = vld [vmem:[%s3 + $0x48] sm:$0xff]
        %v1779 = vld [vmem:[%s3 + $0x50] sm:$0xff]
        %v1780 = vld [vmem:[%s3 + $0x58] sm:$0xff]
        %v1781 = vld [vmem:[%s3 + $0x60] sm:$0xff]
        %v1782 = vld [vmem:[%s3 + $0x68] sm:$0xff]
        %v1783 = vld [vmem:[%s3 + $0x70] sm:$0xff]
        %v1784 = vld [vmem:[%s3 + $0x78] sm:$0xff]
        %v1785 = vld [vmem:[%s3 + $0x80] sm:$0xff]
        %v1786 = vld [vmem:[%s3 + $0x88] sm:$0xff]
        %v1787 = vld [vmem:[%s3 + $0x90] sm:$0xff]
        %v1788 = vld [vmem:[%s3 + $0x98] sm:$0xff]
        %v1789 = vld [vmem:[%s3 + $0xa0] sm:$0xff]
        %v1790 = vld [vmem:[%s3 + $0xa8] sm:$0xff]
        %v1791 = vld [vmem:[%s3 + $0xb0] sm:$0xff]
        %v1792 = vld [vmem:[%s3 + $0xb8] sm:$0xff]
        %v1793 = vld [vmem:[%s3 + $0xc0] sm:$0xff]
        %v1794 = vld [vmem:[%s3 + $0xc8] sm:$0xff]
        %v1795 = vld [vmem:[%s3 + $0xd0] sm:$0xff]
        %v1796 = vld [vmem:[%s3 + $0xd8] sm:$0xff]
        %v1797 = vld [vmem:[%s3 + $0xe0] sm:$0xff]
        %v1798 = vld [vmem:[%s3 + $0xe8] sm:$0xff]
        %v1799 = vld [vmem:[%s3 + $0xf0] sm:$0xff]
        %v1800 = vld [vmem:[%s3 + $0xf8] sm:$0xff]
        %v1801 = vld [vmem:[%s3 + $0x100] sm:$0xff]
        %v1802 = vld [vmem:[%s3 + $0x108] sm:$0xff]
        %v1803 = vld [vmem:[%s3 + $0x110] sm:$0xff]
        %v1804 = vld [vmem:[%s3 + $0x118] sm:$0xff]
        %v1805 = vld [vmem:[%s3 + $0x120] sm:$0xff]
        %v1806 = vld [vmem:[%s3 + $0x128] sm:$0xff]
        %v1807 = vld [vmem:[%s3 + $0x130] sm:$0xff]
        %v1808 = vld [vmem:[%s3 + $0x138] sm:$0xff]
        %v1809 = vld [vmem:[%s3 + $0x140] sm:$0xff]
        %v1810 = vld [vmem:[%s3 + $0x148] sm:$0xff]
        %v1811 = vld [vmem:[%s3 + $0x150] sm:$0xff]
        %v1812 = vld [vmem:[%s3 + $0x158] sm:$0xff]
        %v1813 = vld [vmem:[%s3 + $0x160] sm:$0xff]
        %v1814 = vld [vmem:[%s3 + $0x168] sm:$0xff]
        %v1815 = vld [vmem:[%s3 + $0x170] sm:$0xff]
        %v1816 = vld [vmem:[%s3 + $0x178] sm:$0xff]
        %v1817 = vld [vmem:[%s3 + $0x180] sm:$0xff]
        %v1818 = vld [vmem:[%s3 + $0x188] sm:$0xff]
        %v1819 = vld [vmem:[%s3 + $0x190] sm:$0xff]
        %v1820 = vld [vmem:[%s3 + $0x198] sm:$0xff]
        %v1821 = vld [vmem:[%s3 + $0x1a0] sm:$0xff]
        %v1822 = vld [vmem:[%s3 + $0x1a8] sm:$0xff]
        %v1823 = vld [vmem:[%s3 + $0x1b0] sm:$0xff]
        %v1824 = vld [vmem:[%s3 + $0x1b8] sm:$0xff]
        %v1825 = vld [vmem:[%s3 + $0x1c0] sm:$0xff]
        %v1826 = vld [vmem:[%s3 + $0x1c8] sm:$0xff]
        %v1827 = vld [vmem:[%s3 + $0x1d0] sm:$0xff]
        %v1828 = vld [vmem:[%s3 + $0x1d8] sm:$0xff]
        %v1829 = vld [vmem:[%s3 + $0x1e0] sm:$0xff]
        %v1830 = vld [vmem:[%s3 + $0x1e8] sm:$0xff]
        %v1831 = vld [vmem:[%s3 + $0x1f0] sm:$0xff]
        %v1832 = vld [vmem:[%s3 + $0x1f8] sm:$0xff]
        %v1833 = vld [vmem:[%s3 + $0x200] sm:$0xff]
        %v1834 = vld [vmem:[%s3 + $0x208] sm:$0xff]
        %v1835 = vld [vmem:[%s3 + $0x210] sm:$0xff]
        %v1836 = vld [vmem:[%s3 + $0x218] sm:$0xff]
        %v1837 = vld [vmem:[%s3 + $0x220] sm:$0xff]
        %v1838 = vld [vmem:[%s3 + $0x228] sm:$0xff]
        %v1839 = vld [vmem:[%s3 + $0x230] sm:$0xff]
        %v1840 = vld [vmem:[%s3 + $0x238] sm:$0xff]
        %v1841 = vld [vmem:[%s3 + $0x240] sm:$0xff]
        %v1842 = vld [vmem:[%s3 + $0x248] sm:$0xff]
        %v1843 = vld [vmem:[%s3 + $0x250] sm:$0xff]
        %v1844 = vld [vmem:[%s3 + $0x258] sm:$0xff]
        %v1845 = vld [vmem:[%s3 + $0x260] sm:$0xff]
        %v1846 = vld [vmem:[%s3 + $0x268] sm:$0xff]
        %v1847 = vld [vmem:[%s3 + $0x270] sm:$0xff]
        %v1848 = vld [vmem:[%s3 + $0x278] sm:$0xff]
        %v1849 = vld [vmem:[%s3 + $0x280] sm:$0xff]
        %v1850 = vld [vmem:[%s3 + $0x288] sm:$0xff]
        %v1851 = vld [vmem:[%s3 + $0x290] sm:$0xff]
        %v1852 = vld [vmem:[%s3 + $0x298] sm:$0xff]
        %v1853 = vld [vmem:[%s3 + $0x2a0] sm:$0xff]
        %v1854 = vld [vmem:[%s3 + $0x2a8] sm:$0xff]
        %v1855 = vld [vmem:[%s3 + $0x2b0] sm:$0xff]
        %v1856 = vld [vmem:[%s3 + $0x2b8] sm:$0xff]
        %v1857 = vld [vmem:[%s3 + $0x2c0] sm:$0xff]
        %v1858 = vld [vmem:[%s3 + $0x2c8] sm:$0xff]
        %v1859 = vld [vmem:[%s3 + $0x2d0] sm:$0xff]
        %v1860 = vld [vmem:[%s3 + $0x2d8] sm:$0xff]
        %v1861 = vld [vmem:[%s3 + $0x2e0] sm:$0xff]
        %v1862 = vld [vmem:[%s3 + $0x2e8] sm:$0xff]
        %v1863 = vld [vmem:[%s3 + $0x2f0] sm:$0xff]
        %v1864 = vld [vmem:[%s3 + $0x2f8] sm:$0xff]
        %v1865 = vld [vmem:[%s3 + $0x300] sm:$0xff]
        %v1866 = vld [vmem:[%s3 + $0x308] sm:$0xff]
        %v1867 = vld [vmem:[%s3 + $0x310] sm:$0xff]
        %v1868 = vld [vmem:[%s3 + $0x318] sm:$0xff]
        %v1869 = vld [vmem:[%s3 + $0x320] sm:$0xff]
        %v1870 = vld [vmem:[%s3 + $0x328] sm:$0xff]
        %v1871 = vld [vmem:[%s3 + $0x330] sm:$0xff]
        %v1872 = vld [vmem:[%s3 + $0x338] sm:$0xff]
        %v1873 = vld [vmem:[%s3 + $0x340] sm:$0xff]
        %v1874 = vld [vmem:[%s3 + $0x348] sm:$0xff]
        %v1875 = vld [vmem:[%s3 + $0x350] sm:$0xff]
        %v1876 = vld [vmem:[%s3 + $0x358] sm:$0xff]
        %v1877 = vld [vmem:[%s3 + $0x360] sm:$0xff]
        %v1878 = vld [vmem:[%s3 + $0x368] sm:$0xff]
        %v1879 = vld [vmem:[%s3 + $0x370] sm:$0xff]
        %v1880 = vld [vmem:[%s3 + $0x378] sm:$0xff]
        %v1881 = vld [vmem:[%s3 + $0x380] sm:$0xff]
        %v1882 = vld [vmem:[%s3 + $0x388] sm:$0xff]
        %v1883 = vld [vmem:[%s3 + $0x390] sm:$0xff]
        %v1884 = vld [vmem:[%s3 + $0x398] sm:$0xff]
        %v1885 = vld [vmem:[%s3 + $0x3a0] sm:$0xff]
        %v1886 = vld [vmem:[%s3 + $0x3a8] sm:$0xff]
        %v1887 = vld [vmem:[%s3 + $0x3b0] sm:$0xff]
        %v1888 = vld [vmem:[%s3 + $0x3b8] sm:$0xff]
        %v1889 = vld [vmem:[%s3 + $0x3c0] sm:$0xff]
        %v1890 = vld [vmem:[%s3 + $0x3c8] sm:$0xff]
        %v1891 = vld [vmem:[%s3 + $0x3d0] sm:$0xff]
        %v1892 = vld [vmem:[%s3 + $0x3d8] sm:$0xff]
        %v1893 = vld [vmem:[%s3 + $0x3e0] sm:$0xff]
        %v1894 = vld [vmem:[%s3 + $0x3e8] sm:$0xff]
        %v1895 = vld [vmem:[%s3 + $0x3f0] sm:$0xff]
        %v1896 = vld [vmem:[%s3 + $0x3f8] sm:$0xff]
        %v1897 = vld [vmem:[%s3 + $0x400] sm:$0xff]
        %v1898 = vld [vmem:[%s3 + $0x408] sm:$0xff]
        %v1899 = vld [vmem:[%s3 + $0x410] sm:$0xff]
        %v1900 = vld [vmem:[%s3 + $0x418] sm:$0xff]
        %v1901 = vld [vmem:[%s3 + $0x420] sm:$0xff]
        %v1902 = vld [vmem:[%s3 + $0x428] sm:$0xff]
        %v1903 = vld [vmem:[%s3 + $0x430] sm:$0xff]
        %v1904 = vld [vmem:[%s3 + $0x438] sm:$0xff]
        %v1905 = vld [vmem:[%s3 + $0x440] sm:$0xff]
        %v1906 = vld [vmem:[%s3 + $0x448] sm:$0xff]
        %v1907 = vld [vmem:[%s3 + $0x450] sm:$0xff]
        %v1908 = vld [vmem:[%s3 + $0x458] sm:$0xff]
        %v1909 = vld [vmem:[%s3 + $0x460] sm:$0xff]
        %v1910 = vld [vmem:[%s3 + $0x468] sm:$0xff]
        %v1911 = vld [vmem:[%s3 + $0x470] sm:$0xff]
        %v1912 = vld [vmem:[%s3 + $0x478] sm:$0xff]
        %v1913 = vld [vmem:[%s3 + $0x480] sm:$0xff]
        %v1914 = vld [vmem:[%s3 + $0x488] sm:$0xff]
        %v1915 = vld [vmem:[%s3 + $0x490] sm:$0xff]
        %v1916 = vld [vmem:[%s3 + $0x498] sm:$0xff]
        %v1917 = vld [vmem:[%s3 + $0x4a0] sm:$0xff]
        %v1918 = vld [vmem:[%s3 + $0x4a8] sm:$0xff]
        %v1919 = vld [vmem:[%s3 + $0x4b0] sm:$0xff]
        %v1920 = vld [vmem:[%s3 + $0x4b8] sm:$0xff]
        %v1921 = vld [vmem:[%s3 + $0x4c0] sm:$0xff]
        %v1922 = vld [vmem:[%s3 + $0x4c8] sm:$0xff]
        %v1923 = vld [vmem:[%s3 + $0x4d0] sm:$0xff]
        %v1924 = vld [vmem:[%s3 + $0x4d8] sm:$0xff]
        %v1925 = vld [vmem:[%s3 + $0x4e0] sm:$0xff]
        %v1926 = vld [vmem:[%s3 + $0x4e8] sm:$0xff]
        %v1927 = vld [vmem:[%s3 + $0x4f0] sm:$0xff]
        %v1928 = vld [vmem:[%s3 + $0x4f8] sm:$0xff]
        %1929 = vmatpush.msra.mxu0 %v1799
        %1930 = vmatpush.msra.mxu0 %v1797
        %1931 = vmatpush.msra.mxu0 %v1795
        %1932 = vmatpush.msra.mxu0 %v1793
        %1933 = vmatpush.msra.mxu0 %v1791
        %1934 = vmatpush.msra.mxu0 %v1789
        %1935 = vmatpush.msra.mxu0 %v1787
        %1936 = vmatpush.msra.mxu0 %v1785
        %1937 = vmatpush.msra.mxu0 %v1783
        %1938 = vmatpush.msra.mxu0 %v1781
        %1939 = vmatpush.msra.mxu0 %v1779
        %1940 = vmatpush.msra.mxu0 %v1777
        %1941 = vmatpush.msra.mxu0 %v1775
        %1942 = vmatpush.msra.mxu0 %v1773
        %1943 = vmatpush.msra.mxu0 %v1771
        %1944 = vmatpush.msra.mxu0 %v1769
        %1945 = vmatmul.f32.gmra.mxu0 %v1741
        %v1946 = vpop.f32.mrf.mxu0
        %v1947 = vadd.f32 0.0, %v1946
        %1948 = vmatmul.f32.gmra.mxu0 %v1742
        %v1949 = vpop.f32.mrf.mxu0
        %v1950 = vadd.f32 0.0, %v1949
        %1951 = vmatmul.f32.gmra.mxu0 %v1743
        %v1952 = vpop.f32.mrf.mxu0
        %v1953 = vadd.f32 0.0, %v1952
        %1954 = vmatmul.f32.gmra.mxu0 %v1744
        %v1955 = vpop.f32.mrf.mxu0
        %v1956 = vadd.f32 0.0, %v1955
        %1957 = vmatmul.f32.gmra.mxu0 %v1745
        %v1958 = vpop.f32.mrf.mxu0
        %v1959 = vadd.f32 0.0, %v1958
        %1960 = vdwg.mxu0
        %1961 = vmatpush.msra.mxu0 %v1831
        %1962 = vmatpush.msra.mxu0 %v1829
        %1963 = vmatpush.msra.mxu0 %v1827
        %1964 = vmatpush.msra.mxu0 %v1825
        %1965 = vmatpush.msra.mxu0 %v1823
        %1966 = vmatpush.msra.mxu0 %v1821
        %1967 = vmatpush.msra.mxu0 %v1819
        %1968 = vmatpush.msra.mxu0 %v1817
        %1969 = vmatpush.msra.mxu0 %v1815
        %1970 = vmatpush.msra.mxu0 %v1813
        %1971 = vmatpush.msra.mxu0 %v1811
        %1972 = vmatpush.msra.mxu0 %v1809
        %1973 = vmatpush.msra.mxu0 %v1807
        %1974 = vmatpush.msra.mxu0 %v1805
        %1975 = vmatpush.msra.mxu0 %v1803
        %1976 = vmatpush.msra.mxu0 %v1801
        %1977 = vmatmul.f32.gmra.mxu0 %v1762
        %v1978 = vpop.f32.mrf.mxu0
        %v1979 = vadd.f32 %v1947, %v1978
        %1980 = vmatmul.f32.gmra.mxu0 %v1763
        %v1981 = vpop.f32.mrf.mxu0
        %v1982 = vadd.f32 %v1950, %v1981
        %1983 = vmatmul.f32.gmra.mxu0 %v1764
        %v1984 = vpop.f32.mrf.mxu0
        %v1985 = vadd.f32 %v1953, %v1984
        %1986 = vmatmul.f32.gmra.mxu0 %v1765
        %v1987 = vpop.f32.mrf.mxu0
        %v1988 = vadd.f32 %v1956, %v1987
        %1989 = vmatmul.f32.gmra.mxu0 %v1766
        %v1990 = vpop.f32.mrf.mxu0
        %v1991 = vadd.f32 %v1959, %v1990
        %1992 = vdwg.mxu0
        %1993 = vmatpush.msra.mxu0 %v1863
        %1994 = vmatpush.msra.mxu0 %v1861
        %1995 = vmatpush.msra.mxu0 %v1859
        %1996 = vmatpush.msra.mxu0 %v1857
        %1997 = vmatpush.msra.mxu0 %v1855
        %1998 = vmatpush.msra.mxu0 %v1853
        %1999 = vmatpush.msra.mxu0 %v1851
        %2000 = vmatpush.msra.mxu0 %v1849
        %2001 = vmatpush.msra.mxu0 %v1847
        %2002 = vmatpush.msra.mxu0 %v1845
        %2003 = vmatpush.msra.mxu0 %v1843
        %2004 = vmatpush.msra.mxu0 %v1841
        %2005 = vmatpush.msra.mxu0 %v1839
        %2006 = vmatpush.msra.mxu0 %v1837
        %2007 = vmatpush.msra.mxu0 %v1835
        %2008 = vmatpush.msra.mxu0 %v1833
        %2009 = vmatmul.f32.gmra.mxu0 %v1742
        %v2010 = vpop.f32.mrf.mxu0
        %v2011 = vadd.f32 %v1979, %v2010
        %2012 = vmatmul.f32.gmra.mxu0 %v1743
        %v2013 = vpop.f32.mrf.mxu0
        %v2014 = vadd.f32 %v1982, %v2013
        %2015 = vmatmul.f32.gmra.mxu0 %v1744
        %v2016 = vpop.f32.mrf.mxu0
        %v2017 = vadd.f32 %v1985, %v2016
        %2018 = vmatmul.f32.gmra.mxu0 %v1745
        %v2019 = vpop.f32.mrf.mxu0
        %v2020 = vadd.f32 %v1988, %v2019
        %2021 = vmatmul.f32.gmra.mxu0 %v1746
        %v2022 = vpop.f32.mrf.mxu0
        %v2023 = vadd.f32 %v1991, %v2022
        %2024 = vdwg.mxu0
        %2025 = vmatpush.msra.mxu0 %v1895
        %2026 = vmatpush.msra.mxu0 %v1893
        %2027 = vmatpush.msra.mxu0 %v1891
        %2028 = vmatpush.msra.mxu0 %v1889
        %2029 = vmatpush.msra.mxu0 %v1887
        %2030 = vmatpush.msra.mxu0 %v1885
        %2031 = vmatpush.msra.mxu0 %v1883
        %2032 = vmatpush.msra.mxu0 %v1881
        %2033 = vmatpush.msra.mxu0 %v1879
        %2034 = vmatpush.msra.mxu0 %v1877
        %2035 = vmatpush.msra.mxu0 %v1875
        %2036 = vmatpush.msra.mxu0 %v1873
        %2037 = vmatpush.msra.mxu0 %v1871
        %2038 = vmatpush.msra.mxu0 %v1869
        %2039 = vmatpush.msra.mxu0 %v1867
        %2040 = vmatpush.msra.mxu0 %v1865
        %2041 = vmatmul.f32.gmra.mxu0 %v1763
        %v2042 = vpop.f32.mrf.mxu0
        %v2043 = vadd.f32 %v2011, %v2042
        %2044 = vmatmul.f32.gmra.mxu0 %v1764
        %v2045 = vpop.f32.mrf.mxu0
        %v2046 = vadd.f32 %v2014, %v2045
        %2047 = vmatmul.f32.gmra.mxu0 %v1765
        %v2048 = vpop.f32.mrf.mxu0
        %v2049 = vadd.f32 %v2017, %v2048
        %2050 = vmatmul.f32.gmra.mxu0 %v1766
        %v2051 = vpop.f32.mrf.mxu0
        %v2052 = vadd.f32 %v2020, %v2051
        %2053 = vmatmul.f32.gmra.mxu0 %v1767
        %v2054 = vpop.f32.mrf.mxu0
        %v2055 = vadd.f32 %v2023, %v2054
        %2056 = vdwg.mxu0
        %2057 = vmatpush.msra.mxu0 %v1927
        %2058 = vmatpush.msra.mxu0 %v1925
        %2059 = vmatpush.msra.mxu0 %v1923
        %2060 = vmatpush.msra.mxu0 %v1921
        %2061 = vmatpush.msra.mxu0 %v1919
        %2062 = vmatpush.msra.mxu0 %v1917
        %2063 = vmatpush.msra.mxu0 %v1915
        %2064 = vmatpush.msra.mxu0 %v1913
        %2065 = vmatpush.msra.mxu0 %v1911
        %2066 = vmatpush.msra.mxu0 %v1909
        %2067 = vmatpush.msra.mxu0 %v1907
        %2068 = vmatpush.msra.mxu0 %v1905
        %2069 = vmatpush.msra.mxu0 %v1903
        %2070 = vmatpush.msra.mxu0 %v1901
        %2071 = vmatpush.msra.mxu0 %v1899
        %2072 = vmatpush.msra.mxu0 %v1897
        %2073 = vmatmul.f32.gmra.mxu0 %v1743
        %v2074 = vpop.f32.mrf.mxu0
        %v2075 = vadd.f32 %v2043, %v2074
        %2076 = vmatmul.f32.gmra.mxu0 %v1744
        %v2077 = vpop.f32.mrf.mxu0
        %v2078 = vadd.f32 %v2046, %v2077
        %2079 = vmatmul.f32.gmra.mxu0 %v1745
        %v2080 = vpop.f32.mrf.mxu0
        %v2081 = vadd.f32 %v2049, %v2080
        %2082 = vmatmul.f32.gmra.mxu0 %v1746
        %v2083 = vpop.f32.mrf.mxu0
        %v2084 = vadd.f32 %v2052, %v2083
        %2085 = vmatmul.f32.gmra.mxu0 %v1747
        %v2086 = vpop.f32.mrf.mxu0
        %v2087 = vadd.f32 %v2055, %v2086
        %2088 = vdwg.mxu0
        %2089 = vmatpush.msra.mxu0 %v1800
        %2090 = vmatpush.msra.mxu0 %v1798
        %2091 = vmatpush.msra.mxu0 %v1796
        %2092 = vmatpush.msra.mxu0 %v1794
        %2093 = vmatpush.msra.mxu0 %v1792
        %2094 = vmatpush.msra.mxu0 %v1790
        %2095 = vmatpush.msra.mxu0 %v1788
        %2096 = vmatpush.msra.mxu0 %v1786
        %2097 = vmatpush.msra.mxu0 %v1784
        %2098 = vmatpush.msra.mxu0 %v1782
        %2099 = vmatpush.msra.mxu0 %v1780
        %2100 = vmatpush.msra.mxu0 %v1778
        %2101 = vmatpush.msra.mxu0 %v1776
        %2102 = vmatpush.msra.mxu0 %v1774
        %2103 = vmatpush.msra.mxu0 %v1772
        %2104 = vmatpush.msra.mxu0 %v1770
        %2105 = vmatmul.f32.gmra.mxu0 %v1741
        %v2106 = vpop.f32.mrf.mxu0
        %v2107 = vadd.f32 0.0, %v2106
        %2108 = vmatmul.f32.gmra.mxu0 %v1742
        %v2109 = vpop.f32.mrf.mxu0
        %v2110 = vadd.f32 0.0, %v2109
        %2111 = vmatmul.f32.gmra.mxu0 %v1743
        %v2112 = vpop.f32.mrf.mxu0
        %v2113 = vadd.f32 0.0, %v2112
        %2114 = vmatmul.f32.gmra.mxu0 %v1744
        %v2115 = vpop.f32.mrf.mxu0
        %v2116 = vadd.f32 0.0, %v2115
        %2117 = vmatmul.f32.gmra.mxu0 %v1745
        %v2118 = vpop.f32.mrf.mxu0
        %v2119 = vadd.f32 0.0, %v2118
        %2120 = vdwg.mxu0
        %2121 = vmatpush.msra.mxu0 %v1832
        %2122 = vmatpush.msra.mxu0 %v1830
        %2123 = vmatpush.msra.mxu0 %v1828
        %2124 = vmatpush.msra.mxu0 %v1826
        %2125 = vmatpush.msra.mxu0 %v1824
        %2126 = vmatpush.msra.mxu0 %v1822
        %2127 = vmatpush.msra.mxu0 %v1820
        %2128 = vmatpush.msra.mxu0 %v1818
        %2129 = vmatpush.msra.mxu0 %v1816
        %2130 = vmatpush.msra.mxu0 %v1814
        %2131 = vmatpush.msra.mxu0 %v1812
        %2132 = vmatpush.msra.mxu0 %v1810
        %2133 = vmatpush.msra.mxu0 %v1808
        %2134 = vmatpush.msra.mxu0 %v1806
        %2135 = vmatpush.msra.mxu0 %v1804
        %2136 = vmatpush.msra.mxu0 %v1802
        %2137 = vmatmul.f32.gmra.mxu0 %v1762
        %v2138 = vpop.f32.mrf.mxu0
        %v2139 = vadd.f32 %v2107, %v2138
        %2140 = vmatmul.f32.gmra.mxu0 %v1763
        %v2141 = vpop.f32.mrf.mxu0
        %v2142 = vadd.f32 %v2110, %v2141
        %2143 = vmatmul.f32.gmra.mxu0 %v1764
        %v2144 = vpop.f32.mrf.mxu0
        %v2145 = vadd.f32 %v2113, %v2144
        %2146 = vmatmul.f32.gmra.mxu0 %v1765
        %v2147 = vpop.f32.mrf.mxu0
        %v2148 = vadd.f32 %v2116, %v2147
        %2149 = vmatmul.f32.gmra.mxu0 %v1766
        %v2150 = vpop.f32.mrf.mxu0
        %v2151 = vadd.f32 %v2119, %v2150
        %2152 = vdwg.mxu0
        %2153 = vmatpush.msra.mxu0 %v1864
        %2154 = vmatpush.msra.mxu0 %v1862
        %2155 = vmatpush.msra.mxu0 %v1860
        %2156 = vmatpush.msra.mxu0 %v1858
        %2157 = vmatpush.msra.mxu0 %v1856
        %2158 = vmatpush.msra.mxu0 %v1854
        %2159 = vmatpush.msra.mxu0 %v1852
        %2160 = vmatpush.msra.mxu0 %v1850
        %2161 = vmatpush.msra.mxu0 %v1848
        %2162 = vmatpush.msra.mxu0 %v1846
        %2163 = vmatpush.msra.mxu0 %v1844
        %2164 = vmatpush.msra.mxu0 %v1842
        %2165 = vmatpush.msra.mxu0 %v1840
        %2166 = vmatpush.msra.mxu0 %v1838
        %2167 = vmatpush.msra.mxu0 %v1836
        %2168 = vmatpush.msra.mxu0 %v1834
        %2169 = vmatmul.f32.gmra.mxu0 %v1742
        %v2170 = vpop.f32.mrf.mxu0
        %v2171 = vadd.f32 %v2139, %v2170
        %2172 = vmatmul.f32.gmra.mxu0 %v1743
        %v2173 = vpop.f32.mrf.mxu0
        %v2174 = vadd.f32 %v2142, %v2173
        %2175 = vmatmul.f32.gmra.mxu0 %v1744
        %v2176 = vpop.f32.mrf.mxu0
        %v2177 = vadd.f32 %v2145, %v2176
        %2178 = vmatmul.f32.gmra.mxu0 %v1745
        %v2179 = vpop.f32.mrf.mxu0
        %v2180 = vadd.f32 %v2148, %v2179
        %2181 = vmatmul.f32.gmra.mxu0 %v1746
        %v2182 = vpop.f32.mrf.mxu0
        %v2183 = vadd.f32 %v2151, %v2182
        %2184 = vdwg.mxu0
        %2185 = vmatpush.msra.mxu0 %v1896
        %2186 = vmatpush.msra.mxu0 %v1894
        %2187 = vmatpush.msra.mxu0 %v1892
        %2188 = vmatpush.msra.mxu0 %v1890
        %2189 = vmatpush.msra.mxu0 %v1888
        %2190 = vmatpush.msra.mxu0 %v1886
        %2191 = vmatpush.msra.mxu0 %v1884
        %2192 = vmatpush.msra.mxu0 %v1882
        %2193 = vmatpush.msra.mxu0 %v1880
        %2194 = vmatpush.msra.mxu0 %v1878
        %2195 = vmatpush.msra.mxu0 %v1876
        %2196 = vmatpush.msra.mxu0 %v1874
        %2197 = vmatpush.msra.mxu0 %v1872
        %2198 = vmatpush.msra.mxu0 %v1870
        %2199 = vmatpush.msra.mxu0 %v1868
        %2200 = vmatpush.msra.mxu0 %v1866
        %2201 = vmatmul.f32.gmra.mxu0 %v1763
        %v2202 = vpop.f32.mrf.mxu0
        %v2203 = vadd.f32 %v2171, %v2202
        %2204 = vmatmul.f32.gmra.mxu0 %v1764
        %v2205 = vpop.f32.mrf.mxu0
        %v2206 = vadd.f32 %v2174, %v2205
        %2207 = vmatmul.f32.gmra.mxu0 %v1765
        %v2208 = vpop.f32.mrf.mxu0
        %v2209 = vadd.f32 %v2177, %v2208
        %2210 = vmatmul.f32.gmra.mxu0 %v1766
        %v2211 = vpop.f32.mrf.mxu0
        %v2212 = vadd.f32 %v2180, %v2211
        %2213 = vmatmul.f32.gmra.mxu0 %v1767
        %v2214 = vpop.f32.mrf.mxu0
        %v2215 = vadd.f32 %v2183, %v2214
        %2216 = vdwg.mxu0
        %2217 = vmatpush.msra.mxu0 %v1928
        %2218 = vmatpush.msra.mxu0 %v1926
        %2219 = vmatpush.msra.mxu0 %v1924
        %2220 = vmatpush.msra.mxu0 %v1922
        %2221 = vmatpush.msra.mxu0 %v1920
        %2222 = vmatpush.msra.mxu0 %v1918
        %2223 = vmatpush.msra.mxu0 %v1916
        %2224 = vmatpush.msra.mxu0 %v1914
        %2225 = vmatpush.msra.mxu0 %v1912
        %2226 = vmatpush.msra.mxu0 %v1910
        %2227 = vmatpush.msra.mxu0 %v1908
        %2228 = vmatpush.msra.mxu0 %v1906
        %2229 = vmatpush.msra.mxu0 %v1904
        %2230 = vmatpush.msra.mxu0 %v1902
        %2231 = vmatpush.msra.mxu0 %v1900
        %2232 = vmatpush.msra.mxu0 %v1898
        %2233 = vmatmul.f32.gmra.mxu0 %v1743
        %v2234 = vpop.f32.mrf.mxu0
        %v2235 = vadd.f32 %v2203, %v2234
        %2236 = vmatmul.f32.gmra.mxu0 %v1744
        %v2237 = vpop.f32.mrf.mxu0
        %v2238 = vadd.f32 %v2206, %v2237
        %2239 = vmatmul.f32.gmra.mxu0 %v1745
        %v2240 = vpop.f32.mrf.mxu0
        %v2241 = vadd.f32 %v2209, %v2240
        %2242 = vmatmul.f32.gmra.mxu0 %v1746
        %v2243 = vpop.f32.mrf.mxu0
        %v2244 = vadd.f32 %v2212, %v2243
        %2245 = vmatmul.f32.gmra.mxu0 %v1747
        %v2246 = vpop.f32.mrf.mxu0
        %v2247 = vadd.f32 %v2215, %v2246
        %2248 = vdwg.mxu0
        %2249 = vmatpush.msra.mxu0 %v1799
        %2250 = vmatpush.msra.mxu0 %v1797
        %2251 = vmatpush.msra.mxu0 %v1795
        %2252 = vmatpush.msra.mxu0 %v1793
        %2253 = vmatpush.msra.mxu0 %v1791
        %2254 = vmatpush.msra.mxu0 %v1789
        %2255 = vmatpush.msra.mxu0 %v1787
        %2256 = vmatpush.msra.mxu0 %v1785
        %2257 = vmatpush.msra.mxu0 %v1783
        %2258 = vmatpush.msra.mxu0 %v1781
        %2259 = vmatpush.msra.mxu0 %v1779
        %2260 = vmatpush.msra.mxu0 %v1777
        %2261 = vmatpush.msra.mxu0 %v1775
        %2262 = vmatpush.msra.mxu0 %v1773
        %2263 = vmatpush.msra.mxu0 %v1771
        %2264 = vmatpush.msra.mxu0 %v1769
        %2265 = vmatmul.f32.gmra.mxu0 %v1762
        %v2266 = vpop.f32.mrf.mxu0
        %v2267 = vadd.f32 0.0, %v2266
        %2268 = vmatmul.f32.gmra.mxu0 %v1763
        %v2269 = vpop.f32.mrf.mxu0
        %v2270 = vadd.f32 0.0, %v2269
        %2271 = vmatmul.f32.gmra.mxu0 %v1764
        %v2272 = vpop.f32.mrf.mxu0
        %v2273 = vadd.f32 0.0, %v2272
        %2274 = vmatmul.f32.gmra.mxu0 %v1765
        %v2275 = vpop.f32.mrf.mxu0
        %v2276 = vadd.f32 0.0, %v2275
        %2277 = vmatmul.f32.gmra.mxu0 %v1766
        %v2278 = vpop.f32.mrf.mxu0
        %v2279 = vadd.f32 0.0, %v2278
        %2280 = vdwg.mxu0
        %2281 = vmatpush.msra.mxu0 %v1831
        %2282 = vmatpush.msra.mxu0 %v1829
        %2283 = vmatpush.msra.mxu0 %v1827
        %2284 = vmatpush.msra.mxu0 %v1825
        %2285 = vmatpush.msra.mxu0 %v1823
        %2286 = vmatpush.msra.mxu0 %v1821
        %2287 = vmatpush.msra.mxu0 %v1819
        %2288 = vmatpush.msra.mxu0 %v1817
        %2289 = vmatpush.msra.mxu0 %v1815
        %2290 = vmatpush.msra.mxu0 %v1813
        %2291 = vmatpush.msra.mxu0 %v1811
        %2292 = vmatpush.msra.mxu0 %v1809
        %2293 = vmatpush.msra.mxu0 %v1807
        %2294 = vmatpush.msra.mxu0 %v1805
        %2295 = vmatpush.msra.mxu0 %v1803
        %2296 = vmatpush.msra.mxu0 %v1801
        %2297 = vmatmul.f32.gmra.mxu0 %v1742
        %v2298 = vpop.f32.mrf.mxu0
        %v2299 = vadd.f32 %v2267, %v2298
        %2300 = vmatmul.f32.gmra.mxu0 %v1743
        %v2301 = vpop.f32.mrf.mxu0
        %v2302 = vadd.f32 %v2270, %v2301
        %2303 = vmatmul.f32.gmra.mxu0 %v1744
        %v2304 = vpop.f32.mrf.mxu0
        %v2305 = vadd.f32 %v2273, %v2304
        %2306 = vmatmul.f32.gmra.mxu0 %v1745
        %v2307 = vpop.f32.mrf.mxu0
        %v2308 = vadd.f32 %v2276, %v2307
        %2309 = vmatmul.f32.gmra.mxu0 %v1746
        %v2310 = vpop.f32.mrf.mxu0
        %v2311 = vadd.f32 %v2279, %v2310
        %2312 = vdwg.mxu0
        %2313 = vmatpush.msra.mxu0 %v1863
        %2314 = vmatpush.msra.mxu0 %v1861
        %2315 = vmatpush.msra.mxu0 %v1859
        %2316 = vmatpush.msra.mxu0 %v1857
        %2317 = vmatpush.msra.mxu0 %v1855
        %2318 = vmatpush.msra.mxu0 %v1853
        %2319 = vmatpush.msra.mxu0 %v1851
        %2320 = vmatpush.msra.mxu0 %v1849
        %2321 = vmatpush.msra.mxu0 %v1847
        %2322 = vmatpush.msra.mxu0 %v1845
        %2323 = vmatpush.msra.mxu0 %v1843
        %2324 = vmatpush.msra.mxu0 %v1841
        %2325 = vmatpush.msra.mxu0 %v1839
        %2326 = vmatpush.msra.mxu0 %v1837
        %2327 = vmatpush.msra.mxu0 %v1835
        %2328 = vmatpush.msra.mxu0 %v1833
        %2329 = vmatmul.f32.gmra.mxu0 %v1763
        %v2330 = vpop.f32.mrf.mxu0
        %v2331 = vadd.f32 %v2299, %v2330
        %2332 = vmatmul.f32.gmra.mxu0 %v1764
        %v2333 = vpop.f32.mrf.mxu0
        %v2334 = vadd.f32 %v2302, %v2333
        %2335 = vmatmul.f32.gmra.mxu0 %v1765
        %v2336 = vpop.f32.mrf.mxu0
        %v2337 = vadd.f32 %v2305, %v2336
        %2338 = vmatmul.f32.gmra.mxu0 %v1766
        %v2339 = vpop.f32.mrf.mxu0
        %v2340 = vadd.f32 %v2308, %v2339
        %2341 = vmatmul.f32.gmra.mxu0 %v1767
        %v2342 = vpop.f32.mrf.mxu0
        %v2343 = vadd.f32 %v2311, %v2342
        %2344 = vdwg.mxu0
        %2345 = vmatpush.msra.mxu0 %v1895
        %2346 = vmatpush.msra.mxu0 %v1893
        %2347 = vmatpush.msra.mxu0 %v1891
        %2348 = vmatpush.msra.mxu0 %v1889
        %2349 = vmatpush.msra.mxu0 %v1887
        %2350 = vmatpush.msra.mxu0 %v1885
        %2351 = vmatpush.msra.mxu0 %v1883
        %2352 = vmatpush.msra.mxu0 %v1881
        %2353 = vmatpush.msra.mxu0 %v1879
        %2354 = vmatpush.msra.mxu0 %v1877
        %2355 = vmatpush.msra.mxu0 %v1875
        %2356 = vmatpush.msra.mxu0 %v1873
        %2357 = vmatpush.msra.mxu0 %v1871
        %2358 = vmatpush.msra.mxu0 %v1869
        %2359 = vmatpush.msra.mxu0 %v1867
        %2360 = vmatpush.msra.mxu0 %v1865
        %2361 = vmatmul.f32.gmra.mxu0 %v1743
        %v2362 = vpop.f32.mrf.mxu0
        %v2363 = vadd.f32 %v2331, %v2362
        %2364 = vmatmul.f32.gmra.mxu0 %v1744
        %v2365 = vpop.f32.mrf.mxu0
        %v2366 = vadd.f32 %v2334, %v2365
        %2367 = vmatmul.f32.gmra.mxu0 %v1745
        %v2368 = vpop.f32.mrf.mxu0
        %v2369 = vadd.f32 %v2337, %v2368
        %2370 = vmatmul.f32.gmra.mxu0 %v1746
        %v2371 = vpop.f32.mrf.mxu0
        %v2372 = vadd.f32 %v2340, %v2371
        %2373 = vmatmul.f32.gmra.mxu0 %v1747
        %v2374 = vpop.f32.mrf.mxu0
        %v2375 = vadd.f32 %v2343, %v2374
        %2376 = vdwg.mxu0
        %2377 = vmatpush.msra.mxu0 %v1927
        %2378 = vmatpush.msra.mxu0 %v1925
        %2379 = vmatpush.msra.mxu0 %v1923
        %2380 = vmatpush.msra.mxu0 %v1921
        %2381 = vmatpush.msra.mxu0 %v1919
        %2382 = vmatpush.msra.mxu0 %v1917
        %2383 = vmatpush.msra.mxu0 %v1915
        %2384 = vmatpush.msra.mxu0 %v1913
        %2385 = vmatpush.msra.mxu0 %v1911
        %2386 = vmatpush.msra.mxu0 %v1909
        %2387 = vmatpush.msra.mxu0 %v1907
        %2388 = vmatpush.msra.mxu0 %v1905
        %2389 = vmatpush.msra.mxu0 %v1903
        %2390 = vmatpush.msra.mxu0 %v1901
        %2391 = vmatpush.msra.mxu0 %v1899
        %2392 = vmatpush.msra.mxu0 %v1897
        %2393 = vmatmul.f32.gmra.mxu0 %v1764
        %v2394 = vpop.f32.mrf.mxu0
        %v2395 = vadd.f32 %v2363, %v2394
        %2396 = vmatmul.f32.gmra.mxu0 %v1765
        %v2397 = vpop.f32.mrf.mxu0
        %v2398 = vadd.f32 %v2366, %v2397
        %2399 = vmatmul.f32.gmra.mxu0 %v1766
        %v2400 = vpop.f32.mrf.mxu0
        %v2401 = vadd.f32 %v2369, %v2400
        %2402 = vmatmul.f32.gmra.mxu0 %v1767
        %v2403 = vpop.f32.mrf.mxu0
        %v2404 = vadd.f32 %v2372, %v2403
        %2405 = vmatmul.f32.gmra.mxu0 %v1768
        %v2406 = vpop.f32.mrf.mxu0
        %v2407 = vadd.f32 %v2375, %v2406
        %2408 = vdwg.mxu0
        %2409 = vmatpush.msra.mxu0 %v1800
        %2410 = vmatpush.msra.mxu0 %v1798
        %2411 = vmatpush.msra.mxu0 %v1796
        %2412 = vmatpush.msra.mxu0 %v1794
        %2413 = vmatpush.msra.mxu0 %v1792
        %2414 = vmatpush.msra.mxu0 %v1790
        %2415 = vmatpush.msra.mxu0 %v1788
        %2416 = vmatpush.msra.mxu0 %v1786
        %2417 = vmatpush.msra.mxu0 %v1784
        %2418 = vmatpush.msra.mxu0 %v1782
        %2419 = vmatpush.msra.mxu0 %v1780
        %2420 = vmatpush.msra.mxu0 %v1778
        %2421 = vmatpush.msra.mxu0 %v1776
        %2422 = vmatpush.msra.mxu0 %v1774
        %2423 = vmatpush.msra.mxu0 %v1772
        %2424 = vmatpush.msra.mxu0 %v1770
        %2425 = vmatmul.f32.gmra.mxu0 %v1762
        %v2426 = vpop.f32.mrf.mxu0
        %v2427 = vadd.f32 0.0, %v2426
        %2428 = vmatmul.f32.gmra.mxu0 %v1763
        %v2429 = vpop.f32.mrf.mxu0
        %v2430 = vadd.f32 0.0, %v2429
        %2431 = vmatmul.f32.gmra.mxu0 %v1764
        %v2432 = vpop.f32.mrf.mxu0
        %v2433 = vadd.f32 0.0, %v2432
        %2434 = vmatmul.f32.gmra.mxu0 %v1765
        %v2435 = vpop.f32.mrf.mxu0
        %v2436 = vadd.f32 0.0, %v2435
        %2437 = vmatmul.f32.gmra.mxu0 %v1766
        %v2438 = vpop.f32.mrf.mxu0
        %v2439 = vadd.f32 0.0, %v2438
        %2440 = vdwg.mxu0
        %2441 = vmatpush.msra.mxu0 %v1832
        %2442 = vmatpush.msra.mxu0 %v1830
        %2443 = vmatpush.msra.mxu0 %v1828
        %2444 = vmatpush.msra.mxu0 %v1826
        %2445 = vmatpush.msra.mxu0 %v1824
        %2446 = vmatpush.msra.mxu0 %v1822
        %2447 = vmatpush.msra.mxu0 %v1820
        %2448 = vmatpush.msra.mxu0 %v1818
        %2449 = vmatpush.msra.mxu0 %v1816
        %2450 = vmatpush.msra.mxu0 %v1814
        %2451 = vmatpush.msra.mxu0 %v1812
        %2452 = vmatpush.msra.mxu0 %v1810
        %2453 = vmatpush.msra.mxu0 %v1808
        %2454 = vmatpush.msra.mxu0 %v1806
        %2455 = vmatpush.msra.mxu0 %v1804
        %2456 = vmatpush.msra.mxu0 %v1802
        %2457 = vmatmul.f32.gmra.mxu0 %v1742
        %v2458 = vpop.f32.mrf.mxu0
        %v2459 = vadd.f32 %v2427, %v2458
        %2460 = vmatmul.f32.gmra.mxu0 %v1743
        %v2461 = vpop.f32.mrf.mxu0
        %v2462 = vadd.f32 %v2430, %v2461
        %2463 = vmatmul.f32.gmra.mxu0 %v1744
        %v2464 = vpop.f32.mrf.mxu0
        %v2465 = vadd.f32 %v2433, %v2464
        %2466 = vmatmul.f32.gmra.mxu0 %v1745
        %v2467 = vpop.f32.mrf.mxu0
        %v2468 = vadd.f32 %v2436, %v2467
        %2469 = vmatmul.f32.gmra.mxu0 %v1746
        %v2470 = vpop.f32.mrf.mxu0
        %v2471 = vadd.f32 %v2439, %v2470
        %2472 = vdwg.mxu0
        %2473 = vmatpush.msra.mxu0 %v1864
        %2474 = vmatpush.msra.mxu0 %v1862
        %2475 = vmatpush.msra.mxu0 %v1860
        %2476 = vmatpush.msra.mxu0 %v1858
        %2477 = vmatpush.msra.mxu0 %v1856
        %2478 = vmatpush.msra.mxu0 %v1854
        %2479 = vmatpush.msra.mxu0 %v1852
        %2480 = vmatpush.msra.mxu0 %v1850
        %2481 = vmatpush.msra.mxu0 %v1848
        %2482 = vmatpush.msra.mxu0 %v1846
        %2483 = vmatpush.msra.mxu0 %v1844
        %2484 = vmatpush.msra.mxu0 %v1842
        %2485 = vmatpush.msra.mxu0 %v1840
        %2486 = vmatpush.msra.mxu0 %v1838
        %2487 = vmatpush.msra.mxu0 %v1836
        %2488 = vmatpush.msra.mxu0 %v1834
        %2489 = vmatmul.f32.gmra.mxu0 %v1763
        %v2490 = vpop.f32.mrf.mxu0
        %v2491 = vadd.f32 %v2459, %v2490
        %2492 = vmatmul.f32.gmra.mxu0 %v1764
        %v2493 = vpop.f32.mrf.mxu0
        %v2494 = vadd.f32 %v2462, %v2493
        %2495 = vmatmul.f32.gmra.mxu0 %v1765
        %v2496 = vpop.f32.mrf.mxu0
        %v2497 = vadd.f32 %v2465, %v2496
        %2498 = vmatmul.f32.gmra.mxu0 %v1766
        %v2499 = vpop.f32.mrf.mxu0
        %v2500 = vadd.f32 %v2468, %v2499
        %2501 = vmatmul.f32.gmra.mxu0 %v1767
        %v2502 = vpop.f32.mrf.mxu0
        %v2503 = vadd.f32 %v2471, %v2502
        %2504 = vdwg.mxu0
        %2505 = vmatpush.msra.mxu0 %v1896
        %2506 = vmatpush.msra.mxu0 %v1894
        %2507 = vmatpush.msra.mxu0 %v1892
        %2508 = vmatpush.msra.mxu0 %v1890
        %2509 = vmatpush.msra.mxu0 %v1888
        %2510 = vmatpush.msra.mxu0 %v1886
        %2511 = vmatpush.msra.mxu0 %v1884
        %2512 = vmatpush.msra.mxu0 %v1882
        %2513 = vmatpush.msra.mxu0 %v1880
        %2514 = vmatpush.msra.mxu0 %v1878
        %2515 = vmatpush.msra.mxu0 %v1876
        %2516 = vmatpush.msra.mxu0 %v1874
        %2517 = vmatpush.msra.mxu0 %v1872
        %2518 = vmatpush.msra.mxu0 %v1870
        %2519 = vmatpush.msra.mxu0 %v1868
        %2520 = vmatpush.msra.mxu0 %v1866
        %2521 = vmatmul.f32.gmra.mxu0 %v1743
        %v2522 = vpop.f32.mrf.mxu0
        %v2523 = vadd.f32 %v2491, %v2522
        %2524 = vmatmul.f32.gmra.mxu0 %v1744
        %v2525 = vpop.f32.mrf.mxu0
        %v2526 = vadd.f32 %v2494, %v2525
        %2527 = vmatmul.f32.gmra.mxu0 %v1745
        %v2528 = vpop.f32.mrf.mxu0
        %v2529 = vadd.f32 %v2497, %v2528
        %2530 = vmatmul.f32.gmra.mxu0 %v1746
        %v2531 = vpop.f32.mrf.mxu0
        %v2532 = vadd.f32 %v2500, %v2531
        %2533 = vmatmul.f32.gmra.mxu0 %v1747
        %v2534 = vpop.f32.mrf.mxu0
        %v2535 = vadd.f32 %v2503, %v2534
        %2536 = vdwg.mxu0
        %2537 = vmatpush.msra.mxu0 %v1928
        %2538 = vmatpush.msra.mxu0 %v1926
        %2539 = vmatpush.msra.mxu0 %v1924
        %2540 = vmatpush.msra.mxu0 %v1922
        %2541 = vmatpush.msra.mxu0 %v1920
        %2542 = vmatpush.msra.mxu0 %v1918
        %2543 = vmatpush.msra.mxu0 %v1916
        %2544 = vmatpush.msra.mxu0 %v1914
        %2545 = vmatpush.msra.mxu0 %v1912
        %2546 = vmatpush.msra.mxu0 %v1910
        %2547 = vmatpush.msra.mxu0 %v1908
        %2548 = vmatpush.msra.mxu0 %v1906
        %2549 = vmatpush.msra.mxu0 %v1904
        %2550 = vmatpush.msra.mxu0 %v1902
        %2551 = vmatpush.msra.mxu0 %v1900
        %2552 = vmatpush.msra.mxu0 %v1898
        %2553 = vmatmul.f32.gmra.mxu0 %v1764
        %v2554 = vpop.f32.mrf.mxu0
        %v2555 = vadd.f32 %v2523, %v2554
        %2556 = vmatmul.f32.gmra.mxu0 %v1765
        %v2557 = vpop.f32.mrf.mxu0
        %v2558 = vadd.f32 %v2526, %v2557
        %2559 = vmatmul.f32.gmra.mxu0 %v1766
        %v2560 = vpop.f32.mrf.mxu0
        %v2561 = vadd.f32 %v2529, %v2560
        %2562 = vmatmul.f32.gmra.mxu0 %v1767
        %v2563 = vpop.f32.mrf.mxu0
        %v2564 = vadd.f32 %v2532, %v2563
        %2565 = vmatmul.f32.gmra.mxu0 %v1768
        %v2566 = vpop.f32.mrf.mxu0
        %v2567 = vadd.f32 %v2535, %v2566
        %2568 = vdwg.mxu0
        %v2569 = vmax.f32 %v2075, %v2235
        %v2570 = vmax.f32 %v2078, %v2238
        %v2571 = vmax.f32 %v2081, %v2241
        %v2572 = vmax.f32 %v2084, %v2244
        %v2573 = vmax.f32 %v2087, %v2247
        %v2574 = vmax.f32 %v2395, %v2555
        %v2575 = vmax.f32 %v2398, %v2558
        %v2576 = vmax.f32 %v2401, %v2561
        %v2577 = vmax.f32 %v2404, %v2564
        %v2578 = vmax.f32 %v2407, %v2567
        %v2579 = vmax.f32 %v2569, %v2574
        %v2580 = vmax.f32 %v2570, %v2575
        %v2581 = vmax.f32 %v2571, %v2576
        %v2582 = vmax.f32 %v2572, %v2577
        %v2583 = vmax.f32 %v2573, %v2578
        %v2584 = vld [vmem:[%s4] sm:$0x1]
        %v2586 = vperm.slane %v2584, 0
        %v2588 = vadd.f32 %v2579, %v2586
        %v2589 = vadd.f32 %v2580, %v2586
        %v2590 = vadd.f32 %v2581, %v2586
        %v2591 = vadd.f32 %v2582, %v2586
        %v2592 = vadd.f32 %v2583, %v2586
        %v2593 = vmax.f32 %v2588, 0.0
        %v2594 = vmax.f32 %v2589, 0.0
        %v2595 = vmax.f32 %v2590, 0.0
        %v2596 = vmax.f32 %v2591, 0.0
        %v2597 = vmax.f32 %v2592, 0.0
        %v2598 = vld [vmem:[%s5] sm:$0xff]
        %v2599 = vld [vmem:[%s5 + $0x8] sm:$0xff]
        %v2600 = vld [vmem:[%s5 + $0x10] sm:$0xff]
        %v2601 = vld [vmem:[%s5 + $0x18] sm:$0xff]
        %v2602 = vld [vmem:[%s5 + $0x20] sm:$0xff]
        %v2603 = vld [vmem:[%s5 + $0x28] sm:$0xff]
        %v2604 = vld [vmem:[%s5 + $0x30] sm:$0xff]
        %v2605 = vld [vmem:[%s5 + $0x38] sm:$0xff]
        %v2606 = vld [vmem:[%s5 + $0x40] sm:$0xff]
        %v2607 = vld [vmem:[%s5 + $0x48] sm:$0xff]
        %v2608 = vld [vmem:[%s5 + $0x50] sm:$0xff]
        %v2609 = vld [vmem:[%s5 + $0x58] sm:$0xff]
        %v2610 = vld [vmem:[%s5 + $0x60] sm:$0xff]
        %v2611 = vld [vmem:[%s5 + $0x68] sm:$0xff]
        %v2612 = vld [vmem:[%s5 + $0x70] sm:$0xff]
        %v2613 = vld [vmem:[%s5 + $0x78] sm:$0xff]
        %v2614 = vld [vmem:[%s5 + $0x80] sm:$0xff]
        %v2615 = vld [vmem:[%s5 + $0x88] sm:$0xff]
        %v2616 = vld [vmem:[%s5 + $0x90] sm:$0xff]
        %v2617 = vld [vmem:[%s5 + $0x98] sm:$0xff]
        %v2618 = vld [vmem:[%s5 + $0xa0] sm:$0xff]
        %v2619 = vld [vmem:[%s5 + $0xa8] sm:$0xff]
        %v2620 = vld [vmem:[%s5 + $0xb0] sm:$0xff]
        %v2621 = vld [vmem:[%s5 + $0xb8] sm:$0xff]
        %v2622 = vld [vmem:[%s5 + $0xc0] sm:$0xff]
        %v2623 = vld [vmem:[%s5 + $0xc8] sm:$0xff]
        %v2624 = vld [vmem:[%s5 + $0xd0] sm:$0xff]
        %v2625 = vld [vmem:[%s5 + $0xd8] sm:$0xff]
        %v2626 = vld [vmem:[%s5 + $0xe0] sm:$0xff]
        %v2627 = vld [vmem:[%s5 + $0xe8] sm:$0xff]
        %v2628 = vld [vmem:[%s5 + $0xf0] sm:$0xff]
        %v2629 = vld [vmem:[%s5 + $0xf8] sm:$0xff]
        %v2630 = vld [vmem:[%s5 + $0x100] sm:$0xff]
        %v2631 = vld [vmem:[%s5 + $0x108] sm:$0xff]
        %v2632 = vld [vmem:[%s5 + $0x110] sm:$0xff]
        %v2633 = vld [vmem:[%s5 + $0x118] sm:$0xff]
        %v2634 = vld [vmem:[%s5 + $0x120] sm:$0xff]
        %v2635 = vld [vmem:[%s5 + $0x128] sm:$0xff]
        %v2636 = vld [vmem:[%s5 + $0x130] sm:$0xff]
        %v2637 = vld [vmem:[%s5 + $0x138] sm:$0xff]
        %v2638 = vld [vmem:[%s5 + $0x140] sm:$0xff]
        %v2639 = vld [vmem:[%s5 + $0x148] sm:$0xff]
        %v2640 = vld [vmem:[%s5 + $0x150] sm:$0xff]
        %v2641 = vld [vmem:[%s5 + $0x158] sm:$0xff]
        %v2642 = vld [vmem:[%s5 + $0x160] sm:$0xff]
        %v2643 = vld [vmem:[%s5 + $0x168] sm:$0xff]
        %v2644 = vld [vmem:[%s5 + $0x170] sm:$0xff]
        %v2645 = vld [vmem:[%s5 + $0x178] sm:$0xff]
        %v2646 = vld [vmem:[%s5 + $0x180] sm:$0xff]
        %v2647 = vld [vmem:[%s5 + $0x188] sm:$0xff]
        %v2648 = vld [vmem:[%s5 + $0x190] sm:$0xff]
        %v2649 = vld [vmem:[%s5 + $0x198] sm:$0xff]
        %v2650 = vld [vmem:[%s5 + $0x1a0] sm:$0xff]
        %v2651 = vld [vmem:[%s5 + $0x1a8] sm:$0xff]
        %v2652 = vld [vmem:[%s5 + $0x1b0] sm:$0xff]
        %v2653 = vld [vmem:[%s5 + $0x1b8] sm:$0xff]
        %v2654 = vld [vmem:[%s5 + $0x1c0] sm:$0xff]
        %v2655 = vld [vmem:[%s5 + $0x1c8] sm:$0xff]
        %v2656 = vld [vmem:[%s5 + $0x1d0] sm:$0xff]
        %v2657 = vld [vmem:[%s5 + $0x1d8] sm:$0xff]
        %v2658 = vld [vmem:[%s5 + $0x1e0] sm:$0xff]
        %v2659 = vld [vmem:[%s5 + $0x1e8] sm:$0xff]
        %v2660 = vld [vmem:[%s5 + $0x1f0] sm:$0xff]
        %v2661 = vld [vmem:[%s5 + $0x1f8] sm:$0xff]
        %v2662 = vld [vmem:[%s5 + $0x200] sm:$0xff]
        %v2663 = vld [vmem:[%s5 + $0x208] sm:$0xff]
        %v2664 = vld [vmem:[%s5 + $0x210] sm:$0xff]
        %v2665 = vld [vmem:[%s5 + $0x218] sm:$0xff]
        %v2666 = vld [vmem:[%s5 + $0x220] sm:$0xff]
        %v2667 = vld [vmem:[%s5 + $0x228] sm:$0xff]
        %v2668 = vld [vmem:[%s5 + $0x230] sm:$0xff]
        %v2669 = vld [vmem:[%s5 + $0x238] sm:$0xff]
        %v2670 = vld [vmem:[%s5 + $0x240] sm:$0xff]
        %v2671 = vld [vmem:[%s5 + $0x248] sm:$0xff]
        %v2672 = vld [vmem:[%s5 + $0x250] sm:$0xff]
        %v2673 = vld [vmem:[%s5 + $0x258] sm:$0xff]
        %v2674 = vld [vmem:[%s5 + $0x260] sm:$0xff]
        %v2675 = vld [vmem:[%s5 + $0x268] sm:$0xff]
        %v2676 = vld [vmem:[%s5 + $0x270] sm:$0xff]
        %v2677 = vld [vmem:[%s5 + $0x278] sm:$0xff]
        %v2678 = vld [vmem:[%s6] sm:$0x1]
        %v2680 = vperm.slane %v2678, 0
        %2682 = vmatpush.msra.mxu0 %v2613
        %2683 = vmatpush.msra.mxu0 %v2612
        %2684 = vmatpush.msra.mxu0 %v2611
        %2685 = vmatpush.msra.mxu0 %v2610
        %2686 = vmatpush.msra.mxu0 %v2609
        %2687 = vmatpush.msra.mxu0 %v2608
        %2688 = vmatpush.msra.mxu0 %v2607
        %2689 = vmatpush.msra.mxu0 %v2606
        %2690 = vmatpush.msra.mxu0 %v2605
        %2691 = vmatpush.msra.mxu0 %v2604
        %2692 = vmatpush.msra.mxu0 %v2603
        %2693 = vmatpush.msra.mxu0 %v2602
        %2694 = vmatpush.msra.mxu0 %v2601
        %2695 = vmatpush.msra.mxu0 %v2600
        %2696 = vmatpush.msra.mxu0 %v2599
        %2697 = vmatpush.msra.mxu0 %v2598
        %2698 = vmatmul.f32.gmra.mxu0 %v2593
        %v2699 = vpop.f32.mrf.mxu0
        %v2700 = vadd.f32 %v2680, %v2699
        %2701 = vdwg.mxu0
        %2702 = vmatpush.msra.mxu0 %v2629
        %2703 = vmatpush.msra.mxu0 %v2628
        %2704 = vmatpush.msra.mxu0 %v2627
        %2705 = vmatpush.msra.mxu0 %v2626
        %2706 = vmatpush.msra.mxu0 %v2625
        %2707 = vmatpush.msra.mxu0 %v2624
        %2708 = vmatpush.msra.mxu0 %v2623
        %2709 = vmatpush.msra.mxu0 %v2622
        %2710 = vmatpush.msra.mxu0 %v2621
        %2711 = vmatpush.msra.mxu0 %v2620
        %2712 = vmatpush.msra.mxu0 %v2619
        %2713 = vmatpush.msra.mxu0 %v2618
        %2714 = vmatpush.msra.mxu0 %v2617
        %2715 = vmatpush.msra.mxu0 %v2616
        %2716 = vmatpush.msra.mxu0 %v2615
        %2717 = vmatpush.msra.mxu0 %v2614
        %2718 = vmatmul.f32.gmra.mxu0 %v2594
        %v2719 = vpop.f32.mrf.mxu0
        %v2720 = vadd.f32 %v2700, %v2719
        %2721 = vdwg.mxu0
        %2722 = vmatpush.msra.mxu0 %v2645
        %2723 = vmatpush.msra.mxu0 %v2644
        %2724 = vmatpush.msra.mxu0 %v2643
        %2725 = vmatpush.msra.mxu0 %v2642
        %2726 = vmatpush.msra.mxu0 %v2641
        %2727 = vmatpush.msra.mxu0 %v2640
        %2728 = vmatpush.msra.mxu0 %v2639
        %2729 = vmatpush.msra.mxu0 %v2638
        %2730 = vmatpush.msra.mxu0 %v2637
        %2731 = vmatpush.msra.mxu0 %v2636
        %2732 = vmatpush.msra.mxu0 %v2635
        %2733 = vmatpush.msra.mxu0 %v2634
        %2734 = vmatpush.msra.mxu0 %v2633
        %2735 = vmatpush.msra.mxu0 %v2632
        %2736 = vmatpush.msra.mxu0 %v2631
        %2737 = vmatpush.msra.mxu0 %v2630
        %2738 = vmatmul.f32.gmra.mxu0 %v2595
        %v2739 = vpop.f32.mrf.mxu0
        %v2740 = vadd.f32 %v2720, %v2739
        %2741 = vdwg.mxu0
        %2742 = vmatpush.msra.mxu0 %v2661
        %2743 = vmatpush.msra.mxu0 %v2660
        %2744 = vmatpush.msra.mxu0 %v2659
        %2745 = vmatpush.msra.mxu0 %v2658
        %2746 = vmatpush.msra.mxu0 %v2657
        %2747 = vmatpush.msra.mxu0 %v2656
        %2748 = vmatpush.msra.mxu0 %v2655
        %2749 = vmatpush.msra.mxu0 %v2654
        %2750 = vmatpush.msra.mxu0 %v2653
        %2751 = vmatpush.msra.mxu0 %v2652
        %2752 = vmatpush.msra.mxu0 %v2651
        %2753 = vmatpush.msra.mxu0 %v2650
        %2754 = vmatpush.msra.mxu0 %v2649
        %2755 = vmatpush.msra.mxu0 %v2648
        %2756 = vmatpush.msra.mxu0 %v2647
        %2757 = vmatpush.msra.mxu0 %v2646
        %2758 = vmatmul.f32.gmra.mxu0 %v2596
        %v2759 = vpop.f32.mrf.mxu0
        %v2760 = vadd.f32 %v2740, %v2759
        %2761 = vdwg.mxu0
        %2762 = vmatpush.msra.mxu0 %v2677
        %2763 = vmatpush.msra.mxu0 %v2676
        %2764 = vmatpush.msra.mxu0 %v2675
        %2765 = vmatpush.msra.mxu0 %v2674
        %2766 = vmatpush.msra.mxu0 %v2673
        %2767 = vmatpush.msra.mxu0 %v2672
        %2768 = vmatpush.msra.mxu0 %v2671
        %2769 = vmatpush.msra.mxu0 %v2670
        %2770 = vmatpush.msra.mxu0 %v2669
        %2771 = vmatpush.msra.mxu0 %v2668
        %2772 = vmatpush.msra.mxu0 %v2667
        %2773 = vmatpush.msra.mxu0 %v2666
        %2774 = vmatpush.msra.mxu0 %v2665
        %2775 = vmatpush.msra.mxu0 %v2664
        %2776 = vmatpush.msra.mxu0 %v2663
        %2777 = vmatpush.msra.mxu0 %v2662
        %2778 = vmatmul.f32.gmra.mxu0 %v2597
        %v2779 = vpop.f32.mrf.mxu0
        %v2780 = vadd.f32 %v2760, %v2779
        %2781 = vdwg.mxu0
        %v2782 = vmax.f32 %v2780, 0.0
        %v2783 = vld [vmem:[%s7] sm:$0xff]
        %v2784 = vld [vmem:[%s7 + $0x8] sm:$0xff]
        %v2785 = vld [vmem:[%s7 + $0x10] sm:$0xff]
        %v2786 = vld [vmem:[%s7 + $0x18] sm:$0xff]
        %v2787 = vld [vmem:[%s7 + $0x20] sm:$0xff]
        %v2788 = vld [vmem:[%s7 + $0x28] sm:$0xff]
        %v2789 = vld [vmem:[%s7 + $0x30] sm:$0xff]
        %v2790 = vld [vmem:[%s7 + $0x38] sm:$0xff]
        %v2791 = vld [vmem:[%s7 + $0x40] sm:$0xff]
        %v2792 = vld [vmem:[%s7 + $0x48] sm:$0xff]
        %v2793 = vld [vmem:[%s7 + $0x50] sm:$0xff]
        %v2794 = vld [vmem:[%s7 + $0x58] sm:$0xff]
        %v2795 = vld [vmem:[%s7 + $0x60] sm:$0xff]
        %v2796 = vld [vmem:[%s7 + $0x68] sm:$0xff]
        %v2797 = vld [vmem:[%s7 + $0x70] sm:$0xff]
        %v2798 = vld [vmem:[%s7 + $0x78] sm:$0xff]
        %v2799 = vld [vmem:[%s8] sm:$0x1]
        %v2801 = vperm.slane %v2799, 0
        %2803 = vmatpush.msra.mxu0 %v2798
        %2804 = vmatpush.msra.mxu0 %v2797
        %2805 = vmatpush.msra.mxu0 %v2796
        %2806 = vmatpush.msra.mxu0 %v2795
        %2807 = vmatpush.msra.mxu0 %v2794
        %2808 = vmatpush.msra.mxu0 %v2793
        %2809 = vmatpush.msra.mxu0 %v2792
        %2810 = vmatpush.msra.mxu0 %v2791
        %2811 = vmatpush.msra.mxu0 %v2790
        %2812 = vmatpush.msra.mxu0 %v2789
        %2813 = vmatpush.msra.mxu0 %v2788
        %2814 = vmatpush.msra.mxu0 %v2787
        %2815 = vmatpush.msra.mxu0 %v2786
        %2816 = vmatpush.msra.mxu0 %v2785
        %2817 = vmatpush.msra.mxu0 %v2784
        %2818 = vmatpush.msra.mxu0 %v2783
        %2819 = vmatmul.f32.gmra.mxu0 %v2782
        %v2820 = vpop.f32.mrf.mxu0
        %v2821 = vadd.f32 %v2801, %v2820
        %2822 = vdwg.mxu0
        %v2823 = vmax.f32 %v2821, 0.0
        %v2824 = vld [vmem:[%s9] sm:$0xff]
        %v2825 = vld [vmem:[%s9 + $0x8] sm:$0xff]
        %v2826 = vld [vmem:[%s9 + $0x10] sm:$0xff]
        %v2827 = vld [vmem:[%s9 + $0x18] sm:$0xff]
        %v2828 = vld [vmem:[%s9 + $0x20] sm:$0xff]
        %v2829 = vld [vmem:[%s9 + $0x28] sm:$0xff]
        %v2830 = vld [vmem:[%s9 + $0x30] sm:$0xff]
        %v2831 = vld [vmem:[%s9 + $0x38] sm:$0xff]
        %v2832 = vld [vmem:[%s9 + $0x40] sm:$0xff]
        %v2833 = vld [vmem:[%s9 + $0x48] sm:$0xff]
        %v2834 = vld [vmem:[%s9 + $0x50] sm:$0xff]
        %v2835 = vld [vmem:[%s9 + $0x58] sm:$0xff]
        %v2836 = vld [vmem:[%s9 + $0x60] sm:$0xff]
        %v2837 = vld [vmem:[%s9 + $0x68] sm:$0xff]
        %v2838 = vld [vmem:[%s9 + $0x70] sm:$0xff]
        %v2839 = vld [vmem:[%s9 + $0x78] sm:$0xff]
        %v2840 = vld [vmem:[%s10] sm:$0x1]
        %v2842 = vperm.slane %v2840, 0
        %2844 = vmatpush.msra.mxu0 %v2839
        %2845 = vmatpush.msra.mxu0 %v2838
        %2846 = vmatpush.msra.mxu0 %v2837
        %2847 = vmatpush.msra.mxu0 %v2836
        %2848 = vmatpush.msra.mxu0 %v2835
        %2849 = vmatpush.msra.mxu0 %v2834
        %2850 = vmatpush.msra.mxu0 %v2833
        %2851 = vmatpush.msra.mxu0 %v2832
        %2852 = vmatpush.msra.mxu0 %v2831
        %2853 = vmatpush.msra.mxu0 %v2830
        %2854 = vmatpush.msra.mxu0 %v2829
        %2855 = vmatpush.msra.mxu0 %v2828
        %2856 = vmatpush.msra.mxu0 %v2827
        %2857 = vmatpush.msra.mxu0 %v2826
        %2858 = vmatpush.msra.mxu0 %v2825
        %2859 = vmatpush.msra.mxu0 %v2824
        %2860 = vmatmul.f32.gmra.mxu0 %v2823
        %v2861 = vpop.f32.mrf.mxu0
        %v2862 = vadd.f32 %v2842, %v2861
        %2863 = vdwg.mxu0
        %2864 = vst [vmem:[%s379] sm:$0xff] %v2862
        %s2865 = sand.u32 %s269, 1
        %s2866 = scalar_lea.sflag [#allocation3], %s2865
        %s2867 = sand.u32 %s269, 1
        %s2868 = smul.addr %s2867, 8
        %s2869 = scalar_lea.vmem [#allocation2], %s2868
        // Predicated region
        $region65: #{cnn_forward.1} parent=63 // pred_check
          %p2870 = pneg %p279
        $region66: #{cnn_forward.1} parent=63 // pred_check_branch
          %2872 = sbr.rel (%p2870) target = $region68
        $region67: #{cnn_forward.1} parent=63 // pred_region
          %2874 = vsyncadd %s2866, 0
          %s2875 = smul.addr %s25, 8
          %s2876 = scalar_lea.hbm %s11, %s2875
          %s2878 = sshll.u32 %s2869, 4
          %s2879 = int_to_ptr.vmem [resolvable:$true] %s2878
          %s2880 = sshll.u32 %s2876, 4
          %s2881 = int_to_ptr.hbm [resolvable:$true] %s2880
          %2883 = dma.vmem_to_hbm [thread:$0]  %s2879, 128, %s2881, %s2866
        $region68: #{cnn_forward.1} parent=63 // pred_fallthru
          _
      $region64: #{cnn_forward.1} parent=5 // pred_fallthru
        _
      %p2884 = scmp.le.s32.totalorder 2, %s20
      // Predicated region
      $region69: #{cnn_forward.1} parent=5 // pred_check
        %p2885 = pneg %p2884
      $region70: #{cnn_forward.1} parent=5 // pred_check_branch
        %2887 = sbr.rel (%p2885) target = $region72
      $region71: #{cnn_forward.1} parent=5 // pred_region
        %s2888 = ssub.s32 %s20, 2
        // Predicated region
        $region73: #{cnn_forward.1} parent=71 // pred_check
          %p2889 = pneg %p285
        $region74: #{cnn_forward.1} parent=71 // pred_check_branch
          %2891 = sbr.rel (%p2889) target = $region76
        $region75: #{cnn_forward.1} parent=71 // pred_region
          %s2892 = sand.u32 %s270, 1
          %s2893 = scalar_lea.sflag [#allocation3], %s2892
          %s2894 = sand.u32 %s270, 1
          %s2895 = smul.addr %s2894, 8
          %s2896 = scalar_lea.vmem [#allocation2], %s2895
          %2898 = dma.done %s2893, 128
        $region76: #{cnn_forward.1} parent=71 // pred_fallthru
          _
      $region72: #{cnn_forward.1} parent=5 // pred_fallthru
        _
    $region6: #{cnn_forward.1} parent=1 // loop_footer
      %s24 = sadd.s32 1, %s20
    $region7: #{cnn_forward.1} parent=1 // loop_footer_branch
      %19 = sbr.rel target = $region3
    $region8: #{cnn_forward.1} parent=1 // loop_exit
      _
    %2899 = vsyncpa [#allocation3], 1
    %s2900 = scalar_lea.sflag [#allocation3], 1
    %2901 = vsyncpa %s2900, 1

</llo_original>
